<compile_context>
chip_gen: v7x
topology: tpu7x:2x2x1
jax: 0.10.0
libtpu: 0.0.40
codegen_flags: <defaults>
</compile_context>

<pallas_src>
import functools

import jax
import jax.numpy as jnp
import numpy as np
from jax import lax
from jax.experimental import pallas as pl
from jax.experimental.pallas import tpu as pltpu


def dae_kernel(idx_ref,                         # SMEM (B*S,) int32, batch-major (row = b*S + t)
               emb_ref,                         # (V, E)  f32 embedding table (row 0 == 0)
               e_wih_ref, e_whh_ref, e_b_ref,   # encoder LSTM (gates i,f,o,g): (E,4H) bf16, (H,4H) bf16, (1,4H) f32
               dfold_w_ref, dfold_b_ref,        # folded efc∘dfc∘d_wih: (H,4H) bf16, (1,4H) f32
               d_whh_ref,                       # decoder recurrent weight: (H,4H) bf16
               ow_ref, ob_ref,                  # output proj: (H,V) bf16, (1,V) f32
               out_ref,                         # (B*S, V) f32 logits, batch-major
               x_emb_ref,                       # scratch (S*B, E)  f32, time-major
               xg_ref,                          # scratch (S*B, 4H) f32, time-major
               hdec_ref,                        # scratch (B*S, H)  f32, batch-major
               *, seq_len, batch):
    S, B = seq_len, batch
    H = e_whh_ref.shape[0]
    cdt = e_whh_ref.dtype        # bf16 — MXU operands only; accumulation stays f32

    # Hoist loop-invariant weight loads.
    e_whh = e_whh_ref[...]
    d_whh = d_whh_ref[...]

    def gate_act(gates):         # gates (B, 4H) f32, column order [i, f, o, g]
        sig = jax.nn.sigmoid(gates[:, :3 * H])      # one EUP slab for i, f, o
        g = jnp.tanh(gates[:, 3 * H:])
        return sig[:, 0:H], sig[:, H:2 * H], sig[:, 2 * H:3 * H], g

    # ---- Embedding lookup as a real gather (S*B dynamic row reads, no one-hot) ----
    # Time-major scratch rows (t*B + b) from batch-major ids (b*S + t).
    for t in range(S):
        for b in range(B):
            tok = idx_ref[b * S + t]                                   # scalar from SMEM
            x_emb_ref[pl.ds(t * B + b, 1), :] = emb_ref[pl.ds(tok, 1), :]

    # ---- Precompute encoder input-gate contributions for every step (one matmul) ----
    xg_ref[...] = (jnp.dot(x_emb_ref[...].astype(cdt), e_wih_ref[...],
                           preferred_element_type=jnp.float32)
                   + e_b_ref[...])                                     # (S*B, 4H) f32

    # ---------------- Encoder LSTM (fully unrolled, S small/static) ----------------
    h = jnp.zeros((B, H), jnp.float32)
    c = jnp.zeros((B, H), jnp.float32)
    for t in range(S):
        gates = (xg_ref[pl.ds(t * B, B), :]
                 + jnp.dot(h.astype(cdt), e_whh, preferred_element_type=jnp.float32))
        i, f, o, g = gate_act(gates)
        c = f * c + i * g
        h = o * jnp.tanh(c)

    # encoder_fc -> dropout(id) -> decoder_fc -> dropout(id) -> decoder W_ih (+ biases),
    # folded into one affine map in the wrapper (eval-mode only).
    xg_dec = (jnp.dot(h.astype(cdt), dfold_w_ref[...],
                      preferred_element_type=jnp.float32) + dfold_b_ref[...])   # (B, 4H)

    # ---------------- Decoder LSTM (input loop-invariant, fully unrolled) ----------
    h = jnp.zeros((B, H), jnp.float32)
    c = jnp.zeros((B, H), jnp.float32)
    for t in range(S):
        gates = xg_dec + jnp.dot(h.astype(cdt), d_whh, preferred_element_type=jnp.float32)
        i, f, o, g = gate_act(gates)
        c = f * c + i * g
        h = o * jnp.tanh(c)
        # Store batch-major (row = b*S + t): off the recurrence's data-dep chain,
        # lets the output keep its (B,S,V) layout with a free reshape (no transpose).
        for b in range(B):
            hdec_ref[pl.ds(b * S + t, 1), :] = h[b:b + 1, :]

    # ---------------- Output projection hoisted out of the loop --------------------
    out_ref[...] = (jnp.dot(hdec_ref[...].astype(cdt), ow_ref[...],
                            preferred_element_type=jnp.float32) + ob_ref[...])


def dae_forward(noisy_input, params, weight_dtype=jnp.bfloat16):
    """noisy_input: (B, S) int32 token ids. Returns logits (B, S, V) float32."""
    B, S = noisy_input.shape
    V, E = params["emb"].shape
    H = params["e_whh"].shape[1]
    wd = weight_dtype
    f32 = jnp.float32

    def reorder(x):  # PyTorch gate rows [i,f,g,o] -> [i,f,o,g] along axis 0
        return jnp.concatenate([x[:2 * H], x[3 * H:4 * H], x[2 * H:3 * H]], axis=0)

    # Eval-mode fold: encoder_fc -> decoder_fc -> decoder W_ih, plus all biases.
    dfold_w = params["d_wih"] @ params["dfc_w"] @ params["efc_w"]                 # (4H, H)
    dfold_b = (params["d_wih"] @ (params["dfc_w"] @ params["efc_b"] + params["dfc_b"])
               + params["d_bih"] + params["d_bhh"])                               # (4H,)

    idx = noisy_input.astype(jnp.int32).reshape(B * S)   # batch-major flat ids for SMEM

    args = [
        idx,
        params["emb"].astype(f32),                                   # f32 table: exact gather
        reorder(params["e_wih"]).T.astype(wd),
        reorder(params["e_whh"]).T.astype(wd),
        reorder(params["e_bih"] + params["e_bhh"])[None, :].astype(f32),
        reorder(dfold_w).T.astype(wd),
        reorder(dfold_b)[None, :].astype(f32),
        reorder(params["d_whh"]).T.astype(wd),
        params["ow"].T.astype(wd),
        params["ob"][None, :].astype(f32),
    ]

    in_specs = ([pl.BlockSpec(memory_space=pltpu.MemorySpace.SMEM)]
                + [pl.BlockSpec(memory_space=pltpu.MemorySpace.VMEM)] * (len(args) - 1))

    kernel = functools.partial(dae_kernel, seq_len=S, batch=B)
    out2d = pl.pallas_call(
        kernel,
        out_shape=jax.ShapeDtypeStruct((B * S, V), jnp.float32),
        in_specs=in_specs,
        out_specs=pl.BlockSpec(memory_space=pltpu.MemorySpace.VMEM),
        scratch_shapes=[
            pltpu.VMEM((S * B, E), jnp.float32),        # gathered embeddings (time-major)
            pltpu.VMEM((S * B, 4 * H), jnp.float32),    # precomputed encoder input gates
            pltpu.VMEM((B * S, H), jnp.float32),        # decoder hidden states (batch-major)
        ],
    )(*args)

    return out2d.reshape(B, S, V)   # already batch-major: reshape only, no transpose


# ----------------------- pure-JAX reference (for validation) -----------------------
def _lstm_ref(xs, wih, whh, bih, bhh):
    B = xs.shape[0]
    H = whh.shape[1]

    def step(carry, x):
        h, c = carry
        gates = x @ wih.T + bih + h @ whh.T + bhh
        i, f, g, o = jnp.split(gates, 4, axis=-1)
        i, f, o = jax.nn.sigmoid(i), jax.nn.sigmoid(f), jax.nn.sigmoid(o)
        g = jnp.tanh(g)
        c = f * c + i * g
        h = o * jnp.tanh(c)
        return (h, c), h

    init = (jnp.zeros((B, H), jnp.float32), jnp.zeros((B, H), jnp.float32))
    (h, _), hs = lax.scan(step, init, jnp.swapaxes(xs, 0, 1))
    return jnp.swapaxes(hs, 0, 1), h


def dae_reference(noisy_input, params):
    B, S = noisy_input.shape
    emb = params["emb"][noisy_input]                                    # (B, S, E)
    _, h_last = _lstm_ref(emb, params["e_wih"], params["e_whh"],
                          params["e_bih"], params["e_bhh"])
    encoded = h_last @ params["efc_w"].T + params["efc_b"]
    dec_hidden = encoded @ params["dfc_w"].T + params["dfc_b"]
    dec_in = jnp.repeat(dec_hidden[:, None, :], S, axis=1)
    dec_out, _ = _lstm_ref(dec_in, params["d_wih"], params["d_whh"],
                           params["d_bih"], params["d_bhh"])
    return dec_out @ params["ow"].T + params["ob"]


def make_params(key, vocab_size, embed_dim, hidden_dim):
    V, E, H = vocab_size, embed_dim, hidden_dim
    ks = jax.random.split(key, 16)
    n = lambda k, shape: (jax.random.normal(k, shape, jnp.float32) * 0.1)
    emb = n(ks[0], (V, E))
    emb = emb.at[0].set(0.0)                       # padding_idx=0 row is zero
    return {
        "emb": emb,
        # encoder LSTM (PyTorch layout: (4H, in), (4H, H), (4H,))
        "e_wih": n(ks[1], (4 * H, E)), "e_whh": n(ks[2], (4 * H, H)),
        "e_bih": n(ks[3], (4 * H,)), "e_bhh": n(ks[4], (4 * H,)),
        # encoder_fc / decoder_fc
        "efc_w": n(ks[5], (H // 2, H)), "efc_b": n(ks[6], (H // 2,)),
        "dfc_w": n(ks[7], (H, H // 2)), "dfc_b": n(ks[8], (H,)),
        # decoder LSTM
        "d_wih": n(ks[9], (4 * H, H)), "d_whh": n(ks[10], (4 * H, H)),
        "d_bih": n(ks[11], (4 * H,)), "d_bhh": n(ks[12], (4 * H,)),
        # output projection
        "ow": n(ks[13], (V, H)), "ob": n(ks[14], (V,)),
    }


if __name__ == "__main__":
    VOCAB, EMBED, HIDDEN = 256, 64, 128
    BATCH, SEQ = 2, 8

    key = jax.random.PRNGKey(0)
    k_par, k_idx = jax.random.split(key)
    params = make_params(k_par, VOCAB, EMBED, HIDDEN)

    noisy_input = jax.random.randint(k_idx, (BATCH, SEQ), 1, VOCAB, dtype=jnp.int32)

    out = dae_forward(noisy_input, params)
    out = jax.block_until_ready(out)

    ref = jax.block_until_ready(dae_reference(noisy_input, params))

    assert out.shape == (BATCH, SEQ, VOCAB), out.shape
    # bf16 MXU operands (weights quantized once, f32 accumulation, f32 gather/state):
    # error is O(1e-3) at these scales, well inside the 1e-2 tolerance.
    np.testing.assert_allclose(np.asarray(out), np.asarray(ref),
                               rtol=1e-2, atol=1e-2)
    print("KERNEL_OK")
</pallas_src>

<mosaic_0001>
module attributes {stable_mosaic.version = 11 : i64} {
  func.func @dae_kernel(%arg0: memref<16xi32, #tpu.memory_space<smem>>, %arg1: memref<256x64xf32, #tpu.memory_space<vmem>>, %arg2: memref<64x512xbf16, #tpu.memory_space<vmem>>, %arg3: memref<128x512xbf16, #tpu.memory_space<vmem>>, %arg4: memref<1x512xf32, #tpu.memory_space<vmem>>, %arg5: memref<128x512xbf16, #tpu.memory_space<vmem>>, %arg6: memref<1x512xf32, #tpu.memory_space<vmem>>, %arg7: memref<128x512xbf16, #tpu.memory_space<vmem>>, %arg8: memref<128x256xbf16, #tpu.memory_space<vmem>>, %arg9: memref<1x256xf32, #tpu.memory_space<vmem>>, %arg10: memref<16x256xf32, #tpu.memory_space<vmem>>, %arg11: memref<16x64xf32, #tpu.memory_space<vmem>>, %arg12: memref<16x512xf32, #tpu.memory_space<vmem>>, %arg13: memref<16x128xf32, #tpu.memory_space<vmem>>) attributes {dimension_semantics = [], scalar_prefetch = 0 : i64, scratch_operands = 3 : i64, tpu.core_type = #tpu.core_type<tc>} {
    %c0 = arith.constant 0 : index
    %c0_0 = arith.constant 0 : index
    %0 = vector.load %arg3[%c0, %c0_0] : memref<128x512xbf16, #tpu.memory_space<vmem>>, vector<128x512xbf16>
    %c0_1 = arith.constant 0 : index
    %c0_2 = arith.constant 0 : index
    %1 = vector.load %arg7[%c0_1, %c0_2] : memref<128x512xbf16, #tpu.memory_space<vmem>>, vector<128x512xbf16>
    %c0_3 = arith.constant 0 : index
    %2 = memref.load %arg0[%c0_3] : memref<16xi32, #tpu.memory_space<smem>>
    %3 = arith.index_cast %2 : i32 to index
    %c0_4 = arith.constant 0 : index
    %4 = vector.load %arg1[%3, %c0_4] : memref<256x64xf32, #tpu.memory_space<vmem>>, vector<1x64xf32>
    %c0_5 = arith.constant 0 : index
    %c0_6 = arith.constant 0 : index
    %5 = vector.load %arg11[%c0_5, %c0_6] : memref<16x64xf32, #tpu.memory_space<vmem>>, vector<1x64xf32>
    tpu.vector_store %arg11[%c0_5, %c0_6], %4 {strides = array<i32>} : memref<16x64xf32, #tpu.memory_space<vmem>>, vector<1x64xf32>,
    %c8 = arith.constant 8 : index
    %6 = memref.load %arg0[%c8] : memref<16xi32, #tpu.memory_space<smem>>
    %7 = arith.index_cast %6 : i32 to index
    %c0_7 = arith.constant 0 : index
    %8 = vector.load %arg1[%7, %c0_7] : memref<256x64xf32, #tpu.memory_space<vmem>>, vector<1x64xf32>
    %c1 = arith.constant 1 : index
    %c0_8 = arith.constant 0 : index
    %9 = vector.load %arg11[%c1, %c0_8] : memref<16x64xf32, #tpu.memory_space<vmem>>, vector<1x64xf32>
    tpu.vector_store %arg11[%c1, %c0_8], %8 {strides = array<i32>} : memref<16x64xf32, #tpu.memory_space<vmem>>, vector<1x64xf32>,
    %c1_9 = arith.constant 1 : index
    %10 = memref.load %arg0[%c1_9] : memref<16xi32, #tpu.memory_space<smem>>
    %11 = arith.index_cast %10 : i32 to index
    %c0_10 = arith.constant 0 : index
    %12 = vector.load %arg1[%11, %c0_10] : memref<256x64xf32, #tpu.memory_space<vmem>>, vector<1x64xf32>
    %c2 = arith.constant 2 : index
    %c0_11 = arith.constant 0 : index
    %13 = vector.load %arg11[%c2, %c0_11] : memref<16x64xf32, #tpu.memory_space<vmem>>, vector<1x64xf32>
    tpu.vector_store %arg11[%c2, %c0_11], %12 {strides = array<i32>} : memref<16x64xf32, #tpu.memory_space<vmem>>, vector<1x64xf32>,
    %c9 = arith.constant 9 : index
    %14 = memref.load %arg0[%c9] : memref<16xi32, #tpu.memory_space<smem>>
    %15 = arith.index_cast %14 : i32 to index
    %c0_12 = arith.constant 0 : index
    %16 = vector.load %arg1[%15, %c0_12] : memref<256x64xf32, #tpu.memory_space<vmem>>, vector<1x64xf32>
    %c3 = arith.constant 3 : index
    %c0_13 = arith.constant 0 : index
    %17 = vector.load %arg11[%c3, %c0_13] : memref<16x64xf32, #tpu.memory_space<vmem>>, vector<1x64xf32>
    tpu.vector_store %arg11[%c3, %c0_13], %16 {strides = array<i32>} : memref<16x64xf32, #tpu.memory_space<vmem>>, vector<1x64xf32>,
    %c2_14 = arith.constant 2 : index
    %18 = memref.load %arg0[%c2_14] : memref<16xi32, #tpu.memory_space<smem>>
    %19 = arith.index_cast %18 : i32 to index
    %c0_15 = arith.constant 0 : index
    %20 = vector.load %arg1[%19, %c0_15] : memref<256x64xf32, #tpu.memory_space<vmem>>, vector<1x64xf32>
    %c4 = arith.constant 4 : index
    %c0_16 = arith.constant 0 : index
    %21 = vector.load %arg11[%c4, %c0_16] : memref<16x64xf32, #tpu.memory_space<vmem>>, vector<1x64xf32>
    tpu.vector_store %arg11[%c4, %c0_16], %20 {strides = array<i32>} : memref<16x64xf32, #tpu.memory_space<vmem>>, vector<1x64xf32>,
    %c10 = arith.constant 10 : index
    %22 = memref.load %arg0[%c10] : memref<16xi32, #tpu.memory_space<smem>>
    %23 = arith.index_cast %22 : i32 to index
    %c0_17 = arith.constant 0 : index
    %24 = vector.load %arg1[%23, %c0_17] : memref<256x64xf32, #tpu.memory_space<vmem>>, vector<1x64xf32>
    %c5 = arith.constant 5 : index
    %c0_18 = arith.constant 0 : index
    %25 = vector.load %arg11[%c5, %c0_18] : memref<16x64xf32, #tpu.memory_space<vmem>>, vector<1x64xf32>
    tpu.vector_store %arg11[%c5, %c0_18], %24 {strides = array<i32>} : memref<16x64xf32, #tpu.memory_space<vmem>>, vector<1x64xf32>,
    %c3_19 = arith.constant 3 : index
    %26 = memref.load %arg0[%c3_19] : memref<16xi32, #tpu.memory_space<smem>>
    %27 = arith.index_cast %26 : i32 to index
    %c0_20 = arith.constant 0 : index
    %28 = vector.load %arg1[%27, %c0_20] : memref<256x64xf32, #tpu.memory_space<vmem>>, vector<1x64xf32>
    %c6 = arith.constant 6 : index
    %c0_21 = arith.constant 0 : index
    %29 = vector.load %arg11[%c6, %c0_21] : memref<16x64xf32, #tpu.memory_space<vmem>>, vector<1x64xf32>
    tpu.vector_store %arg11[%c6, %c0_21], %28 {strides = array<i32>} : memref<16x64xf32, #tpu.memory_space<vmem>>, vector<1x64xf32>,
    %c11 = arith.constant 11 : index
    %30 = memref.load %arg0[%c11] : memref<16xi32, #tpu.memory_space<smem>>
    %31 = arith.index_cast %30 : i32 to index
    %c0_22 = arith.constant 0 : index
    %32 = vector.load %arg1[%31, %c0_22] : memref<256x64xf32, #tpu.memory_space<vmem>>, vector<1x64xf32>
    %c7 = arith.constant 7 : index
    %c0_23 = arith.constant 0 : index
    %33 = vector.load %arg11[%c7, %c0_23] : memref<16x64xf32, #tpu.memory_space<vmem>>, vector<1x64xf32>
    tpu.vector_store %arg11[%c7, %c0_23], %32 {strides = array<i32>} : memref<16x64xf32, #tpu.memory_space<vmem>>, vector<1x64xf32>,
    %c4_24 = arith.constant 4 : index
    %34 = memref.load %arg0[%c4_24] : memref<16xi32, #tpu.memory_space<smem>>
    %35 = arith.index_cast %34 : i32 to index
    %c0_25 = arith.constant 0 : index
    %36 = vector.load %arg1[%35, %c0_25] : memref<256x64xf32, #tpu.memory_space<vmem>>, vector<1x64xf32>
    %c8_26 = arith.constant 8 : index
    %c0_27 = arith.constant 0 : index
    %37 = vector.load %arg11[%c8_26, %c0_27] : memref<16x64xf32, #tpu.memory_space<vmem>>, vector<1x64xf32>
    tpu.vector_store %arg11[%c8_26, %c0_27], %36 {strides = array<i32>} : memref<16x64xf32, #tpu.memory_space<vmem>>, vector<1x64xf32>,
    %c12 = arith.constant 12 : index
    %38 = memref.load %arg0[%c12] : memref<16xi32, #tpu.memory_space<smem>>
    %39 = arith.index_cast %38 : i32 to index
    %c0_28 = arith.constant 0 : index
    %40 = vector.load %arg1[%39, %c0_28] : memref<256x64xf32, #tpu.memory_space<vmem>>, vector<1x64xf32>
    %c9_29 = arith.constant 9 : index
    %c0_30 = arith.constant 0 : index
    %41 = vector.load %arg11[%c9_29, %c0_30] : memref<16x64xf32, #tpu.memory_space<vmem>>, vector<1x64xf32>
    tpu.vector_store %arg11[%c9_29, %c0_30], %40 {strides = array<i32>} : memref<16x64xf32, #tpu.memory_space<vmem>>, vector<1x64xf32>,
    %c5_31 = arith.constant 5 : index
    %42 = memref.load %arg0[%c5_31] : memref<16xi32, #tpu.memory_space<smem>>
    %43 = arith.index_cast %42 : i32 to index
    %c0_32 = arith.constant 0 : index
    %44 = vector.load %arg1[%43, %c0_32] : memref<256x64xf32, #tpu.memory_space<vmem>>, vector<1x64xf32>
    %c10_33 = arith.constant 10 : index
    %c0_34 = arith.constant 0 : index
    %45 = vector.load %arg11[%c10_33, %c0_34] : memref<16x64xf32, #tpu.memory_space<vmem>>, vector<1x64xf32>
    tpu.vector_store %arg11[%c10_33, %c0_34], %44 {strides = array<i32>} : memref<16x64xf32, #tpu.memory_space<vmem>>, vector<1x64xf32>,
    %c13 = arith.constant 13 : index
    %46 = memref.load %arg0[%c13] : memref<16xi32, #tpu.memory_space<smem>>
    %47 = arith.index_cast %46 : i32 to index
    %c0_35 = arith.constant 0 : index
    %48 = vector.load %arg1[%47, %c0_35] : memref<256x64xf32, #tpu.memory_space<vmem>>, vector<1x64xf32>
    %c11_36 = arith.constant 11 : index
    %c0_37 = arith.constant 0 : index
    %49 = vector.load %arg11[%c11_36, %c0_37] : memref<16x64xf32, #tpu.memory_space<vmem>>, vector<1x64xf32>
    tpu.vector_store %arg11[%c11_36, %c0_37], %48 {strides = array<i32>} : memref<16x64xf32, #tpu.memory_space<vmem>>, vector<1x64xf32>,
    %c6_38 = arith.constant 6 : index
    %50 = memref.load %arg0[%c6_38] : memref<16xi32, #tpu.memory_space<smem>>
    %51 = arith.index_cast %50 : i32 to index
    %c0_39 = arith.constant 0 : index
    %52 = vector.load %arg1[%51, %c0_39] : memref<256x64xf32, #tpu.memory_space<vmem>>, vector<1x64xf32>
    %c12_40 = arith.constant 12 : index
    %c0_41 = arith.constant 0 : index
    %53 = vector.load %arg11[%c12_40, %c0_41] : memref<16x64xf32, #tpu.memory_space<vmem>>, vector<1x64xf32>
    tpu.vector_store %arg11[%c12_40, %c0_41], %52 {strides = array<i32>} : memref<16x64xf32, #tpu.memory_space<vmem>>, vector<1x64xf32>,
    %c14 = arith.constant 14 : index
    %54 = memref.load %arg0[%c14] : memref<16xi32, #tpu.memory_space<smem>>
    %55 = arith.index_cast %54 : i32 to index
    %c0_42 = arith.constant 0 : index
    %56 = vector.load %arg1[%55, %c0_42] : memref<256x64xf32, #tpu.memory_space<vmem>>, vector<1x64xf32>
    %c13_43 = arith.constant 13 : index
    %c0_44 = arith.constant 0 : index
    %57 = vector.load %arg11[%c13_43, %c0_44] : memref<16x64xf32, #tpu.memory_space<vmem>>, vector<1x64xf32>
    tpu.vector_store %arg11[%c13_43, %c0_44], %56 {strides = array<i32>} : memref<16x64xf32, #tpu.memory_space<vmem>>, vector<1x64xf32>,
    %c7_45 = arith.constant 7 : index
    %58 = memref.load %arg0[%c7_45] : memref<16xi32, #tpu.memory_space<smem>>
    %59 = arith.index_cast %58 : i32 to index
    %c0_46 = arith.constant 0 : index
    %60 = vector.load %arg1[%59, %c0_46] : memref<256x64xf32, #tpu.memory_space<vmem>>, vector<1x64xf32>
    %c14_47 = arith.constant 14 : index
    %c0_48 = arith.constant 0 : index
    %61 = vector.load %arg11[%c14_47, %c0_48] : memref<16x64xf32, #tpu.memory_space<vmem>>, vector<1x64xf32>
    tpu.vector_store %arg11[%c14_47, %c0_48], %60 {strides = array<i32>} : memref<16x64xf32, #tpu.memory_space<vmem>>, vector<1x64xf32>,
    %c15 = arith.constant 15 : index
    %62 = memref.load %arg0[%c15] : memref<16xi32, #tpu.memory_space<smem>>
    %63 = arith.index_cast %62 : i32 to index
    %c0_49 = arith.constant 0 : index
    %64 = vector.load %arg1[%63, %c0_49] : memref<256x64xf32, #tpu.memory_space<vmem>>, vector<1x64xf32>
    %c15_50 = arith.constant 15 : index
    %c0_51 = arith.constant 0 : index
    %65 = vector.load %arg11[%c15_50, %c0_51] : memref<16x64xf32, #tpu.memory_space<vmem>>, vector<1x64xf32>
    tpu.vector_store %arg11[%c15_50, %c0_51], %64 {strides = array<i32>} : memref<16x64xf32, #tpu.memory_space<vmem>>, vector<1x64xf32>,
    %c0_52 = arith.constant 0 : index
    %c0_53 = arith.constant 0 : index
    %66 = vector.load %arg11[%c0_52, %c0_53] : memref<16x64xf32, #tpu.memory_space<vmem>>, vector<16x64xf32>
    %67 = arith.truncf %66 : vector<16x64xf32> to vector<16x64xbf16>
    %c0_54 = arith.constant 0 : index
    %c0_55 = arith.constant 0 : index
    %68 = vector.load %arg2[%c0_54, %c0_55] : memref<64x512xbf16, #tpu.memory_space<vmem>>, vector<64x512xbf16>
    %cst = arith.constant dense<0.000000e+00> : vector<16x512xf32>
    %69 = tpu.matmul %67, %68, %cst {dimension_numbers = #tpu.dot_dimension_numbers<[1], [0], [0], [1], [0, 0, 1, 1], [], []>} : vector<16x64xbf16>, vector<64x512xbf16>, vector<16x512xf32> -> vector<16x512xf32>
    %c0_56 = arith.constant 0 : index
    %c0_57 = arith.constant 0 : index
    %70 = vector.load %arg4[%c0_56, %c0_57] : memref<1x512xf32, #tpu.memory_space<vmem>>, vector<1x512xf32>
    %71 = vector.broadcast %70 : vector<1x512xf32> to vector<16x512xf32>
    %72 = arith.addf %69, %71 : vector<16x512xf32>
    %c0_58 = arith.constant 0 : index
    %c0_59 = arith.constant 0 : index
    %73 = vector.load %arg12[%c0_58, %c0_59] : memref<16x512xf32, #tpu.memory_space<vmem>>, vector<16x512xf32>
    tpu.vector_store %arg12[%c0_58, %c0_59], %72 {strides = array<i32>} : memref<16x512xf32, #tpu.memory_space<vmem>>, vector<16x512xf32>,
    %cst_60 = arith.constant 0.000000e+00 : f32
    %74 = vector.broadcast %cst_60 : f32 to vector<2x128xf32>
    %cst_61 = arith.constant 0.000000e+00 : f32
    %75 = vector.broadcast %cst_61 : f32 to vector<2x128xf32>
    %c0_62 = arith.constant 0 : index
    %c0_63 = arith.constant 0 : index
    %76 = vector.load %arg12[%c0_62, %c0_63] : memref<16x512xf32, #tpu.memory_space<vmem>>, vector<2x512xf32>
    %77 = arith.truncf %74 : vector<2x128xf32> to vector<2x128xbf16>
    %cst_64 = arith.constant dense<0.000000e+00> : vector<2x512xf32>
    %78 = tpu.matmul %77, %0, %cst_64 {dimension_numbers = #tpu.dot_dimension_numbers<[1], [0], [0], [1], [0, 0, 1, 1], [], []>} : vector<2x128xbf16>, vector<128x512xbf16>, vector<2x512xf32> -> vector<2x512xf32>
    %79 = arith.addf %76, %78 : vector<2x512xf32>
    %80 = vector.extract_strided_slice %79 {offsets = [0, 0], sizes = [2, 384], strides = [1, 1]} : vector<2x512xf32> to vector<2x384xf32>
    %81 = arith.negf %80 : vector<2x384xf32>
    %82 = math.exp %81 : vector<2x384xf32>
    %cst_65 = arith.constant 1.000000e+00 : f32
    %83 = vector.broadcast %cst_65 : f32 to vector<2x384xf32>
    %84 = arith.addf %83, %82 : vector<2x384xf32>
    %85 = arith.divf %83, %84 : vector<2x384xf32>
    %86 = vector.extract_strided_slice %79 {offsets = [0, 384], sizes = [2, 128], strides = [1, 1]} : vector<2x512xf32> to vector<2x128xf32>
    %87 = math.tanh %86 : vector<2x128xf32>
    %88 = vector.extract_strided_slice %85 {offsets = [0, 0], sizes = [2, 128], strides = [1, 1]} : vector<2x384xf32> to vector<2x128xf32>
    %89 = vector.extract_strided_slice %85 {offsets = [0, 128], sizes = [2, 128], strides = [1, 1]} : vector<2x384xf32> to vector<2x128xf32>
    %90 = vector.extract_strided_slice %85 {offsets = [0, 256], sizes = [2, 128], strides = [1, 1]} : vector<2x384xf32> to vector<2x128xf32>
    %91 = arith.mulf %89, %75 : vector<2x128xf32>
    %92 = arith.mulf %88, %87 : vector<2x128xf32>
    %93 = arith.addf %91, %92 : vector<2x128xf32>
    %94 = math.tanh %93 : vector<2x128xf32>
    %95 = arith.mulf %90, %94 : vector<2x128xf32>
    %c2_66 = arith.constant 2 : index
    %c0_67 = arith.constant 0 : index
    %96 = vector.load %arg12[%c2_66, %c0_67] : memref<16x512xf32, #tpu.memory_space<vmem>>, vector<2x512xf32>
    %97 = arith.truncf %95 : vector<2x128xf32> to vector<2x128xbf16>
    %cst_68 = arith.constant dense<0.000000e+00> : vector<2x512xf32>
    %98 = tpu.matmul %97, %0, %cst_68 {dimension_numbers = #tpu.dot_dimension_numbers<[1], [0], [0], [1], [0, 0, 1, 1], [], []>} : vector<2x128xbf16>, vector<128x512xbf16>, vector<2x512xf32> -> vector<2x512xf32>
    %99 = arith.addf %96, %98 : vector<2x512xf32>
    %100 = vector.extract_strided_slice %99 {offsets = [0, 0], sizes = [2, 384], strides = [1, 1]} : vector<2x512xf32> to vector<2x384xf32>
    %101 = arith.negf %100 : vector<2x384xf32>
    %102 = math.exp %101 : vector<2x384xf32>
    %cst_69 = arith.constant 1.000000e+00 : f32
    %103 = vector.broadcast %cst_69 : f32 to vector<2x384xf32>
    %104 = arith.addf %103, %102 : vector<2x384xf32>
    %105 = arith.divf %103, %104 : vector<2x384xf32>
    %106 = vector.extract_strided_slice %99 {offsets = [0, 384], sizes = [2, 128], strides = [1, 1]} : vector<2x512xf32> to vector<2x128xf32>
    %107 = math.tanh %106 : vector<2x128xf32>
    %108 = vector.extract_strided_slice %105 {offsets = [0, 0], sizes = [2, 128], strides = [1, 1]} : vector<2x384xf32> to vector<2x128xf32>
    %109 = vector.extract_strided_slice %105 {offsets = [0, 128], sizes = [2, 128], strides = [1, 1]} : vector<2x384xf32> to vector<2x128xf32>
    %110 = vector.extract_strided_slice %105 {offsets = [0, 256], sizes = [2, 128], strides = [1, 1]} : vector<2x384xf32> to vector<2x128xf32>
    %111 = arith.mulf %109, %93 : vector<2x128xf32>
    %112 = arith.mulf %108, %107 : vector<2x128xf32>
    %113 = arith.addf %111, %112 : vector<2x128xf32>
    %114 = math.tanh %113 : vector<2x128xf32>
    %115 = arith.mulf %110, %114 : vector<2x128xf32>
    %c4_70 = arith.constant 4 : index
    %c0_71 = arith.constant 0 : index
    %116 = vector.load %arg12[%c4_70, %c0_71] : memref<16x512xf32, #tpu.memory_space<vmem>>, vector<2x512xf32>
    %117 = arith.truncf %115 : vector<2x128xf32> to vector<2x128xbf16>
    %cst_72 = arith.constant dense<0.000000e+00> : vector<2x512xf32>
    %118 = tpu.matmul %117, %0, %cst_72 {dimension_numbers = #tpu.dot_dimension_numbers<[1], [0], [0], [1], [0, 0, 1, 1], [], []>} : vector<2x128xbf16>, vector<128x512xbf16>, vector<2x512xf32> -> vector<2x512xf32>
    %119 = arith.addf %116, %118 : vector<2x512xf32>
    %120 = vector.extract_strided_slice %119 {offsets = [0, 0], sizes = [2, 384], strides = [1, 1]} : vector<2x512xf32> to vector<2x384xf32>
    %121 = arith.negf %120 : vector<2x384xf32>
    %122 = math.exp %121 : vector<2x384xf32>
    %cst_73 = arith.constant 1.000000e+00 : f32
    %123 = vector.broadcast %cst_73 : f32 to vector<2x384xf32>
    %124 = arith.addf %123, %122 : vector<2x384xf32>
    %125 = arith.divf %123, %124 : vector<2x384xf32>
    %126 = vector.extract_strided_slice %119 {offsets = [0, 384], sizes = [2, 128], strides = [1, 1]} : vector<2x512xf32> to vector<2x128xf32>
    %127 = math.tanh %126 : vector<2x128xf32>
    %128 = vector.extract_strided_slice %125 {offsets = [0, 0], sizes = [2, 128], strides = [1, 1]} : vector<2x384xf32> to vector<2x128xf32>
    %129 = vector.extract_strided_slice %125 {offsets = [0, 128], sizes = [2, 128], strides = [1, 1]} : vector<2x384xf32> to vector<2x128xf32>
    %130 = vector.extract_strided_slice %125 {offsets = [0, 256], sizes = [2, 128], strides = [1, 1]} : vector<2x384xf32> to vector<2x128xf32>
    %131 = arith.mulf %129, %113 : vector<2x128xf32>
    %132 = arith.mulf %128, %127 : vector<2x128xf32>
    %133 = arith.addf %131, %132 : vector<2x128xf32>
    %134 = math.tanh %133 : vector<2x128xf32>
    %135 = arith.mulf %130, %134 : vector<2x128xf32>
    %c6_74 = arith.constant 6 : index
    %c0_75 = arith.constant 0 : index
    %136 = vector.load %arg12[%c6_74, %c0_75] : memref<16x512xf32, #tpu.memory_space<vmem>>, vector<2x512xf32>
    %137 = arith.truncf %135 : vector<2x128xf32> to vector<2x128xbf16>
    %cst_76 = arith.constant dense<0.000000e+00> : vector<2x512xf32>
    %138 = tpu.matmul %137, %0, %cst_76 {dimension_numbers = #tpu.dot_dimension_numbers<[1], [0], [0], [1], [0, 0, 1, 1], [], []>} : vector<2x128xbf16>, vector<128x512xbf16>, vector<2x512xf32> -> vector<2x512xf32>
    %139 = arith.addf %136, %138 : vector<2x512xf32>
    %140 = vector.extract_strided_slice %139 {offsets = [0, 0], sizes = [2, 384], strides = [1, 1]} : vector<2x512xf32> to vector<2x384xf32>
    %141 = arith.negf %140 : vector<2x384xf32>
    %142 = math.exp %141 : vector<2x384xf32>
    %cst_77 = arith.constant 1.000000e+00 : f32
    %143 = vector.broadcast %cst_77 : f32 to vector<2x384xf32>
    %144 = arith.addf %143, %142 : vector<2x384xf32>
    %145 = arith.divf %143, %144 : vector<2x384xf32>
    %146 = vector.extract_strided_slice %139 {offsets = [0, 384], sizes = [2, 128], strides = [1, 1]} : vector<2x512xf32> to vector<2x128xf32>
    %147 = math.tanh %146 : vector<2x128xf32>
    %148 = vector.extract_strided_slice %145 {offsets = [0, 0], sizes = [2, 128], strides = [1, 1]} : vector<2x384xf32> to vector<2x128xf32>
    %149 = vector.extract_strided_slice %145 {offsets = [0, 128], sizes = [2, 128], strides = [1, 1]} : vector<2x384xf32> to vector<2x128xf32>
    %150 = vector.extract_strided_slice %145 {offsets = [0, 256], sizes = [2, 128], strides = [1, 1]} : vector<2x384xf32> to vector<2x128xf32>
    %151 = arith.mulf %149, %133 : vector<2x128xf32>
    %152 = arith.mulf %148, %147 : vector<2x128xf32>
    %153 = arith.addf %151, %152 : vector<2x128xf32>
    %154 = math.tanh %153 : vector<2x128xf32>
    %155 = arith.mulf %150, %154 : vector<2x128xf32>
    %c8_78 = arith.constant 8 : index
    %c0_79 = arith.constant 0 : index
    %156 = vector.load %arg12[%c8_78, %c0_79] : memref<16x512xf32, #tpu.memory_space<vmem>>, vector<2x512xf32>
    %157 = arith.truncf %155 : vector<2x128xf32> to vector<2x128xbf16>
    %cst_80 = arith.constant dense<0.000000e+00> : vector<2x512xf32>
    %158 = tpu.matmul %157, %0, %cst_80 {dimension_numbers = #tpu.dot_dimension_numbers<[1], [0], [0], [1], [0, 0, 1, 1], [], []>} : vector<2x128xbf16>, vector<128x512xbf16>, vector<2x512xf32> -> vector<2x512xf32>
    %159 = arith.addf %156, %158 : vector<2x512xf32>
    %160 = vector.extract_strided_slice %159 {offsets = [0, 0], sizes = [2, 384], strides = [1, 1]} : vector<2x512xf32> to vector<2x384xf32>
    %161 = arith.negf %160 : vector<2x384xf32>
    %162 = math.exp %161 : vector<2x384xf32>
    %cst_81 = arith.constant 1.000000e+00 : f32
    %163 = vector.broadcast %cst_81 : f32 to vector<2x384xf32>
    %164 = arith.addf %163, %162 : vector<2x384xf32>
    %165 = arith.divf %163, %164 : vector<2x384xf32>
    %166 = vector.extract_strided_slice %159 {offsets = [0, 384], sizes = [2, 128], strides = [1, 1]} : vector<2x512xf32> to vector<2x128xf32>
    %167 = math.tanh %166 : vector<2x128xf32>
    %168 = vector.extract_strided_slice %165 {offsets = [0, 0], sizes = [2, 128], strides = [1, 1]} : vector<2x384xf32> to vector<2x128xf32>
    %169 = vector.extract_strided_slice %165 {offsets = [0, 128], sizes = [2, 128], strides = [1, 1]} : vector<2x384xf32> to vector<2x128xf32>
    %170 = vector.extract_strided_slice %165 {offsets = [0, 256], sizes = [2, 128], strides = [1, 1]} : vector<2x384xf32> to vector<2x128xf32>
    %171 = arith.mulf %169, %153 : vector<2x128xf32>
    %172 = arith.mulf %168, %167 : vector<2x128xf32>
    %173 = arith.addf %171, %172 : vector<2x128xf32>
    %174 = math.tanh %173 : vector<2x128xf32>
    %175 = arith.mulf %170, %174 : vector<2x128xf32>
    %c10_82 = arith.constant 10 : index
    %c0_83 = arith.constant 0 : index
    %176 = vector.load %arg12[%c10_82, %c0_83] : memref<16x512xf32, #tpu.memory_space<vmem>>, vector<2x512xf32>
    %177 = arith.truncf %175 : vector<2x128xf32> to vector<2x128xbf16>
    %cst_84 = arith.constant dense<0.000000e+00> : vector<2x512xf32>
    %178 = tpu.matmul %177, %0, %cst_84 {dimension_numbers = #tpu.dot_dimension_numbers<[1], [0], [0], [1], [0, 0, 1, 1], [], []>} : vector<2x128xbf16>, vector<128x512xbf16>, vector<2x512xf32> -> vector<2x512xf32>
    %179 = arith.addf %176, %178 : vector<2x512xf32>
    %180 = vector.extract_strided_slice %179 {offsets = [0, 0], sizes = [2, 384], strides = [1, 1]} : vector<2x512xf32> to vector<2x384xf32>
    %181 = arith.negf %180 : vector<2x384xf32>
    %182 = math.exp %181 : vector<2x384xf32>
    %cst_85 = arith.constant 1.000000e+00 : f32
    %183 = vector.broadcast %cst_85 : f32 to vector<2x384xf32>
    %184 = arith.addf %183, %182 : vector<2x384xf32>
    %185 = arith.divf %183, %184 : vector<2x384xf32>
    %186 = vector.extract_strided_slice %179 {offsets = [0, 384], sizes = [2, 128], strides = [1, 1]} : vector<2x512xf32> to vector<2x128xf32>
    %187 = math.tanh %186 : vector<2x128xf32>
    %188 = vector.extract_strided_slice %185 {offsets = [0, 0], sizes = [2, 128], strides = [1, 1]} : vector<2x384xf32> to vector<2x128xf32>
    %189 = vector.extract_strided_slice %185 {offsets = [0, 128], sizes = [2, 128], strides = [1, 1]} : vector<2x384xf32> to vector<2x128xf32>
    %190 = vector.extract_strided_slice %185 {offsets = [0, 256], sizes = [2, 128], strides = [1, 1]} : vector<2x384xf32> to vector<2x128xf32>
    %191 = arith.mulf %189, %173 : vector<2x128xf32>
    %192 = arith.mulf %188, %187 : vector<2x128xf32>
    %193 = arith.addf %191, %192 : vector<2x128xf32>
    %194 = math.tanh %193 : vector<2x128xf32>
    %195 = arith.mulf %190, %194 : vector<2x128xf32>
    %c12_86 = arith.constant 12 : index
    %c0_87 = arith.constant 0 : index
    %196 = vector.load %arg12[%c12_86, %c0_87] : memref<16x512xf32, #tpu.memory_space<vmem>>, vector<2x512xf32>
    %197 = arith.truncf %195 : vector<2x128xf32> to vector<2x128xbf16>
    %cst_88 = arith.constant dense<0.000000e+00> : vector<2x512xf32>
    %198 = tpu.matmul %197, %0, %cst_88 {dimension_numbers = #tpu.dot_dimension_numbers<[1], [0], [0], [1], [0, 0, 1, 1], [], []>} : vector<2x128xbf16>, vector<128x512xbf16>, vector<2x512xf32> -> vector<2x512xf32>
    %199 = arith.addf %196, %198 : vector<2x512xf32>
    %200 = vector.extract_strided_slice %199 {offsets = [0, 0], sizes = [2, 384], strides = [1, 1]} : vector<2x512xf32> to vector<2x384xf32>
    %201 = arith.negf %200 : vector<2x384xf32>
    %202 = math.exp %201 : vector<2x384xf32>
    %cst_89 = arith.constant 1.000000e+00 : f32
    %203 = vector.broadcast %cst_89 : f32 to vector<2x384xf32>
    %204 = arith.addf %203, %202 : vector<2x384xf32>
    %205 = arith.divf %203, %204 : vector<2x384xf32>
    %206 = vector.extract_strided_slice %199 {offsets = [0, 384], sizes = [2, 128], strides = [1, 1]} : vector<2x512xf32> to vector<2x128xf32>
    %207 = math.tanh %206 : vector<2x128xf32>
    %208 = vector.extract_strided_slice %205 {offsets = [0, 0], sizes = [2, 128], strides = [1, 1]} : vector<2x384xf32> to vector<2x128xf32>
    %209 = vector.extract_strided_slice %205 {offsets = [0, 128], sizes = [2, 128], strides = [1, 1]} : vector<2x384xf32> to vector<2x128xf32>
    %210 = vector.extract_strided_slice %205 {offsets = [0, 256], sizes = [2, 128], strides = [1, 1]} : vector<2x384xf32> to vector<2x128xf32>
    %211 = arith.mulf %209, %193 : vector<2x128xf32>
    %212 = arith.mulf %208, %207 : vector<2x128xf32>
    %213 = arith.addf %211, %212 : vector<2x128xf32>
    %214 = math.tanh %213 : vector<2x128xf32>
    %215 = arith.mulf %210, %214 : vector<2x128xf32>
    %c14_90 = arith.constant 14 : index
    %c0_91 = arith.constant 0 : index
    %216 = vector.load %arg12[%c14_90, %c0_91] : memref<16x512xf32, #tpu.memory_space<vmem>>, vector<2x512xf32>
    %217 = arith.truncf %215 : vector<2x128xf32> to vector<2x128xbf16>
    %cst_92 = arith.constant dense<0.000000e+00> : vector<2x512xf32>
    %218 = tpu.matmul %217, %0, %cst_92 {dimension_numbers = #tpu.dot_dimension_numbers<[1], [0], [0], [1], [0, 0, 1, 1], [], []>} : vector<2x128xbf16>, vector<128x512xbf16>, vector<2x512xf32> -> vector<2x512xf32>
    %219 = arith.addf %216, %218 : vector<2x512xf32>
    %220 = vector.extract_strided_slice %219 {offsets = [0, 0], sizes = [2, 384], strides = [1, 1]} : vector<2x512xf32> to vector<2x384xf32>
    %221 = arith.negf %220 : vector<2x384xf32>
    %222 = math.exp %221 : vector<2x384xf32>
    %cst_93 = arith.constant 1.000000e+00 : f32
    %223 = vector.broadcast %cst_93 : f32 to vector<2x384xf32>
    %224 = arith.addf %223, %222 : vector<2x384xf32>
    %225 = arith.divf %223, %224 : vector<2x384xf32>
    %226 = vector.extract_strided_slice %219 {offsets = [0, 384], sizes = [2, 128], strides = [1, 1]} : vector<2x512xf32> to vector<2x128xf32>
    %227 = math.tanh %226 : vector<2x128xf32>
    %228 = vector.extract_strided_slice %225 {offsets = [0, 0], sizes = [2, 128], strides = [1, 1]} : vector<2x384xf32> to vector<2x128xf32>
    %229 = vector.extract_strided_slice %225 {offsets = [0, 128], sizes = [2, 128], strides = [1, 1]} : vector<2x384xf32> to vector<2x128xf32>
    %230 = vector.extract_strided_slice %225 {offsets = [0, 256], sizes = [2, 128], strides = [1, 1]} : vector<2x384xf32> to vector<2x128xf32>
    %231 = arith.mulf %229, %213 : vector<2x128xf32>
    %232 = arith.mulf %228, %227 : vector<2x128xf32>
    %233 = arith.addf %231, %232 : vector<2x128xf32>
    %234 = math.tanh %233 : vector<2x128xf32>
    %235 = arith.mulf %230, %234 : vector<2x128xf32>
    %236 = arith.truncf %235 : vector<2x128xf32> to vector<2x128xbf16>
    %c0_94 = arith.constant 0 : index
    %c0_95 = arith.constant 0 : index
    %237 = vector.load %arg5[%c0_94, %c0_95] : memref<128x512xbf16, #tpu.memory_space<vmem>>, vector<128x512xbf16>
    %cst_96 = arith.constant dense<0.000000e+00> : vector<2x512xf32>
    %238 = tpu.matmul %236, %237, %cst_96 {dimension_numbers = #tpu.dot_dimension_numbers<[1], [0], [0], [1], [0, 0, 1, 1], [], []>} : vector<2x128xbf16>, vector<128x512xbf16>, vector<2x512xf32> -> vector<2x512xf32>
    %c0_97 = arith.constant 0 : index
    %c0_98 = arith.constant 0 : index
    %239 = vector.load %arg6[%c0_97, %c0_98] : memref<1x512xf32, #tpu.memory_space<vmem>>, vector<1x512xf32>
    %240 = vector.broadcast %239 : vector<1x512xf32> to vector<2x512xf32>
    %241 = arith.addf %238, %240 : vector<2x512xf32>
    %cst_99 = arith.constant 0.000000e+00 : f32
    %242 = vector.broadcast %cst_99 : f32 to vector<2x128xf32>
    %cst_100 = arith.constant 0.000000e+00 : f32
    %243 = vector.broadcast %cst_100 : f32 to vector<2x128xf32>
    %244 = arith.truncf %242 : vector<2x128xf32> to vector<2x128xbf16>
    %cst_101 = arith.constant dense<0.000000e+00> : vector<2x512xf32>
    %245 = tpu.matmul %244, %1, %cst_101 {dimension_numbers = #tpu.dot_dimension_numbers<[1], [0], [0], [1], [0, 0, 1, 1], [], []>} : vector<2x128xbf16>, vector<128x512xbf16>, vector<2x512xf32> -> vector<2x512xf32>
    %246 = arith.addf %241, %245 : vector<2x512xf32>
    %247 = vector.extract_strided_slice %246 {offsets = [0, 0], sizes = [2, 384], strides = [1, 1]} : vector<2x512xf32> to vector<2x384xf32>
    %248 = arith.negf %247 : vector<2x384xf32>
    %249 = math.exp %248 : vector<2x384xf32>
    %cst_102 = arith.constant 1.000000e+00 : f32
    %250 = vector.broadcast %cst_102 : f32 to vector<2x384xf32>
    %251 = arith.addf %250, %249 : vector<2x384xf32>
    %252 = arith.divf %250, %251 : vector<2x384xf32>
    %253 = vector.extract_strided_slice %246 {offsets = [0, 384], sizes = [2, 128], strides = [1, 1]} : vector<2x512xf32> to vector<2x128xf32>
    %254 = math.tanh %253 : vector<2x128xf32>
    %255 = vector.extract_strided_slice %252 {offsets = [0, 0], sizes = [2, 128], strides = [1, 1]} : vector<2x384xf32> to vector<2x128xf32>
    %256 = vector.extract_strided_slice %252 {offsets = [0, 128], sizes = [2, 128], strides = [1, 1]} : vector<2x384xf32> to vector<2x128xf32>
    %257 = vector.extract_strided_slice %252 {offsets = [0, 256], sizes = [2, 128], strides = [1, 1]} : vector<2x384xf32> to vector<2x128xf32>
    %258 = arith.mulf %256, %243 : vector<2x128xf32>
    %259 = arith.mulf %255, %254 : vector<2x128xf32>
    %260 = arith.addf %258, %259 : vector<2x128xf32>
    %261 = math.tanh %260 : vector<2x128xf32>
    %262 = arith.mulf %257, %261 : vector<2x128xf32>
    %263 = vector.extract_strided_slice %262 {offsets = [0, 0], sizes = [1, 128], strides = [1, 1]} : vector<2x128xf32> to vector<1x128xf32>
    %c0_103 = arith.constant 0 : index
    %c0_104 = arith.constant 0 : index
    %264 = vector.load %arg13[%c0_103, %c0_104] : memref<16x128xf32, #tpu.memory_space<vmem>>, vector<1x128xf32>
    tpu.vector_store %arg13[%c0_103, %c0_104], %263 {strides = array<i32>} : memref<16x128xf32, #tpu.memory_space<vmem>>, vector<1x128xf32>,
    %265 = vector.extract_strided_slice %262 {offsets = [1, 0], sizes = [1, 128], strides = [1, 1]} : vector<2x128xf32> to vector<1x128xf32>
    %c8_105 = arith.constant 8 : index
    %c0_106 = arith.constant 0 : index
    %266 = vector.load %arg13[%c8_105, %c0_106] : memref<16x128xf32, #tpu.memory_space<vmem>>, vector<1x128xf32>
    tpu.vector_store %arg13[%c8_105, %c0_106], %265 {strides = array<i32>} : memref<16x128xf32, #tpu.memory_space<vmem>>, vector<1x128xf32>,
    %267 = arith.truncf %262 : vector<2x128xf32> to vector<2x128xbf16>
    %cst_107 = arith.constant dense<0.000000e+00> : vector<2x512xf32>
    %268 = tpu.matmul %267, %1, %cst_107 {dimension_numbers = #tpu.dot_dimension_numbers<[1], [0], [0], [1], [0, 0, 1, 1], [], []>} : vector<2x128xbf16>, vector<128x512xbf16>, vector<2x512xf32> -> vector<2x512xf32>
    %269 = arith.addf %241, %268 : vector<2x512xf32>
    %270 = vector.extract_strided_slice %269 {offsets = [0, 0], sizes = [2, 384], strides = [1, 1]} : vector<2x512xf32> to vector<2x384xf32>
    %271 = arith.negf %270 : vector<2x384xf32>
    %272 = math.exp %271 : vector<2x384xf32>
    %cst_108 = arith.constant 1.000000e+00 : f32
    %273 = vector.broadcast %cst_108 : f32 to vector<2x384xf32>
    %274 = arith.addf %273, %272 : vector<2x384xf32>
    %275 = arith.divf %273, %274 : vector<2x384xf32>
    %276 = vector.extract_strided_slice %269 {offsets = [0, 384], sizes = [2, 128], strides = [1, 1]} : vector<2x512xf32> to vector<2x128xf32>
    %277 = math.tanh %276 : vector<2x128xf32>
    %278 = vector.extract_strided_slice %275 {offsets = [0, 0], sizes = [2, 128], strides = [1, 1]} : vector<2x384xf32> to vector<2x128xf32>
    %279 = vector.extract_strided_slice %275 {offsets = [0, 128], sizes = [2, 128], strides = [1, 1]} : vector<2x384xf32> to vector<2x128xf32>
    %280 = vector.extract_strided_slice %275 {offsets = [0, 256], sizes = [2, 128], strides = [1, 1]} : vector<2x384xf32> to vector<2x128xf32>
    %281 = arith.mulf %279, %260 : vector<2x128xf32>
    %282 = arith.mulf %278, %277 : vector<2x128xf32>
    %283 = arith.addf %281, %282 : vector<2x128xf32>
    %284 = math.tanh %283 : vector<2x128xf32>
    %285 = arith.mulf %280, %284 : vector<2x128xf32>
    %286 = vector.extract_strided_slice %285 {offsets = [0, 0], sizes = [1, 128], strides = [1, 1]} : vector<2x128xf32> to vector<1x128xf32>
    %c1_109 = arith.constant 1 : index
    %c0_110 = arith.constant 0 : index
    %287 = vector.load %arg13[%c1_109, %c0_110] : memref<16x128xf32, #tpu.memory_space<vmem>>, vector<1x128xf32>
    tpu.vector_store %arg13[%c1_109, %c0_110], %286 {strides = array<i32>} : memref<16x128xf32, #tpu.memory_space<vmem>>, vector<1x128xf32>,
    %288 = vector.extract_strided_slice %285 {offsets = [1, 0], sizes = [1, 128], strides = [1, 1]} : vector<2x128xf32> to vector<1x128xf32>
    %c9_111 = arith.constant 9 : index
    %c0_112 = arith.constant 0 : index
    %289 = vector.load %arg13[%c9_111, %c0_112] : memref<16x128xf32, #tpu.memory_space<vmem>>, vector<1x128xf32>
    tpu.vector_store %arg13[%c9_111, %c0_112], %288 {strides = array<i32>} : memref<16x128xf32, #tpu.memory_space<vmem>>, vector<1x128xf32>,
    %290 = arith.truncf %285 : vector<2x128xf32> to vector<2x128xbf16>
    %cst_113 = arith.constant dense<0.000000e+00> : vector<2x512xf32>
    %291 = tpu.matmul %290, %1, %cst_113 {dimension_numbers = #tpu.dot_dimension_numbers<[1], [0], [0], [1], [0, 0, 1, 1], [], []>} : vector<2x128xbf16>, vector<128x512xbf16>, vector<2x512xf32> -> vector<2x512xf32>
    %292 = arith.addf %241, %291 : vector<2x512xf32>
    %293 = vector.extract_strided_slice %292 {offsets = [0, 0], sizes = [2, 384], strides = [1, 1]} : vector<2x512xf32> to vector<2x384xf32>
    %294 = arith.negf %293 : vector<2x384xf32>
    %295 = math.exp %294 : vector<2x384xf32>
    %cst_114 = arith.constant 1.000000e+00 : f32
    %296 = vector.broadcast %cst_114 : f32 to vector<2x384xf32>
    %297 = arith.addf %296, %295 : vector<2x384xf32>
    %298 = arith.divf %296, %297 : vector<2x384xf32>
    %299 = vector.extract_strided_slice %292 {offsets = [0, 384], sizes = [2, 128], strides = [1, 1]} : vector<2x512xf32> to vector<2x128xf32>
    %300 = math.tanh %299 : vector<2x128xf32>
    %301 = vector.extract_strided_slice %298 {offsets = [0, 0], sizes = [2, 128], strides = [1, 1]} : vector<2x384xf32> to vector<2x128xf32>
    %302 = vector.extract_strided_slice %298 {offsets = [0, 128], sizes = [2, 128], strides = [1, 1]} : vector<2x384xf32> to vector<2x128xf32>
    %303 = vector.extract_strided_slice %298 {offsets = [0, 256], sizes = [2, 128], strides = [1, 1]} : vector<2x384xf32> to vector<2x128xf32>
    %304 = arith.mulf %302, %283 : vector<2x128xf32>
    %305 = arith.mulf %301, %300 : vector<2x128xf32>
    %306 = arith.addf %304, %305 : vector<2x128xf32>
    %307 = math.tanh %306 : vector<2x128xf32>
    %308 = arith.mulf %303, %307 : vector<2x128xf32>
    %309 = vector.extract_strided_slice %308 {offsets = [0, 0], sizes = [1, 128], strides = [1, 1]} : vector<2x128xf32> to vector<1x128xf32>
    %c2_115 = arith.constant 2 : index
    %c0_116 = arith.constant 0 : index
    %310 = vector.load %arg13[%c2_115, %c0_116] : memref<16x128xf32, #tpu.memory_space<vmem>>, vector<1x128xf32>
    tpu.vector_store %arg13[%c2_115, %c0_116], %309 {strides = array<i32>} : memref<16x128xf32, #tpu.memory_space<vmem>>, vector<1x128xf32>,
    %311 = vector.extract_strided_slice %308 {offsets = [1, 0], sizes = [1, 128], strides = [1, 1]} : vector<2x128xf32> to vector<1x128xf32>
    %c10_117 = arith.constant 10 : index
    %c0_118 = arith.constant 0 : index
    %312 = vector.load %arg13[%c10_117, %c0_118] : memref<16x128xf32, #tpu.memory_space<vmem>>, vector<1x128xf32>
    tpu.vector_store %arg13[%c10_117, %c0_118], %311 {strides = array<i32>} : memref<16x128xf32, #tpu.memory_space<vmem>>, vector<1x128xf32>,
    %313 = arith.truncf %308 : vector<2x128xf32> to vector<2x128xbf16>
    %cst_119 = arith.constant dense<0.000000e+00> : vector<2x512xf32>
    %314 = tpu.matmul %313, %1, %cst_119 {dimension_numbers = #tpu.dot_dimension_numbers<[1], [0], [0], [1], [0, 0, 1, 1], [], []>} : vector<2x128xbf16>, vector<128x512xbf16>, vector<2x512xf32> -> vector<2x512xf32>
    %315 = arith.addf %241, %314 : vector<2x512xf32>
    %316 = vector.extract_strided_slice %315 {offsets = [0, 0], sizes = [2, 384], strides = [1, 1]} : vector<2x512xf32> to vector<2x384xf32>
    %317 = arith.negf %316 : vector<2x384xf32>
    %318 = math.exp %317 : vector<2x384xf32>
    %cst_120 = arith.constant 1.000000e+00 : f32
    %319 = vector.broadcast %cst_120 : f32 to vector<2x384xf32>
    %320 = arith.addf %319, %318 : vector<2x384xf32>
    %321 = arith.divf %319, %320 : vector<2x384xf32>
    %322 = vector.extract_strided_slice %315 {offsets = [0, 384], sizes = [2, 128], strides = [1, 1]} : vector<2x512xf32> to vector<2x128xf32>
    %323 = math.tanh %322 : vector<2x128xf32>
    %324 = vector.extract_strided_slice %321 {offsets = [0, 0], sizes = [2, 128], strides = [1, 1]} : vector<2x384xf32> to vector<2x128xf32>
    %325 = vector.extract_strided_slice %321 {offsets = [0, 128], sizes = [2, 128], strides = [1, 1]} : vector<2x384xf32> to vector<2x128xf32>
    %326 = vector.extract_strided_slice %321 {offsets = [0, 256], sizes = [2, 128], strides = [1, 1]} : vector<2x384xf32> to vector<2x128xf32>
    %327 = arith.mulf %325, %306 : vector<2x128xf32>
    %328 = arith.mulf %324, %323 : vector<2x128xf32>
    %329 = arith.addf %327, %328 : vector<2x128xf32>
    %330 = math.tanh %329 : vector<2x128xf32>
    %331 = arith.mulf %326, %330 : vector<2x128xf32>
    %332 = vector.extract_strided_slice %331 {offsets = [0, 0], sizes = [1, 128], strides = [1, 1]} : vector<2x128xf32> to vector<1x128xf32>
    %c3_121 = arith.constant 3 : index
    %c0_122 = arith.constant 0 : index
    %333 = vector.load %arg13[%c3_121, %c0_122] : memref<16x128xf32, #tpu.memory_space<vmem>>, vector<1x128xf32>
    tpu.vector_store %arg13[%c3_121, %c0_122], %332 {strides = array<i32>} : memref<16x128xf32, #tpu.memory_space<vmem>>, vector<1x128xf32>,
    %334 = vector.extract_strided_slice %331 {offsets = [1, 0], sizes = [1, 128], strides = [1, 1]} : vector<2x128xf32> to vector<1x128xf32>
    %c11_123 = arith.constant 11 : index
    %c0_124 = arith.constant 0 : index
    %335 = vector.load %arg13[%c11_123, %c0_124] : memref<16x128xf32, #tpu.memory_space<vmem>>, vector<1x128xf32>
    tpu.vector_store %arg13[%c11_123, %c0_124], %334 {strides = array<i32>} : memref<16x128xf32, #tpu.memory_space<vmem>>, vector<1x128xf32>,
    %336 = arith.truncf %331 : vector<2x128xf32> to vector<2x128xbf16>
    %cst_125 = arith.constant dense<0.000000e+00> : vector<2x512xf32>
    %337 = tpu.matmul %336, %1, %cst_125 {dimension_numbers = #tpu.dot_dimension_numbers<[1], [0], [0], [1], [0, 0, 1, 1], [], []>} : vector<2x128xbf16>, vector<128x512xbf16>, vector<2x512xf32> -> vector<2x512xf32>
    %338 = arith.addf %241, %337 : vector<2x512xf32>
    %339 = vector.extract_strided_slice %338 {offsets = [0, 0], sizes = [2, 384], strides = [1, 1]} : vector<2x512xf32> to vector<2x384xf32>
    %340 = arith.negf %339 : vector<2x384xf32>
    %341 = math.exp %340 : vector<2x384xf32>
    %cst_126 = arith.constant 1.000000e+00 : f32
    %342 = vector.broadcast %cst_126 : f32 to vector<2x384xf32>
    %343 = arith.addf %342, %341 : vector<2x384xf32>
    %344 = arith.divf %342, %343 : vector<2x384xf32>
    %345 = vector.extract_strided_slice %338 {offsets = [0, 384], sizes = [2, 128], strides = [1, 1]} : vector<2x512xf32> to vector<2x128xf32>
    %346 = math.tanh %345 : vector<2x128xf32>
    %347 = vector.extract_strided_slice %344 {offsets = [0, 0], sizes = [2, 128], strides = [1, 1]} : vector<2x384xf32> to vector<2x128xf32>
    %348 = vector.extract_strided_slice %344 {offsets = [0, 128], sizes = [2, 128], strides = [1, 1]} : vector<2x384xf32> to vector<2x128xf32>
    %349 = vector.extract_strided_slice %344 {offsets = [0, 256], sizes = [2, 128], strides = [1, 1]} : vector<2x384xf32> to vector<2x128xf32>
    %350 = arith.mulf %348, %329 : vector<2x128xf32>
    %351 = arith.mulf %347, %346 : vector<2x128xf32>
    %352 = arith.addf %350, %351 : vector<2x128xf32>
    %353 = math.tanh %352 : vector<2x128xf32>
    %354 = arith.mulf %349, %353 : vector<2x128xf32>
    %355 = vector.extract_strided_slice %354 {offsets = [0, 0], sizes = [1, 128], strides = [1, 1]} : vector<2x128xf32> to vector<1x128xf32>
    %c4_127 = arith.constant 4 : index
    %c0_128 = arith.constant 0 : index
    %356 = vector.load %arg13[%c4_127, %c0_128] : memref<16x128xf32, #tpu.memory_space<vmem>>, vector<1x128xf32>
    tpu.vector_store %arg13[%c4_127, %c0_128], %355 {strides = array<i32>} : memref<16x128xf32, #tpu.memory_space<vmem>>, vector<1x128xf32>,
    %357 = vector.extract_strided_slice %354 {offsets = [1, 0], sizes = [1, 128], strides = [1, 1]} : vector<2x128xf32> to vector<1x128xf32>
    %c12_129 = arith.constant 12 : index
    %c0_130 = arith.constant 0 : index
    %358 = vector.load %arg13[%c12_129, %c0_130] : memref<16x128xf32, #tpu.memory_space<vmem>>, vector<1x128xf32>
    tpu.vector_store %arg13[%c12_129, %c0_130], %357 {strides = array<i32>} : memref<16x128xf32, #tpu.memory_space<vmem>>, vector<1x128xf32>,
    %359 = arith.truncf %354 : vector<2x128xf32> to vector<2x128xbf16>
    %cst_131 = arith.constant dense<0.000000e+00> : vector<2x512xf32>
    %360 = tpu.matmul %359, %1, %cst_131 {dimension_numbers = #tpu.dot_dimension_numbers<[1], [0], [0], [1], [0, 0, 1, 1], [], []>} : vector<2x128xbf16>, vector<128x512xbf16>, vector<2x512xf32> -> vector<2x512xf32>
    %361 = arith.addf %241, %360 : vector<2x512xf32>
    %362 = vector.extract_strided_slice %361 {offsets = [0, 0], sizes = [2, 384], strides = [1, 1]} : vector<2x512xf32> to vector<2x384xf32>
    %363 = arith.negf %362 : vector<2x384xf32>
    %364 = math.exp %363 : vector<2x384xf32>
    %cst_132 = arith.constant 1.000000e+00 : f32
    %365 = vector.broadcast %cst_132 : f32 to vector<2x384xf32>
    %366 = arith.addf %365, %364 : vector<2x384xf32>
    %367 = arith.divf %365, %366 : vector<2x384xf32>
    %368 = vector.extract_strided_slice %361 {offsets = [0, 384], sizes = [2, 128], strides = [1, 1]} : vector<2x512xf32> to vector<2x128xf32>
    %369 = math.tanh %368 : vector<2x128xf32>
    %370 = vector.extract_strided_slice %367 {offsets = [0, 0], sizes = [2, 128], strides = [1, 1]} : vector<2x384xf32> to vector<2x128xf32>
    %371 = vector.extract_strided_slice %367 {offsets = [0, 128], sizes = [2, 128], strides = [1, 1]} : vector<2x384xf32> to vector<2x128xf32>
    %372 = vector.extract_strided_slice %367 {offsets = [0, 256], sizes = [2, 128], strides = [1, 1]} : vector<2x384xf32> to vector<2x128xf32>
    %373 = arith.mulf %371, %352 : vector<2x128xf32>
    %374 = arith.mulf %370, %369 : vector<2x128xf32>
    %375 = arith.addf %373, %374 : vector<2x128xf32>
    %376 = math.tanh %375 : vector<2x128xf32>
    %377 = arith.mulf %372, %376 : vector<2x128xf32>
    %378 = vector.extract_strided_slice %377 {offsets = [0, 0], sizes = [1, 128], strides = [1, 1]} : vector<2x128xf32> to vector<1x128xf32>
    %c5_133 = arith.constant 5 : index
    %c0_134 = arith.constant 0 : index
    %379 = vector.load %arg13[%c5_133, %c0_134] : memref<16x128xf32, #tpu.memory_space<vmem>>, vector<1x128xf32>
    tpu.vector_store %arg13[%c5_133, %c0_134], %378 {strides = array<i32>} : memref<16x128xf32, #tpu.memory_space<vmem>>, vector<1x128xf32>,
    %380 = vector.extract_strided_slice %377 {offsets = [1, 0], sizes = [1, 128], strides = [1, 1]} : vector<2x128xf32> to vector<1x128xf32>
    %c13_135 = arith.constant 13 : index
    %c0_136 = arith.constant 0 : index
    %381 = vector.load %arg13[%c13_135, %c0_136] : memref<16x128xf32, #tpu.memory_space<vmem>>, vector<1x128xf32>
    tpu.vector_store %arg13[%c13_135, %c0_136], %380 {strides = array<i32>} : memref<16x128xf32, #tpu.memory_space<vmem>>, vector<1x128xf32>,
    %382 = arith.truncf %377 : vector<2x128xf32> to vector<2x128xbf16>
    %cst_137 = arith.constant dense<0.000000e+00> : vector<2x512xf32>
    %383 = tpu.matmul %382, %1, %cst_137 {dimension_numbers = #tpu.dot_dimension_numbers<[1], [0], [0], [1], [0, 0, 1, 1], [], []>} : vector<2x128xbf16>, vector<128x512xbf16>, vector<2x512xf32> -> vector<2x512xf32>
    %384 = arith.addf %241, %383 : vector<2x512xf32>
    %385 = vector.extract_strided_slice %384 {offsets = [0, 0], sizes = [2, 384], strides = [1, 1]} : vector<2x512xf32> to vector<2x384xf32>
    %386 = arith.negf %385 : vector<2x384xf32>
    %387 = math.exp %386 : vector<2x384xf32>
    %cst_138 = arith.constant 1.000000e+00 : f32
    %388 = vector.broadcast %cst_138 : f32 to vector<2x384xf32>
    %389 = arith.addf %388, %387 : vector<2x384xf32>
    %390 = arith.divf %388, %389 : vector<2x384xf32>
    %391 = vector.extract_strided_slice %384 {offsets = [0, 384], sizes = [2, 128], strides = [1, 1]} : vector<2x512xf32> to vector<2x128xf32>
    %392 = math.tanh %391 : vector<2x128xf32>
    %393 = vector.extract_strided_slice %390 {offsets = [0, 0], sizes = [2, 128], strides = [1, 1]} : vector<2x384xf32> to vector<2x128xf32>
    %394 = vector.extract_strided_slice %390 {offsets = [0, 128], sizes = [2, 128], strides = [1, 1]} : vector<2x384xf32> to vector<2x128xf32>
    %395 = vector.extract_strided_slice %390 {offsets = [0, 256], sizes = [2, 128], strides = [1, 1]} : vector<2x384xf32> to vector<2x128xf32>
    %396 = arith.mulf %394, %375 : vector<2x128xf32>
    %397 = arith.mulf %393, %392 : vector<2x128xf32>
    %398 = arith.addf %396, %397 : vector<2x128xf32>
    %399 = math.tanh %398 : vector<2x128xf32>
    %400 = arith.mulf %395, %399 : vector<2x128xf32>
    %401 = vector.extract_strided_slice %400 {offsets = [0, 0], sizes = [1, 128], strides = [1, 1]} : vector<2x128xf32> to vector<1x128xf32>
    %c6_139 = arith.constant 6 : index
    %c0_140 = arith.constant 0 : index
    %402 = vector.load %arg13[%c6_139, %c0_140] : memref<16x128xf32, #tpu.memory_space<vmem>>, vector<1x128xf32>
    tpu.vector_store %arg13[%c6_139, %c0_140], %401 {strides = array<i32>} : memref<16x128xf32, #tpu.memory_space<vmem>>, vector<1x128xf32>,
    %403 = vector.extract_strided_slice %400 {offsets = [1, 0], sizes = [1, 128], strides = [1, 1]} : vector<2x128xf32> to vector<1x128xf32>
    %c14_141 = arith.constant 14 : index
    %c0_142 = arith.constant 0 : index
    %404 = vector.load %arg13[%c14_141, %c0_142] : memref<16x128xf32, #tpu.memory_space<vmem>>, vector<1x128xf32>
    tpu.vector_store %arg13[%c14_141, %c0_142], %403 {strides = array<i32>} : memref<16x128xf32, #tpu.memory_space<vmem>>, vector<1x128xf32>,
    %405 = arith.truncf %400 : vector<2x128xf32> to vector<2x128xbf16>
    %cst_143 = arith.constant dense<0.000000e+00> : vector<2x512xf32>
    %406 = tpu.matmul %405, %1, %cst_143 {dimension_numbers = #tpu.dot_dimension_numbers<[1], [0], [0], [1], [0, 0, 1, 1], [], []>} : vector<2x128xbf16>, vector<128x512xbf16>, vector<2x512xf32> -> vector<2x512xf32>
    %407 = arith.addf %241, %406 : vector<2x512xf32>
    %408 = vector.extract_strided_slice %407 {offsets = [0, 0], sizes = [2, 384], strides = [1, 1]} : vector<2x512xf32> to vector<2x384xf32>
    %409 = arith.negf %408 : vector<2x384xf32>
    %410 = math.exp %409 : vector<2x384xf32>
    %cst_144 = arith.constant 1.000000e+00 : f32
    %411 = vector.broadcast %cst_144 : f32 to vector<2x384xf32>
    %412 = arith.addf %411, %410 : vector<2x384xf32>
    %413 = arith.divf %411, %412 : vector<2x384xf32>
    %414 = vector.extract_strided_slice %407 {offsets = [0, 384], sizes = [2, 128], strides = [1, 1]} : vector<2x512xf32> to vector<2x128xf32>
    %415 = math.tanh %414 : vector<2x128xf32>
    %416 = vector.extract_strided_slice %413 {offsets = [0, 0], sizes = [2, 128], strides = [1, 1]} : vector<2x384xf32> to vector<2x128xf32>
    %417 = vector.extract_strided_slice %413 {offsets = [0, 128], sizes = [2, 128], strides = [1, 1]} : vector<2x384xf32> to vector<2x128xf32>
    %418 = vector.extract_strided_slice %413 {offsets = [0, 256], sizes = [2, 128], strides = [1, 1]} : vector<2x384xf32> to vector<2x128xf32>
    %419 = arith.mulf %417, %398 : vector<2x128xf32>
    %420 = arith.mulf %416, %415 : vector<2x128xf32>
    %421 = arith.addf %419, %420 : vector<2x128xf32>
    %422 = math.tanh %421 : vector<2x128xf32>
    %423 = arith.mulf %418, %422 : vector<2x128xf32>
    %424 = vector.extract_strided_slice %423 {offsets = [0, 0], sizes = [1, 128], strides = [1, 1]} : vector<2x128xf32> to vector<1x128xf32>
    %c7_145 = arith.constant 7 : index
    %c0_146 = arith.constant 0 : index
    %425 = vector.load %arg13[%c7_145, %c0_146] : memref<16x128xf32, #tpu.memory_space<vmem>>, vector<1x128xf32>
    tpu.vector_store %arg13[%c7_145, %c0_146], %424 {strides = array<i32>} : memref<16x128xf32, #tpu.memory_space<vmem>>, vector<1x128xf32>,
    %426 = vector.extract_strided_slice %423 {offsets = [1, 0], sizes = [1, 128], strides = [1, 1]} : vector<2x128xf32> to vector<1x128xf32>
    %c15_147 = arith.constant 15 : index
    %c0_148 = arith.constant 0 : index
    %427 = vector.load %arg13[%c15_147, %c0_148] : memref<16x128xf32, #tpu.memory_space<vmem>>, vector<1x128xf32>
    tpu.vector_store %arg13[%c15_147, %c0_148], %426 {strides = array<i32>} : memref<16x128xf32, #tpu.memory_space<vmem>>, vector<1x128xf32>,
    %c0_149 = arith.constant 0 : index
    %c0_150 = arith.constant 0 : index
    %428 = vector.load %arg13[%c0_149, %c0_150] : memref<16x128xf32, #tpu.memory_space<vmem>>, vector<16x128xf32>
    %429 = arith.truncf %428 : vector<16x128xf32> to vector<16x128xbf16>
    %c0_151 = arith.constant 0 : index
    %c0_152 = arith.constant 0 : index
    %430 = vector.load %arg8[%c0_151, %c0_152] : memref<128x256xbf16, #tpu.memory_space<vmem>>, vector<128x256xbf16>
    %cst_153 = arith.constant dense<0.000000e+00> : vector<16x256xf32>
    %431 = tpu.matmul %429, %430, %cst_153 {dimension_numbers = #tpu.dot_dimension_numbers<[1], [0], [0], [1], [0, 0, 1, 1], [], []>} : vector<16x128xbf16>, vector<128x256xbf16>, vector<16x256xf32> -> vector<16x256xf32>
    %c0_154 = arith.constant 0 : index
    %c0_155 = arith.constant 0 : index
    %432 = vector.load %arg9[%c0_154, %c0_155] : memref<1x256xf32, #tpu.memory_space<vmem>>, vector<1x256xf32>
    %433 = vector.broadcast %432 : vector<1x256xf32> to vector<16x256xf32>
    %434 = arith.addf %431, %433 : vector<16x256xf32>
    %c0_156 = arith.constant 0 : index
    %c0_157 = arith.constant 0 : index
    %435 = vector.load %arg10[%c0_156, %c0_157] : memref<16x256xf32, #tpu.memory_space<vmem>>, vector<16x256xf32>
    tpu.vector_store %arg10[%c0_156, %c0_157], %434 {strides = array<i32>} : memref<16x256xf32, #tpu.memory_space<vmem>>, vector<16x256xf32>,
    return
  }
}

</mosaic_0001>

<llo_original>
// kernel: tpu_custom_call.1
$region0: #{tpu_custom_call.1}
  #allocation0 [shape = 'u32[]', space=smem, size = 0x4, offset = 0x4, fixed_abs, tag = 'smem constant byte address 0x4 - core index']
  #allocation1 [shape = 'u32[144,128]{1,0:T(1,128)}', space=vmem, size = 0x12000, scoped, tag = 'internal scratch']
  #allocation2 [shape = 'f32[16,64]{1,0:T(8,128)}', space=vmem, size = 0x2000, scoped, tag = 'scratch operand']
  #allocation3 [shape = 'f32[16,512]{1,0:T(8,128)}', space=vmem, size = 0x8000, scoped, tag = 'scratch operand']
  #allocation4 [shape = 'f32[16,128]{1,0:T(8,128)}', space=vmem, size = 0x2000, scoped, tag = 'scratch operand']
  %s0 = inlined_call_operand.vmem [shape: s32[16], index: 0, kind: input, shape index: {}]
  %s1 = inlined_call_operand.vmem [shape: f32[256,64], index: 1, kind: input, shape index: {}]
  %s2 = inlined_call_operand.vmem [shape: bf16[64,512], index: 2, kind: input, shape index: {}]
  %s3 = inlined_call_operand.vmem [shape: bf16[128,512], index: 3, kind: input, shape index: {}]
  %s4 = inlined_call_operand.vmem [shape: f32[1,512], index: 4, kind: input, shape index: {}]
  %s5 = inlined_call_operand.hbm [shape: bf16[128,512], index: 5, kind: input, shape index: {}]
  %s6 = inlined_call_operand.vmem [shape: f32[1,512], index: 6, kind: input, shape index: {}]
  %s7 = inlined_call_operand.hbm [shape: bf16[128,512], index: 7, kind: input, shape index: {}]
  %s8 = inlined_call_operand.hbm [shape: bf16[128,256], index: 8, kind: input, shape index: {}]
  %s9 = inlined_call_operand.vmem [shape: f32[1,256], index: 9, kind: input, shape index: {}]
  %s10 = inlined_call_operand.hbm [shape: f32[16,256], index: 10, kind: output, shape index: {}]
  %s11 = sld [smem:[#allocation0]]
  $region66: #{tpu_custom_call.1} parent=0
    _
  %s13 = ssub.s32 1, %s11
  %s14 = scalar_select 0, %s13, %s11
  $region1: #{tpu_custom_call.1} parent=0
    #allocation5 [shape = 'u8[512]{0}', space=smem, size = 0x200, scoped, tag = 'input window, operand 0, single buffered']
    #allocation6 [shape = 's32[1]{0}', space=sflag, size = 0x4, scoped, tag = 'scoped memory for tpu_custom_call.1']
    #allocation7 [shape = 's32[1]{0}', space=sflag, size = 0x4, scoped, tag = 'scoped memory for tpu_custom_call.1']
    #allocation8 [shape = 's32[1]{0}', space=sflag, size = 0x4, scoped, tag = 'scoped memory for tpu_custom_call.1']
    #allocation9 [shape = 'u8[131072]{0}', space=vmem, size = 0x20000, scoped, tag = 'input window, operand 5, single buffered']
    #allocation10 [shape = 'u8[131072]{0}', space=vmem, size = 0x20000, scoped, tag = 'input window, operand 7, single buffered']
    #allocation11 [shape = 's32[1]{0}', space=sflag, size = 0x4, scoped, tag = 'scoped memory for tpu_custom_call.1']
    #allocation12 [shape = 'u8[65536]{0}', space=vmem, size = 0x10000, scoped, tag = 'input window, operand 8, single buffered']
    #allocation13 [shape = 'u8[16384]{0}', space=vmem, size = 0x4000, scoped, tag = 'output window, operand 0, single buffered']
    %15 = vsyncpa [#allocation8], 0
    %16 = vsyncpa [#allocation6], 0
    %17 = vsyncpa [#allocation11], 0
    %18 = vsyncpa [#allocation7], 0
    // Predicated region
    $region2: #{tpu_custom_call.1} parent=1 // pred_check
      _
    $region3: #{tpu_custom_call.1} parent=1 // pred_check_branch
      %20 = sbr.rel (0) target = $region5
    $region4: #{tpu_custom_call.1} parent=1 // pred_region
      %s22 = ssub.s32 16, 16
      %23 = vsyncadd [#allocation8], %s22
      %s25 = sshll.u32 %s0, 4
      %s26 = int_to_ptr.vmem [resolvable:$true] %s25
      %28 = dma.vmem_to_smem %s26, 16, [#allocation5], [#allocation8]
    $region5: #{tpu_custom_call.1} parent=1 // pred_fallthru
      _
    // Predicated region
    $region6: #{tpu_custom_call.1} parent=1 // pred_check
      _
    $region7: #{tpu_custom_call.1} parent=1 // pred_check_branch
      %30 = sbr.rel (0) target = $region9
    $region8: #{tpu_custom_call.1} parent=1 // pred_region
      _
    $region9: #{tpu_custom_call.1} parent=1 // pred_fallthru
      _
    // Predicated region
    $region10: #{tpu_custom_call.1} parent=1 // pred_check
      _
    $region11: #{tpu_custom_call.1} parent=1 // pred_check_branch
      %32 = sbr.rel (0) target = $region13
    $region12: #{tpu_custom_call.1} parent=1 // pred_region
      _
    $region13: #{tpu_custom_call.1} parent=1 // pred_fallthru
      _
    // Predicated region
    $region14: #{tpu_custom_call.1} parent=1 // pred_check
      _
    $region15: #{tpu_custom_call.1} parent=1 // pred_check_branch
      %34 = sbr.rel (0) target = $region17
    $region16: #{tpu_custom_call.1} parent=1 // pred_region
      _
    $region17: #{tpu_custom_call.1} parent=1 // pred_fallthru
      _
    // Predicated region
    $region18: #{tpu_custom_call.1} parent=1 // pred_check
      _
    $region19: #{tpu_custom_call.1} parent=1 // pred_check_branch
      %36 = sbr.rel (0) target = $region21
    $region20: #{tpu_custom_call.1} parent=1 // pred_region
      _
    $region21: #{tpu_custom_call.1} parent=1 // pred_fallthru
      _
    // Predicated region
    $region22: #{tpu_custom_call.1} parent=1 // pred_check
      _
    $region23: #{tpu_custom_call.1} parent=1 // pred_check_branch
      %38 = sbr.rel (0) target = $region25
    $region24: #{tpu_custom_call.1} parent=1 // pred_region
      %s40 = ssub.s32 4096, 4096
      %41 = vsyncadd [#allocation6], %s40
      %s42 = sshll.u32 [#allocation9], 4
      %s43 = int_to_ptr.vmem [resolvable:$true] %s42
      %48 = dma.hbm_to_vmem [thread:$0]  %s5, 4096, %s43, [#allocation6], 256, 256, 16
    $region25: #{tpu_custom_call.1} parent=1 // pred_fallthru
      _
    // Predicated region
    $region26: #{tpu_custom_call.1} parent=1 // pred_check
      _
    $region27: #{tpu_custom_call.1} parent=1 // pred_check_branch
      %50 = sbr.rel (0) target = $region29
    $region28: #{tpu_custom_call.1} parent=1 // pred_region
      _
    $region29: #{tpu_custom_call.1} parent=1 // pred_fallthru
      _
    // Predicated region
    $region30: #{tpu_custom_call.1} parent=1 // pred_check
      _
    $region31: #{tpu_custom_call.1} parent=1 // pred_check_branch
      %52 = sbr.rel (0) target = $region33
    $region32: #{tpu_custom_call.1} parent=1 // pred_region
      %s54 = ssub.s32 4096, 4096
      %55 = vsyncadd [#allocation11], %s54
      %s56 = sshll.u32 [#allocation10], 4
      %s57 = int_to_ptr.vmem [resolvable:$true] %s56
      %62 = dma.hbm_to_vmem [thread:$0]  %s7, 4096, %s57, [#allocation11], 256, 256, 16
    $region33: #{tpu_custom_call.1} parent=1 // pred_fallthru
      _
    // Predicated region
    $region34: #{tpu_custom_call.1} parent=1 // pred_check
      _
    $region35: #{tpu_custom_call.1} parent=1 // pred_check_branch
      %64 = sbr.rel (0) target = $region37
    $region36: #{tpu_custom_call.1} parent=1 // pred_region
      %s66 = ssub.s32 2048, 2048
      %67 = vsyncadd [#allocation11], %s66
      %s68 = sshll.u32 [#allocation12], 4
      %s69 = int_to_ptr.vmem [resolvable:$true] %s68
      %74 = dma.hbm_to_vmem [thread:$0]  %s8, 2048, %s69, [#allocation11], 128, 128, 8
    $region37: #{tpu_custom_call.1} parent=1 // pred_fallthru
      _
    // Predicated region
    $region38: #{tpu_custom_call.1} parent=1 // pred_check
      _
    $region39: #{tpu_custom_call.1} parent=1 // pred_check_branch
      %76 = sbr.rel (0) target = $region41
    $region40: #{tpu_custom_call.1} parent=1 // pred_region
      _
    $region41: #{tpu_custom_call.1} parent=1 // pred_fallthru
      _
    // Predicated region
    $region42: #{tpu_custom_call.1} parent=1 // pred_check
      _
    $region43: #{tpu_custom_call.1} parent=1 // pred_check_branch
      %78 = sbr.rel (0) target = $region45
    $region44: #{tpu_custom_call.1} parent=1 // pred_region
      %79 = dma.done [#allocation8], 16
    $region45: #{tpu_custom_call.1} parent=1 // pred_fallthru
      _
    // Predicated region
    $region46: #{tpu_custom_call.1} parent=1 // pred_check
      _
    $region47: #{tpu_custom_call.1} parent=1 // pred_check_branch
      %81 = sbr.rel (0) target = $region49
    $region48: #{tpu_custom_call.1} parent=1 // pred_region
      %82 = dma.done [#allocation6], 4096
    $region49: #{tpu_custom_call.1} parent=1 // pred_fallthru
      _
    // Predicated region
    $region50: #{tpu_custom_call.1} parent=1 // pred_check
      _
    $region51: #{tpu_custom_call.1} parent=1 // pred_check_branch
      %84 = sbr.rel (0) target = $region53
    $region52: #{tpu_custom_call.1} parent=1 // pred_region
      %85 = dma.done [#allocation11], 4096
    $region53: #{tpu_custom_call.1} parent=1 // pred_fallthru
      _
    // Predicated region
    $region54: #{tpu_custom_call.1} parent=1 // pred_check
      _
    $region55: #{tpu_custom_call.1} parent=1 // pred_check_branch
      %87 = sbr.rel (0) target = $region57
    $region56: #{tpu_custom_call.1} parent=1 // pred_region
      %88 = dma.done [#allocation11], 2048
    $region57: #{tpu_custom_call.1} parent=1 // pred_fallthru
      _
    %89 = sfence
    %v91 = vld [vmem:[%s3] sm:$0xff]
    %v92 = vld [vmem:[%s3 + $0x8] sm:$0xff]
    %v93 = vld [vmem:[%s3 + $0x10] sm:$0xff]
    %v94 = vld [vmem:[%s3 + $0x18] sm:$0xff]
    %v95 = vld [vmem:[%s3 + $0x20] sm:$0xff]
    %v96 = vld [vmem:[%s3 + $0x28] sm:$0xff]
    %v97 = vld [vmem:[%s3 + $0x30] sm:$0xff]
    %v98 = vld [vmem:[%s3 + $0x38] sm:$0xff]
    %v99 = vld [vmem:[%s3 + $0x40] sm:$0xff]
    %v100 = vld [vmem:[%s3 + $0x48] sm:$0xff]
    %v101 = vld [vmem:[%s3 + $0x50] sm:$0xff]
    %v102 = vld [vmem:[%s3 + $0x58] sm:$0xff]
    %v103 = vld [vmem:[%s3 + $0x60] sm:$0xff]
    %v104 = vld [vmem:[%s3 + $0x68] sm:$0xff]
    %v105 = vld [vmem:[%s3 + $0x70] sm:$0xff]
    %v106 = vld [vmem:[%s3 + $0x78] sm:$0xff]
    %v107 = vld [vmem:[%s3 + $0x80] sm:$0xff]
    %v108 = vld [vmem:[%s3 + $0x88] sm:$0xff]
    %v109 = vld [vmem:[%s3 + $0x90] sm:$0xff]
    %v110 = vld [vmem:[%s3 + $0x98] sm:$0xff]
    %v111 = vld [vmem:[%s3 + $0xa0] sm:$0xff]
    %v112 = vld [vmem:[%s3 + $0xa8] sm:$0xff]
    %v113 = vld [vmem:[%s3 + $0xb0] sm:$0xff]
    %v114 = vld [vmem:[%s3 + $0xb8] sm:$0xff]
    %v115 = vld [vmem:[%s3 + $0xc0] sm:$0xff]
    %v116 = vld [vmem:[%s3 + $0xc8] sm:$0xff]
    %v117 = vld [vmem:[%s3 + $0xd0] sm:$0xff]
    %v118 = vld [vmem:[%s3 + $0xd8] sm:$0xff]
    %v119 = vld [vmem:[%s3 + $0xe0] sm:$0xff]
    %v120 = vld [vmem:[%s3 + $0xe8] sm:$0xff]
    %v121 = vld [vmem:[%s3 + $0xf0] sm:$0xff]
    %v122 = vld [vmem:[%s3 + $0xf8] sm:$0xff]
    %v123 = vld [vmem:[#allocation10] sm:$0xff]
    %v124 = vld [vmem:[#allocation10 + $0x8] sm:$0xff]
    %v125 = vld [vmem:[#allocation10 + $0x10] sm:$0xff]
    %v126 = vld [vmem:[#allocation10 + $0x18] sm:$0xff]
    %v127 = vld [vmem:[#allocation10 + $0x20] sm:$0xff]
    %v128 = vld [vmem:[#allocation10 + $0x28] sm:$0xff]
    %v129 = vld [vmem:[#allocation10 + $0x30] sm:$0xff]
    %v130 = vld [vmem:[#allocation10 + $0x38] sm:$0xff]
    %v131 = vld [vmem:[#allocation10 + $0x40] sm:$0xff]
    %v132 = vld [vmem:[#allocation10 + $0x48] sm:$0xff]
    %v133 = vld [vmem:[#allocation10 + $0x50] sm:$0xff]
    %v134 = vld [vmem:[#allocation10 + $0x58] sm:$0xff]
    %v135 = vld [vmem:[#allocation10 + $0x60] sm:$0xff]
    %v136 = vld [vmem:[#allocation10 + $0x68] sm:$0xff]
    %v137 = vld [vmem:[#allocation10 + $0x70] sm:$0xff]
    %v138 = vld [vmem:[#allocation10 + $0x78] sm:$0xff]
    %v139 = vld [vmem:[#allocation10 + $0x80] sm:$0xff]
    %v140 = vld [vmem:[#allocation10 + $0x88] sm:$0xff]
    %v141 = vld [vmem:[#allocation10 + $0x90] sm:$0xff]
    %v142 = vld [vmem:[#allocation10 + $0x98] sm:$0xff]
    %v143 = vld [vmem:[#allocation10 + $0xa0] sm:$0xff]
    %v144 = vld [vmem:[#allocation10 + $0xa8] sm:$0xff]
    %v145 = vld [vmem:[#allocation10 + $0xb0] sm:$0xff]
    %v146 = vld [vmem:[#allocation10 + $0xb8] sm:$0xff]
    %v147 = vld [vmem:[#allocation10 + $0xc0] sm:$0xff]
    %v148 = vld [vmem:[#allocation10 + $0xc8] sm:$0xff]
    %v149 = vld [vmem:[#allocation10 + $0xd0] sm:$0xff]
    %v150 = vld [vmem:[#allocation10 + $0xd8] sm:$0xff]
    %v151 = vld [vmem:[#allocation10 + $0xe0] sm:$0xff]
    %v152 = vld [vmem:[#allocation10 + $0xe8] sm:$0xff]
    %v153 = vld [vmem:[#allocation10 + $0xf0] sm:$0xff]
    %v154 = vld [vmem:[#allocation10 + $0xf8] sm:$0xff]
    %s155 = sld [smem:[#allocation5]]
    %s156 = scalar_lea.vmem %s1, %s155
    %v157 = vld [vmem:[%s156] sm:$0x1]
    %vm158 = vcmask 516096
    %159 = vst.msk [vmem:[#allocation2] sm:$0x1] %vm158, %v157
    %s160 = sld [smem:[#allocation5 + $0x8]]
    %s161 = scalar_lea.vmem %s1, %s160
    %v162 = vld [vmem:[%s161] sm:$0x1]
    %163 = vst.msk [vmem:[#allocation2 + $0x1] sm:$0x1] %vm158, %v162
    %s164 = sld [smem:[#allocation5 + $0x1]]
    %s165 = scalar_lea.vmem %s1, %s164
    %v166 = vld [vmem:[%s165] sm:$0x1]
    %167 = vst.msk [vmem:[#allocation2 + $0x2] sm:$0x1] %vm158, %v166
    %s168 = sld [smem:[#allocation5 + $0x9]]
    %s169 = scalar_lea.vmem %s1, %s168
    %v170 = vld [vmem:[%s169] sm:$0x1]
    %171 = vst.msk [vmem:[#allocation2 + $0x3] sm:$0x1] %vm158, %v170
    %s172 = sld [smem:[#allocation5 + $0x2]]
    %s173 = scalar_lea.vmem %s1, %s172
    %v174 = vld [vmem:[%s173] sm:$0x1]
    %175 = vst.msk [vmem:[#allocation2 + $0x4] sm:$0x1] %vm158, %v174
    %s176 = sld [smem:[#allocation5 + $0xa]]
    %s177 = scalar_lea.vmem %s1, %s176
    %v178 = vld [vmem:[%s177] sm:$0x1]
    %179 = vst.msk [vmem:[#allocation2 + $0x5] sm:$0x1] %vm158, %v178
    %s180 = sld [smem:[#allocation5 + $0x3]]
    %s181 = scalar_lea.vmem %s1, %s180
    %v182 = vld [vmem:[%s181] sm:$0x1]
    %183 = vst.msk [vmem:[#allocation2 + $0x6] sm:$0x1] %vm158, %v182
    %s184 = sld [smem:[#allocation5 + $0xb]]
    %s185 = scalar_lea.vmem %s1, %s184
    %v186 = vld [vmem:[%s185] sm:$0x1]
    %187 = vst.msk [vmem:[#allocation2 + $0x7] sm:$0x1] %vm158, %v186
    %s188 = sld [smem:[#allocation5 + $0x4]]
    %s189 = scalar_lea.vmem %s1, %s188
    %v190 = vld [vmem:[%s189] sm:$0x1]
    %191 = vst.msk [vmem:[#allocation2 + $0x8] sm:$0x1] %vm158, %v190
    %s192 = sld [smem:[#allocation5 + $0xc]]
    %s193 = scalar_lea.vmem %s1, %s192
    %v194 = vld [vmem:[%s193] sm:$0x1]
    %195 = vst.msk [vmem:[#allocation2 + $0x9] sm:$0x1] %vm158, %v194
    %s196 = sld [smem:[#allocation5 + $0x5]]
    %s197 = scalar_lea.vmem %s1, %s196
    %v198 = vld [vmem:[%s197] sm:$0x1]
    %199 = vst.msk [vmem:[#allocation2 + $0xa] sm:$0x1] %vm158, %v198
    %s200 = sld [smem:[#allocation5 + $0xd]]
    %s201 = scalar_lea.vmem %s1, %s200
    %v202 = vld [vmem:[%s201] sm:$0x1]
    %203 = vst.msk [vmem:[#allocation2 + $0xb] sm:$0x1] %vm158, %v202
    %s204 = sld [smem:[#allocation5 + $0x6]]
    %s205 = scalar_lea.vmem %s1, %s204
    %v206 = vld [vmem:[%s205] sm:$0x1]
    %207 = vst.msk [vmem:[#allocation2 + $0xc] sm:$0x1] %vm158, %v206
    %s208 = sld [smem:[#allocation5 + $0xe]]
    %s209 = scalar_lea.vmem %s1, %s208
    %v210 = vld [vmem:[%s209] sm:$0x1]
    %211 = vst.msk [vmem:[#allocation2 + $0xd] sm:$0x1] %vm158, %v210
    %s212 = sld [smem:[#allocation5 + $0x7]]
    %s213 = scalar_lea.vmem %s1, %s212
    %v214 = vld [vmem:[%s213] sm:$0x1]
    %215 = vst.msk [vmem:[#allocation2 + $0xe] sm:$0x1] %vm158, %v214
    %s216 = sld [smem:[#allocation5 + $0xf]]
    %s217 = scalar_lea.vmem %s1, %s216
    %v218 = vld [vmem:[%s217] sm:$0x1]
    %219 = vst.msk [vmem:[#allocation2 + $0xf] sm:$0x1] %vm158, %v218
    %v220 = vld [vmem:[#allocation2] sm:$0xff]
    %v221 = vld [vmem:[#allocation2 + $0x8] sm:$0xff]
    %v222 = vpack.c.bf16 %v221, %v220
    %v223 = vld [vmem:[%s2] sm:$0xff]
    %v224 = vld [vmem:[%s2 + $0x8] sm:$0xff]
    %v225 = vld [vmem:[%s2 + $0x10] sm:$0xff]
    %v226 = vld [vmem:[%s2 + $0x18] sm:$0xff]
    %v227 = vld [vmem:[%s2 + $0x20] sm:$0xff]
    %v228 = vld [vmem:[%s2 + $0x28] sm:$0xff]
    %v229 = vld [vmem:[%s2 + $0x30] sm:$0xff]
    %v230 = vld [vmem:[%s2 + $0x38] sm:$0xff]
    %v231 = vld [vmem:[%s2 + $0x40] sm:$0xff]
    %v232 = vld [vmem:[%s2 + $0x48] sm:$0xff]
    %v233 = vld [vmem:[%s2 + $0x50] sm:$0xff]
    %v234 = vld [vmem:[%s2 + $0x58] sm:$0xff]
    %v235 = vld [vmem:[%s2 + $0x60] sm:$0xff]
    %v236 = vld [vmem:[%s2 + $0x68] sm:$0xff]
    %v237 = vld [vmem:[%s2 + $0x70] sm:$0xff]
    %v238 = vld [vmem:[%s2 + $0x78] sm:$0xff]
    %v239 = vld [vmem:[%s4] sm:$0xf]
    %v241 = vlaneseq
    %v242 = vshrl.u32 %v241, 7
    %v243 = vsub.s32 0, %v242
    %v244 = vrot.slane %v239, %v243
    %v245 = vlaneseq
    %v246 = vshrl.u32 %v245, 7
    %v247 = vsub.s32 1, %v246
    %v248 = vrot.slane %v239, %v247
    %v249 = vlaneseq
    %v250 = vshrl.u32 %v249, 7
    %v251 = vsub.s32 2, %v250
    %v252 = vrot.slane %v239, %v251
    %v253 = vlaneseq
    %v254 = vshrl.u32 %v253, 7
    %v255 = vsub.s32 3, %v254
    %v256 = vrot.slane %v239, %v255
    %v277 = vunpack.c.l.b16 %v223
    %v278 = vunpack.c.h.b16 %v223
    %v279 = vunpack.c.l.b16 %v224
    %v280 = vunpack.c.h.b16 %v224
    %v281 = vunpack.c.l.b16 %v225
    %v282 = vunpack.c.h.b16 %v225
    %v283 = vunpack.c.l.b16 %v226
    %v284 = vunpack.c.h.b16 %v226
    %v285 = vunpack.c.l.b16 %v227
    %v286 = vunpack.c.h.b16 %v227
    %v287 = vunpack.c.l.b16 %v228
    %v288 = vunpack.c.h.b16 %v228
    %v289 = vunpack.c.l.b16 %v229
    %v290 = vunpack.c.h.b16 %v229
    %v291 = vunpack.c.l.b16 %v230
    %v292 = vunpack.c.h.b16 %v230
    %v293 = vunpack.c.l.b16 %v231
    %v294 = vunpack.c.h.b16 %v231
    %v295 = vunpack.c.l.b16 %v232
    %v296 = vunpack.c.h.b16 %v232
    %v297 = vunpack.c.l.b16 %v233
    %v298 = vunpack.c.h.b16 %v233
    %v299 = vunpack.c.l.b16 %v234
    %v300 = vunpack.c.h.b16 %v234
    %v301 = vunpack.c.l.b16 %v235
    %v302 = vunpack.c.h.b16 %v235
    %v303 = vunpack.c.l.b16 %v236
    %v304 = vunpack.c.h.b16 %v236
    %v305 = vunpack.c.l.b16 %v237
    %v306 = vunpack.c.h.b16 %v237
    %v307 = vunpack.c.l.b16 %v238
    %v308 = vunpack.c.h.b16 %v238
    %v309 = vpack.c.b16 %v281, %v277
    %v310 = vpack.c.b16 %v282, %v278
    %v311 = vpack.c.b16 %v283, %v279
    %v312 = vpack.c.b16 %v284, %v280
    %v313 = vpack.c.b16 %v289, %v285
    %v314 = vpack.c.b16 %v290, %v286
    %v315 = vpack.c.b16 %v291, %v287
    %v316 = vpack.c.b16 %v292, %v288
    %v317 = vpack.c.b16 %v297, %v293
    %v318 = vpack.c.b16 %v298, %v294
    %v319 = vpack.c.b16 %v299, %v295
    %v320 = vpack.c.b16 %v300, %v296
    %v321 = vpack.c.b16 %v305, %v301
    %v322 = vpack.c.b16 %v306, %v302
    %v323 = vpack.c.b16 %v307, %v303
    %v324 = vpack.c.b16 %v308, %v304
    %vm341 = vcmask 523264
    %v343 = vsel %vm341, %v222, 0
    %345 = vmatprep.subr.bf16.mxu0 %v310
    %346 = vmatpush1.bf16.msra.mxu0 %v309
    %347 = vmatprep.subr.bf16.mxu0 %v314
    %348 = vmatpush1.bf16.msra.mxu0 %v313
    %349 = vmatprep.subr.bf16.mxu0 %v318
    %350 = vmatpush1.bf16.msra.mxu0 %v317
    %351 = vmatprep.subr.bf16.mxu0 %v322
    %352 = vmatpush1.bf16.msra.mxu0 %v321
    %353 = vmatprep.subr.bf16.mxu0 0
    %354 = vmatpush1.bf16.msra.mxu0 0
    %355 = vmatprep.subr.bf16.mxu0 0
    %356 = vmatpush1.bf16.msra.mxu0 0
    %357 = vmatprep.subr.bf16.mxu0 0
    %358 = vmatpush1.bf16.msra.mxu0 0
    %359 = vmatprep.subr.bf16.mxu0 0
    %360 = vmatpush1.bf16.msra.mxu0 0
    %361 = vmatprep.subr.bf16.mxu0 0
    %362 = vmatpush1.bf16.msra.mxu0 0
    %363 = vmatprep.subr.bf16.mxu0 0
    %364 = vmatpush1.bf16.msra.mxu0 0
    %365 = vmatprep.subr.bf16.mxu0 0
    %366 = vmatpush1.bf16.msra.mxu0 0
    %367 = vmatprep.subr.bf16.mxu0 0
    %368 = vmatpush1.bf16.msra.mxu0 0
    %369 = vmatprep.subr.bf16.mxu0 0
    %370 = vmatpush1.bf16.msra.mxu0 0
    %371 = vmatprep.subr.bf16.mxu0 0
    %372 = vmatpush1.bf16.msra.mxu0 0
    %373 = vmatprep.subr.bf16.mxu0 0
    %374 = vmatpush1.bf16.msra.mxu0 0
    %375 = vmatprep.subr.bf16.mxu0 0
    %376 = vmatpush1.bf16.msra.mxu0 0
    %377 = vmatprep.mubr.bf16.mxu0 0
    %378 = vmatmul.mubr.bf16.gmra.mrb[0].mxu0 %v343
    %v379 = vpop.f32.mrb[0].mxu0
    %v380 = vadd.f32 %v244, %v379
    %v381 = vpop.f32.mrb[0].mxu0
    %v382 = vadd.f32 %v248, %v381
    %v383 = vpop.f32.mrb[0].mxu0
    %v384 = vadd.f32 %v244, %v383
    %v385 = vpop.f32.mrb[0].mxu0
    %v386 = vadd.f32 %v248, %v385
    %387 = vdwg.mxu0
    %388 = vmatprep.subr.bf16.mxu0 %v312
    %389 = vmatpush1.bf16.msra.mxu0 %v311
    %390 = vmatprep.subr.bf16.mxu0 %v316
    %391 = vmatpush1.bf16.msra.mxu0 %v315
    %392 = vmatprep.subr.bf16.mxu0 %v320
    %393 = vmatpush1.bf16.msra.mxu0 %v319
    %394 = vmatprep.subr.bf16.mxu0 %v324
    %395 = vmatpush1.bf16.msra.mxu0 %v323
    %396 = vmatprep.subr.bf16.mxu0 0
    %397 = vmatpush1.bf16.msra.mxu0 0
    %398 = vmatprep.subr.bf16.mxu0 0
    %399 = vmatpush1.bf16.msra.mxu0 0
    %400 = vmatprep.subr.bf16.mxu0 0
    %401 = vmatpush1.bf16.msra.mxu0 0
    %402 = vmatprep.subr.bf16.mxu0 0
    %403 = vmatpush1.bf16.msra.mxu0 0
    %404 = vmatprep.subr.bf16.mxu0 0
    %405 = vmatpush1.bf16.msra.mxu0 0
    %406 = vmatprep.subr.bf16.mxu0 0
    %407 = vmatpush1.bf16.msra.mxu0 0
    %408 = vmatprep.subr.bf16.mxu0 0
    %409 = vmatpush1.bf16.msra.mxu0 0
    %410 = vmatprep.subr.bf16.mxu0 0
    %411 = vmatpush1.bf16.msra.mxu0 0
    %412 = vmatprep.subr.bf16.mxu0 0
    %413 = vmatpush1.bf16.msra.mxu0 0
    %414 = vmatprep.subr.bf16.mxu0 0
    %415 = vmatpush1.bf16.msra.mxu0 0
    %416 = vmatprep.subr.bf16.mxu0 0
    %417 = vmatpush1.bf16.msra.mxu0 0
    %418 = vmatprep.subr.bf16.mxu0 0
    %419 = vmatpush1.bf16.msra.mxu0 0
    %420 = vmatprep.mubr.bf16.mxu0 0
    %421 = vmatmul.mubr.bf16.gmra.mrb[0].mxu0 %v343
    %v422 = vpop.f32.mrb[0].mxu0
    %v423 = vadd.f32 %v252, %v422
    %v424 = vpop.f32.mrb[0].mxu0
    %v425 = vadd.f32 %v256, %v424
    %v426 = vpop.f32.mrb[0].mxu0
    %v427 = vadd.f32 %v252, %v426
    %v428 = vpop.f32.mrb[0].mxu0
    %v429 = vadd.f32 %v256, %v428
    %430 = vdwg.mxu0
    %431 = vst [vmem:[#allocation3] sm:$0xff] %v380
    %432 = vst [vmem:[#allocation3 + $0x8] sm:$0xff] %v382
    %433 = vst [vmem:[#allocation3 + $0x10] sm:$0xff] %v423
    %434 = vst [vmem:[#allocation3 + $0x18] sm:$0xff] %v425
    %435 = vst [vmem:[#allocation3 + $0x20] sm:$0xff] %v384
    %436 = vst [vmem:[#allocation3 + $0x28] sm:$0xff] %v386
    %437 = vst [vmem:[#allocation3 + $0x30] sm:$0xff] %v427
    %438 = vst [vmem:[#allocation3 + $0x38] sm:$0xff] %v429
    %v439 = vld [vmem:[#allocation3] sm:$0x3]
    %v440 = vld [vmem:[#allocation3 + $0x8] sm:$0x3]
    %v441 = vld [vmem:[#allocation3 + $0x10] sm:$0x3]
    %v442 = vld [vmem:[#allocation3 + $0x18] sm:$0x3]
    %v475 = vunpack.c.l.b16 %v91
    %v476 = vunpack.c.h.b16 %v91
    %v477 = vunpack.c.l.b16 %v92
    %v478 = vunpack.c.h.b16 %v92
    %v479 = vunpack.c.l.b16 %v93
    %v480 = vunpack.c.h.b16 %v93
    %v481 = vunpack.c.l.b16 %v94
    %v482 = vunpack.c.h.b16 %v94
    %v483 = vunpack.c.l.b16 %v95
    %v484 = vunpack.c.h.b16 %v95
    %v485 = vunpack.c.l.b16 %v96
    %v486 = vunpack.c.h.b16 %v96
    %v487 = vunpack.c.l.b16 %v97
    %v488 = vunpack.c.h.b16 %v97
    %v489 = vunpack.c.l.b16 %v98
    %v490 = vunpack.c.h.b16 %v98
    %v491 = vunpack.c.l.b16 %v99
    %v492 = vunpack.c.h.b16 %v99
    %v493 = vunpack.c.l.b16 %v100
    %v494 = vunpack.c.h.b16 %v100
    %v495 = vunpack.c.l.b16 %v101
    %v496 = vunpack.c.h.b16 %v101
    %v497 = vunpack.c.l.b16 %v102
    %v498 = vunpack.c.h.b16 %v102
    %v499 = vunpack.c.l.b16 %v103
    %v500 = vunpack.c.h.b16 %v103
    %v501 = vunpack.c.l.b16 %v104
    %v502 = vunpack.c.h.b16 %v104
    %v503 = vunpack.c.l.b16 %v105
    %v504 = vunpack.c.h.b16 %v105
    %v505 = vunpack.c.l.b16 %v106
    %v506 = vunpack.c.h.b16 %v106
    %v507 = vunpack.c.l.b16 %v107
    %v508 = vunpack.c.h.b16 %v107
    %v509 = vunpack.c.l.b16 %v108
    %v510 = vunpack.c.h.b16 %v108
    %v511 = vunpack.c.l.b16 %v109
    %v512 = vunpack.c.h.b16 %v109
    %v513 = vunpack.c.l.b16 %v110
    %v514 = vunpack.c.h.b16 %v110
    %v515 = vunpack.c.l.b16 %v111
    %v516 = vunpack.c.h.b16 %v111
    %v517 = vunpack.c.l.b16 %v112
    %v518 = vunpack.c.h.b16 %v112
    %v519 = vunpack.c.l.b16 %v113
    %v520 = vunpack.c.h.b16 %v113
    %v521 = vunpack.c.l.b16 %v114
    %v522 = vunpack.c.h.b16 %v114
    %v523 = vunpack.c.l.b16 %v115
    %v524 = vunpack.c.h.b16 %v115
    %v525 = vunpack.c.l.b16 %v116
    %v526 = vunpack.c.h.b16 %v116
    %v527 = vunpack.c.l.b16 %v117
    %v528 = vunpack.c.h.b16 %v117
    %v529 = vunpack.c.l.b16 %v118
    %v530 = vunpack.c.h.b16 %v118
    %v531 = vunpack.c.l.b16 %v119
    %v532 = vunpack.c.h.b16 %v119
    %v533 = vunpack.c.l.b16 %v120
    %v534 = vunpack.c.h.b16 %v120
    %v535 = vunpack.c.l.b16 %v121
    %v536 = vunpack.c.h.b16 %v121
    %v537 = vunpack.c.l.b16 %v122
    %v538 = vunpack.c.h.b16 %v122
    %v539 = vpack.c.b16 %v479, %v475
    %v540 = vpack.c.b16 %v480, %v476
    %v541 = vpack.c.b16 %v481, %v477
    %v542 = vpack.c.b16 %v482, %v478
    %v543 = vpack.c.b16 %v487, %v483
    %v544 = vpack.c.b16 %v488, %v484
    %v545 = vpack.c.b16 %v489, %v485
    %v546 = vpack.c.b16 %v490, %v486
    %v547 = vpack.c.b16 %v495, %v491
    %v548 = vpack.c.b16 %v496, %v492
    %v549 = vpack.c.b16 %v497, %v493
    %v550 = vpack.c.b16 %v498, %v494
    %v551 = vpack.c.b16 %v503, %v499
    %v552 = vpack.c.b16 %v504, %v500
    %v553 = vpack.c.b16 %v505, %v501
    %v554 = vpack.c.b16 %v506, %v502
    %v555 = vpack.c.b16 %v511, %v507
    %v556 = vpack.c.b16 %v512, %v508
    %v557 = vpack.c.b16 %v513, %v509
    %v558 = vpack.c.b16 %v514, %v510
    %v559 = vpack.c.b16 %v519, %v515
    %v560 = vpack.c.b16 %v520, %v516
    %v561 = vpack.c.b16 %v521, %v517
    %v562 = vpack.c.b16 %v522, %v518
    %v563 = vpack.c.b16 %v527, %v523
    %v564 = vpack.c.b16 %v528, %v524
    %v565 = vpack.c.b16 %v529, %v525
    %v566 = vpack.c.b16 %v530, %v526
    %v567 = vpack.c.b16 %v535, %v531
    %v568 = vpack.c.b16 %v536, %v532
    %v569 = vpack.c.b16 %v537, %v533
    %v570 = vpack.c.b16 %v538, %v534
    %603 = vmatprep.subr.bf16.mxu0 %v540
    %604 = vmatpush1.bf16.msra.mxu0 %v539
    %605 = vmatprep.subr.bf16.mxu0 %v544
    %606 = vmatpush1.bf16.msra.mxu0 %v543
    %607 = vmatprep.subr.bf16.mxu0 %v548
    %608 = vmatpush1.bf16.msra.mxu0 %v547
    %609 = vmatprep.subr.bf16.mxu0 %v552
    %610 = vmatpush1.bf16.msra.mxu0 %v551
    %611 = vmatprep.subr.bf16.mxu0 %v556
    %612 = vmatpush1.bf16.msra.mxu0 %v555
    %613 = vmatprep.subr.bf16.mxu0 %v560
    %614 = vmatpush1.bf16.msra.mxu0 %v559
    %615 = vmatprep.subr.bf16.mxu0 %v564
    %616 = vmatpush1.bf16.msra.mxu0 %v563
    %617 = vmatprep.subr.bf16.mxu0 %v568
    %618 = vmatpush1.bf16.msra.mxu0 %v567
    %619 = vmatprep.subr.bf16.mxu0 0
    %620 = vmatpush1.bf16.msra.mxu0 0
    %621 = vmatprep.subr.bf16.mxu0 0
    %622 = vmatpush1.bf16.msra.mxu0 0
    %623 = vmatprep.subr.bf16.mxu0 0
    %624 = vmatpush1.bf16.msra.mxu0 0
    %625 = vmatprep.subr.bf16.mxu0 0
    %626 = vmatpush1.bf16.msra.mxu0 0
    %627 = vmatprep.subr.bf16.mxu0 0
    %628 = vmatpush1.bf16.msra.mxu0 0
    %629 = vmatprep.subr.bf16.mxu0 0
    %630 = vmatpush1.bf16.msra.mxu0 0
    %631 = vmatprep.subr.bf16.mxu0 0
    %632 = vmatpush1.bf16.msra.mxu0 0
    %633 = vmatprep.subr.bf16.mxu0 0
    %634 = vmatpush1.bf16.msra.mxu0 0
    %635 = vmatprep.mubr.bf16.mxu0 0
    %636 = vmatmul.mubr.bf16.gmra.mrb[0].mxu0 0
    %v637 = vpop.f32.mrb[0].mxu0
    %v638 = vadd.f32 0.0, %v637
    %v639 = vpop.f32.mrb[0].mxu0
    %v640 = vadd.f32 0.0, %v639
    %v641 = vpop.f32.mrb[0].mxu0
    %v642 = vpop.f32.mrb[0].mxu0
    %643 = vdwg.mxu0
    %644 = vmatprep.subr.bf16.mxu0 %v542
    %645 = vmatpush1.bf16.msra.mxu0 %v541
    %646 = vmatprep.subr.bf16.mxu0 %v546
    %647 = vmatpush1.bf16.msra.mxu0 %v545
    %648 = vmatprep.subr.bf16.mxu0 %v550
    %649 = vmatpush1.bf16.msra.mxu0 %v549
    %650 = vmatprep.subr.bf16.mxu0 %v554
    %651 = vmatpush1.bf16.msra.mxu0 %v553
    %652 = vmatprep.subr.bf16.mxu0 %v558
    %653 = vmatpush1.bf16.msra.mxu0 %v557
    %654 = vmatprep.subr.bf16.mxu0 %v562
    %655 = vmatpush1.bf16.msra.mxu0 %v561
    %656 = vmatprep.subr.bf16.mxu0 %v566
    %657 = vmatpush1.bf16.msra.mxu0 %v565
    %658 = vmatprep.subr.bf16.mxu0 %v570
    %659 = vmatpush1.bf16.msra.mxu0 %v569
    %660 = vmatprep.subr.bf16.mxu0 0
    %661 = vmatpush1.bf16.msra.mxu0 0
    %662 = vmatprep.subr.bf16.mxu0 0
    %663 = vmatpush1.bf16.msra.mxu0 0
    %664 = vmatprep.subr.bf16.mxu0 0
    %665 = vmatpush1.bf16.msra.mxu0 0
    %666 = vmatprep.subr.bf16.mxu0 0
    %667 = vmatpush1.bf16.msra.mxu0 0
    %668 = vmatprep.subr.bf16.mxu0 0
    %669 = vmatpush1.bf16.msra.mxu0 0
    %670 = vmatprep.subr.bf16.mxu0 0
    %671 = vmatpush1.bf16.msra.mxu0 0
    %672 = vmatprep.subr.bf16.mxu0 0
    %673 = vmatpush1.bf16.msra.mxu0 0
    %674 = vmatprep.subr.bf16.mxu0 0
    %675 = vmatpush1.bf16.msra.mxu0 0
    %676 = vmatprep.mubr.bf16.mxu0 0
    %677 = vmatmul.mubr.bf16.gmra.mrb[0].mxu0 0
    %v678 = vpop.f32.mrb[0].mxu0
    %v679 = vadd.f32 0.0, %v678
    %v680 = vpop.f32.mrb[0].mxu0
    %v681 = vadd.f32 0.0, %v680
    %v682 = vpop.f32.mrb[0].mxu0
    %v683 = vpop.f32.mrb[0].mxu0
    %684 = vdwg.mxu0
    %v685 = vadd.f32 %v439, %v638
    %v686 = vadd.f32 %v440, %v640
    %v687 = vadd.f32 %v441, %v679
    %v688 = vadd.f32 %v442, %v681
    %v689 = vxor.u32 %v685, 2147483648
    %v690 = vxor.u32 %v686, 2147483648
    %v691 = vxor.u32 %v687, 2147483648
    %v692 = vmul.f32 %v689, 1.442695
    %v693 = vpow.pop %v692
    %v694 = vmul.f32 %v690, 1.442695
    %v695 = vpow.pop %v694
    %v696 = vmul.f32 %v691, 1.442695
    %v697 = vpow.pop %v696
    %v698 = vadd.f32 %v693, 1.0
    %v699 = vadd.f32 %v695, 1.0
    %v700 = vadd.f32 %v697, 1.0
    %v701 = vrcp.pop %v698
    %v702 = vmul.f32 1.0, %v701
    %v703 = vrcp.pop %v699
    %v704 = vmul.f32 1.0, %v703
    %v705 = vrcp.pop %v700
    %v706 = vmul.f32 1.0, %v705
    %v707 = vtanh.pop %v688
    %v708 = vmul.f32 %v704, 0.0
    %v709 = vmul.f32 %v702, %v707
    %v710 = vadd.f32 %v708, %v709
    %v711 = vtanh.pop %v710
    %v712 = vmul.f32 %v706, %v711
    %v713 = vld [vmem:[#allocation3] sm:$0xc]
    %v714 = vld [vmem:[#allocation3 + $0x8] sm:$0xc]
    %v715 = vld [vmem:[#allocation3 + $0x10] sm:$0xc]
    %v716 = vld [vmem:[#allocation3 + $0x18] sm:$0xc]
    %v717 = vpack.c.bf16 %v712, %v712
    %718 = vmatprep.subr.bf16.mxu0 %v540
    %719 = vmatpush1.bf16.msra.mxu0 %v539
    %720 = vmatprep.subr.bf16.mxu0 %v544
    %721 = vmatpush1.bf16.msra.mxu0 %v543
    %722 = vmatprep.subr.bf16.mxu0 %v548
    %723 = vmatpush1.bf16.msra.mxu0 %v547
    %724 = vmatprep.subr.bf16.mxu0 %v552
    %725 = vmatpush1.bf16.msra.mxu0 %v551
    %726 = vmatprep.subr.bf16.mxu0 %v556
    %727 = vmatpush1.bf16.msra.mxu0 %v555
    %728 = vmatprep.subr.bf16.mxu0 %v560
    %729 = vmatpush1.bf16.msra.mxu0 %v559
    %730 = vmatprep.subr.bf16.mxu0 %v564
    %731 = vmatpush1.bf16.msra.mxu0 %v563
    %732 = vmatprep.subr.bf16.mxu0 %v568
    %733 = vmatpush1.bf16.msra.mxu0 %v567
    %734 = vmatprep.subr.bf16.mxu0 0
    %735 = vmatpush1.bf16.msra.mxu0 0
    %736 = vmatprep.subr.bf16.mxu0 0
    %737 = vmatpush1.bf16.msra.mxu0 0
    %738 = vmatprep.subr.bf16.mxu0 0
    %739 = vmatpush1.bf16.msra.mxu0 0
    %740 = vmatprep.subr.bf16.mxu0 0
    %741 = vmatpush1.bf16.msra.mxu0 0
    %742 = vmatprep.subr.bf16.mxu0 0
    %743 = vmatpush1.bf16.msra.mxu0 0
    %744 = vmatprep.subr.bf16.mxu0 0
    %745 = vmatpush1.bf16.msra.mxu0 0
    %746 = vmatprep.subr.bf16.mxu0 0
    %747 = vmatpush1.bf16.msra.mxu0 0
    %748 = vmatprep.subr.bf16.mxu0 0
    %749 = vmatpush1.bf16.msra.mxu0 0
    %750 = vmatprep.mubr.bf16.mxu0 0
    %751 = vmatmul.mubr.bf16.gmra.mrb[0].mxu0 %v717
    %v752 = vpop.f32.mrb[0].mxu0
    %v753 = vadd.f32 0.0, %v752
    %v754 = vpop.f32.mrb[0].mxu0
    %v755 = vadd.f32 0.0, %v754
    %v756 = vpop.f32.mrb[0].mxu0
    %v757 = vpop.f32.mrb[0].mxu0
    %758 = vdwg.mxu0
    %759 = vmatprep.subr.bf16.mxu0 %v542
    %760 = vmatpush1.bf16.msra.mxu0 %v541
    %761 = vmatprep.subr.bf16.mxu0 %v546
    %762 = vmatpush1.bf16.msra.mxu0 %v545
    %763 = vmatprep.subr.bf16.mxu0 %v550
    %764 = vmatpush1.bf16.msra.mxu0 %v549
    %765 = vmatprep.subr.bf16.mxu0 %v554
    %766 = vmatpush1.bf16.msra.mxu0 %v553
    %767 = vmatprep.subr.bf16.mxu0 %v558
    %768 = vmatpush1.bf16.msra.mxu0 %v557
    %769 = vmatprep.subr.bf16.mxu0 %v562
    %770 = vmatpush1.bf16.msra.mxu0 %v561
    %771 = vmatprep.subr.bf16.mxu0 %v566
    %772 = vmatpush1.bf16.msra.mxu0 %v565
    %773 = vmatprep.subr.bf16.mxu0 %v570
    %774 = vmatpush1.bf16.msra.mxu0 %v569
    %775 = vmatprep.subr.bf16.mxu0 0
    %776 = vmatpush1.bf16.msra.mxu0 0
    %777 = vmatprep.subr.bf16.mxu0 0
    %778 = vmatpush1.bf16.msra.mxu0 0
    %779 = vmatprep.subr.bf16.mxu0 0
    %780 = vmatpush1.bf16.msra.mxu0 0
    %781 = vmatprep.subr.bf16.mxu0 0
    %782 = vmatpush1.bf16.msra.mxu0 0
    %783 = vmatprep.subr.bf16.mxu0 0
    %784 = vmatpush1.bf16.msra.mxu0 0
    %785 = vmatprep.subr.bf16.mxu0 0
    %786 = vmatpush1.bf16.msra.mxu0 0
    %787 = vmatprep.subr.bf16.mxu0 0
    %788 = vmatpush1.bf16.msra.mxu0 0
    %789 = vmatprep.subr.bf16.mxu0 0
    %790 = vmatpush1.bf16.msra.mxu0 0
    %791 = vmatprep.mubr.bf16.mxu0 0
    %792 = vmatmul.mubr.bf16.gmra.mrb[0].mxu0 %v717
    %v793 = vpop.f32.mrb[0].mxu0
    %v794 = vadd.f32 0.0, %v793
    %v795 = vpop.f32.mrb[0].mxu0
    %v796 = vadd.f32 0.0, %v795
    %v797 = vpop.f32.mrb[0].mxu0
    %v798 = vpop.f32.mrb[0].mxu0
    %799 = vdwg.mxu0
    %v804 = vrot.slane %v753, 6
    %v805 = vrot.slane %v755, 6
    %v806 = vrot.slane %v794, 6
    %v807 = vrot.slane %v796, 6
    %v812 = vadd.f32 %v713, %v804
    %v813 = vadd.f32 %v714, %v805
    %v814 = vadd.f32 %v715, %v806
    %v815 = vadd.f32 %v716, %v807
    %v816 = vxor.u32 %v812, 2147483648
    %v817 = vxor.u32 %v813, 2147483648
    %v818 = vxor.u32 %v814, 2147483648
    %v819 = vmul.f32 %v816, 1.442695
    %v820 = vpow.pop %v819
    %v821 = vmul.f32 %v817, 1.442695
    %v822 = vpow.pop %v821
    %v823 = vmul.f32 %v818, 1.442695
    %v824 = vpow.pop %v823
    %v825 = vadd.f32 %v820, 1.0
    %v826 = vadd.f32 %v822, 1.0
    %v827 = vadd.f32 %v824, 1.0
    %v828 = vrcp.pop %v825
    %v829 = vmul.f32 1.0, %v828
    %v830 = vrcp.pop %v826
    %v831 = vmul.f32 1.0, %v830
    %v832 = vrcp.pop %v827
    %v833 = vmul.f32 1.0, %v832
    %v834 = vtanh.pop %v815
    %v836 = vrot.slane %v710, 6
    %v838 = vmul.f32 %v831, %v836
    %v839 = vmul.f32 %v829, %v834
    %v840 = vadd.f32 %v838, %v839
    %v841 = vtanh.pop %v840
    %v842 = vmul.f32 %v833, %v841
    %v843 = vld [vmem:[#allocation3] sm:$0x30]
    %v844 = vld [vmem:[#allocation3 + $0x8] sm:$0x30]
    %v845 = vld [vmem:[#allocation3 + $0x10] sm:$0x30]
    %v846 = vld [vmem:[#allocation3 + $0x18] sm:$0x30]
    %v847 = vpack.c.bf16 %v842, %v842
    %v849 = vrot.slane %v847, 1
    %851 = vmatprep.subr.bf16.mxu0 %v540
    %852 = vmatpush1.bf16.msra.mxu0 %v539
    %853 = vmatprep.subr.bf16.mxu0 %v544
    %854 = vmatpush1.bf16.msra.mxu0 %v543
    %855 = vmatprep.subr.bf16.mxu0 %v548
    %856 = vmatpush1.bf16.msra.mxu0 %v547
    %857 = vmatprep.subr.bf16.mxu0 %v552
    %858 = vmatpush1.bf16.msra.mxu0 %v551
    %859 = vmatprep.subr.bf16.mxu0 %v556
    %860 = vmatpush1.bf16.msra.mxu0 %v555
    %861 = vmatprep.subr.bf16.mxu0 %v560
    %862 = vmatpush1.bf16.msra.mxu0 %v559
    %863 = vmatprep.subr.bf16.mxu0 %v564
    %864 = vmatpush1.bf16.msra.mxu0 %v563
    %865 = vmatprep.subr.bf16.mxu0 %v568
    %866 = vmatpush1.bf16.msra.mxu0 %v567
    %867 = vmatprep.subr.bf16.mxu0 0
    %868 = vmatpush1.bf16.msra.mxu0 0
    %869 = vmatprep.subr.bf16.mxu0 0
    %870 = vmatpush1.bf16.msra.mxu0 0
    %871 = vmatprep.subr.bf16.mxu0 0
    %872 = vmatpush1.bf16.msra.mxu0 0
    %873 = vmatprep.subr.bf16.mxu0 0
    %874 = vmatpush1.bf16.msra.mxu0 0
    %875 = vmatprep.subr.bf16.mxu0 0
    %876 = vmatpush1.bf16.msra.mxu0 0
    %877 = vmatprep.subr.bf16.mxu0 0
    %878 = vmatpush1.bf16.msra.mxu0 0
    %879 = vmatprep.subr.bf16.mxu0 0
    %880 = vmatpush1.bf16.msra.mxu0 0
    %881 = vmatprep.subr.bf16.mxu0 0
    %882 = vmatpush1.bf16.msra.mxu0 0
    %883 = vmatprep.mubr.bf16.mxu0 0
    %884 = vmatmul.mubr.bf16.gmra.mrb[0].mxu0 %v849
    %v885 = vpop.f32.mrb[0].mxu0
    %v886 = vadd.f32 0.0, %v885
    %v887 = vpop.f32.mrb[0].mxu0
    %v888 = vadd.f32 0.0, %v887
    %v889 = vpop.f32.mrb[0].mxu0
    %v890 = vpop.f32.mrb[0].mxu0
    %891 = vdwg.mxu0
    %892 = vmatprep.subr.bf16.mxu0 %v542
    %893 = vmatpush1.bf16.msra.mxu0 %v541
    %894 = vmatprep.subr.bf16.mxu0 %v546
    %895 = vmatpush1.bf16.msra.mxu0 %v545
    %896 = vmatprep.subr.bf16.mxu0 %v550
    %897 = vmatpush1.bf16.msra.mxu0 %v549
    %898 = vmatprep.subr.bf16.mxu0 %v554
    %899 = vmatpush1.bf16.msra.mxu0 %v553
    %900 = vmatprep.subr.bf16.mxu0 %v558
    %901 = vmatpush1.bf16.msra.mxu0 %v557
    %902 = vmatprep.subr.bf16.mxu0 %v562
    %903 = vmatpush1.bf16.msra.mxu0 %v561
    %904 = vmatprep.subr.bf16.mxu0 %v566
    %905 = vmatpush1.bf16.msra.mxu0 %v565
    %906 = vmatprep.subr.bf16.mxu0 %v570
    %907 = vmatpush1.bf16.msra.mxu0 %v569
    %908 = vmatprep.subr.bf16.mxu0 0
    %909 = vmatpush1.bf16.msra.mxu0 0
    %910 = vmatprep.subr.bf16.mxu0 0
    %911 = vmatpush1.bf16.msra.mxu0 0
    %912 = vmatprep.subr.bf16.mxu0 0
    %913 = vmatpush1.bf16.msra.mxu0 0
    %914 = vmatprep.subr.bf16.mxu0 0
    %915 = vmatpush1.bf16.msra.mxu0 0
    %916 = vmatprep.subr.bf16.mxu0 0
    %917 = vmatpush1.bf16.msra.mxu0 0
    %918 = vmatprep.subr.bf16.mxu0 0
    %919 = vmatpush1.bf16.msra.mxu0 0
    %920 = vmatprep.subr.bf16.mxu0 0
    %921 = vmatpush1.bf16.msra.mxu0 0
    %922 = vmatprep.subr.bf16.mxu0 0
    %923 = vmatpush1.bf16.msra.mxu0 0
    %924 = vmatprep.mubr.bf16.mxu0 0
    %925 = vmatmul.mubr.bf16.gmra.mrb[0].mxu0 %v849
    %v926 = vpop.f32.mrb[0].mxu0
    %v927 = vadd.f32 0.0, %v926
    %v928 = vpop.f32.mrb[0].mxu0
    %v929 = vadd.f32 0.0, %v928
    %v930 = vpop.f32.mrb[0].mxu0
    %v931 = vpop.f32.mrb[0].mxu0
    %932 = vdwg.mxu0
    %v937 = vrot.slane %v886, 4
    %v938 = vrot.slane %v888, 4
    %v939 = vrot.slane %v927, 4
    %v940 = vrot.slane %v929, 4
    %v945 = vadd.f32 %v843, %v937
    %v946 = vadd.f32 %v844, %v938
    %v947 = vadd.f32 %v845, %v939
    %v948 = vadd.f32 %v846, %v940
    %v949 = vxor.u32 %v945, 2147483648
    %v950 = vxor.u32 %v946, 2147483648
    %v951 = vxor.u32 %v947, 2147483648
    %v952 = vmul.f32 %v949, 1.442695
    %v953 = vpow.pop %v952
    %v954 = vmul.f32 %v950, 1.442695
    %v955 = vpow.pop %v954
    %v956 = vmul.f32 %v951, 1.442695
    %v957 = vpow.pop %v956
    %v958 = vadd.f32 %v953, 1.0
    %v959 = vadd.f32 %v955, 1.0
    %v960 = vadd.f32 %v957, 1.0
    %v961 = vrcp.pop %v958
    %v962 = vmul.f32 1.0, %v961
    %v963 = vrcp.pop %v959
    %v964 = vmul.f32 1.0, %v963
    %v965 = vrcp.pop %v960
    %v966 = vmul.f32 1.0, %v965
    %v967 = vtanh.pop %v948
    %v969 = vrot.slane %v840, 6
    %v971 = vmul.f32 %v964, %v969
    %v972 = vmul.f32 %v962, %v967
    %v973 = vadd.f32 %v971, %v972
    %v974 = vtanh.pop %v973
    %v975 = vmul.f32 %v966, %v974
    %v976 = vld [vmem:[#allocation3] sm:$0xc0]
    %v977 = vld [vmem:[#allocation3 + $0x8] sm:$0xc0]
    %v978 = vld [vmem:[#allocation3 + $0x10] sm:$0xc0]
    %v979 = vld [vmem:[#allocation3 + $0x18] sm:$0xc0]
    %v980 = vpack.c.bf16 %v975, %v975
    %v982 = vrot.slane %v980, 2
    %984 = vmatprep.subr.bf16.mxu0 %v540
    %985 = vmatpush1.bf16.msra.mxu0 %v539
    %986 = vmatprep.subr.bf16.mxu0 %v544
    %987 = vmatpush1.bf16.msra.mxu0 %v543
    %988 = vmatprep.subr.bf16.mxu0 %v548
    %989 = vmatpush1.bf16.msra.mxu0 %v547
    %990 = vmatprep.subr.bf16.mxu0 %v552
    %991 = vmatpush1.bf16.msra.mxu0 %v551
    %992 = vmatprep.subr.bf16.mxu0 %v556
    %993 = vmatpush1.bf16.msra.mxu0 %v555
    %994 = vmatprep.subr.bf16.mxu0 %v560
    %995 = vmatpush1.bf16.msra.mxu0 %v559
    %996 = vmatprep.subr.bf16.mxu0 %v564
    %997 = vmatpush1.bf16.msra.mxu0 %v563
    %998 = vmatprep.subr.bf16.mxu0 %v568
    %999 = vmatpush1.bf16.msra.mxu0 %v567
    %1000 = vmatprep.subr.bf16.mxu0 0
    %1001 = vmatpush1.bf16.msra.mxu0 0
    %1002 = vmatprep.subr.bf16.mxu0 0
    %1003 = vmatpush1.bf16.msra.mxu0 0
    %1004 = vmatprep.subr.bf16.mxu0 0
    %1005 = vmatpush1.bf16.msra.mxu0 0
    %1006 = vmatprep.subr.bf16.mxu0 0
    %1007 = vmatpush1.bf16.msra.mxu0 0
    %1008 = vmatprep.subr.bf16.mxu0 0
    %1009 = vmatpush1.bf16.msra.mxu0 0
    %1010 = vmatprep.subr.bf16.mxu0 0
    %1011 = vmatpush1.bf16.msra.mxu0 0
    %1012 = vmatprep.subr.bf16.mxu0 0
    %1013 = vmatpush1.bf16.msra.mxu0 0
    %1014 = vmatprep.subr.bf16.mxu0 0
    %1015 = vmatpush1.bf16.msra.mxu0 0
    %1016 = vmatprep.mubr.bf16.mxu0 0
    %1017 = vmatmul.mubr.bf16.gmra.mrb[0].mxu0 %v982
    %v1018 = vpop.f32.mrb[0].mxu0
    %v1019 = vadd.f32 0.0, %v1018
    %v1020 = vpop.f32.mrb[0].mxu0
    %v1021 = vadd.f32 0.0, %v1020
    %v1022 = vpop.f32.mrb[0].mxu0
    %v1023 = vpop.f32.mrb[0].mxu0
    %1024 = vdwg.mxu0
    %1025 = vmatprep.subr.bf16.mxu0 %v542
    %1026 = vmatpush1.bf16.msra.mxu0 %v541
    %1027 = vmatprep.subr.bf16.mxu0 %v546
    %1028 = vmatpush1.bf16.msra.mxu0 %v545
    %1029 = vmatprep.subr.bf16.mxu0 %v550
    %1030 = vmatpush1.bf16.msra.mxu0 %v549
    %1031 = vmatprep.subr.bf16.mxu0 %v554
    %1032 = vmatpush1.bf16.msra.mxu0 %v553
    %1033 = vmatprep.subr.bf16.mxu0 %v558
    %1034 = vmatpush1.bf16.msra.mxu0 %v557
    %1035 = vmatprep.subr.bf16.mxu0 %v562
    %1036 = vmatpush1.bf16.msra.mxu0 %v561
    %1037 = vmatprep.subr.bf16.mxu0 %v566
    %1038 = vmatpush1.bf16.msra.mxu0 %v565
    %1039 = vmatprep.subr.bf16.mxu0 %v570
    %1040 = vmatpush1.bf16.msra.mxu0 %v569
    %1041 = vmatprep.subr.bf16.mxu0 0
    %1042 = vmatpush1.bf16.msra.mxu0 0
    %1043 = vmatprep.subr.bf16.mxu0 0
    %1044 = vmatpush1.bf16.msra.mxu0 0
    %1045 = vmatprep.subr.bf16.mxu0 0
    %1046 = vmatpush1.bf16.msra.mxu0 0
    %1047 = vmatprep.subr.bf16.mxu0 0
    %1048 = vmatpush1.bf16.msra.mxu0 0
    %1049 = vmatprep.subr.bf16.mxu0 0
    %1050 = vmatpush1.bf16.msra.mxu0 0
    %1051 = vmatprep.subr.bf16.mxu0 0
    %1052 = vmatpush1.bf16.msra.mxu0 0
    %1053 = vmatprep.subr.bf16.mxu0 0
    %1054 = vmatpush1.bf16.msra.mxu0 0
    %1055 = vmatprep.subr.bf16.mxu0 0
    %1056 = vmatpush1.bf16.msra.mxu0 0
    %1057 = vmatprep.mubr.bf16.mxu0 0
    %1058 = vmatmul.mubr.bf16.gmra.mrb[0].mxu0 %v982
    %v1059 = vpop.f32.mrb[0].mxu0
    %v1060 = vadd.f32 0.0, %v1059
    %v1061 = vpop.f32.mrb[0].mxu0
    %v1062 = vadd.f32 0.0, %v1061
    %v1063 = vpop.f32.mrb[0].mxu0
    %v1064 = vpop.f32.mrb[0].mxu0
    %1065 = vdwg.mxu0
    %v1070 = vrot.slane %v1019, 2
    %v1071 = vrot.slane %v1021, 2
    %v1072 = vrot.slane %v1060, 2
    %v1073 = vrot.slane %v1062, 2
    %v1078 = vadd.f32 %v976, %v1070
    %v1079 = vadd.f32 %v977, %v1071
    %v1080 = vadd.f32 %v978, %v1072
    %v1081 = vadd.f32 %v979, %v1073
    %v1082 = vxor.u32 %v1078, 2147483648
    %v1083 = vxor.u32 %v1079, 2147483648
    %v1084 = vxor.u32 %v1080, 2147483648
    %v1085 = vmul.f32 %v1082, 1.442695
    %v1086 = vpow.pop %v1085
    %v1087 = vmul.f32 %v1083, 1.442695
    %v1088 = vpow.pop %v1087
    %v1089 = vmul.f32 %v1084, 1.442695
    %v1090 = vpow.pop %v1089
    %v1091 = vadd.f32 %v1086, 1.0
    %v1092 = vadd.f32 %v1088, 1.0
    %v1093 = vadd.f32 %v1090, 1.0
    %v1094 = vrcp.pop %v1091
    %v1095 = vmul.f32 1.0, %v1094
    %v1096 = vrcp.pop %v1092
    %v1097 = vmul.f32 1.0, %v1096
    %v1098 = vrcp.pop %v1093
    %v1099 = vmul.f32 1.0, %v1098
    %v1100 = vtanh.pop %v1081
    %v1102 = vrot.slane %v973, 6
    %v1104 = vmul.f32 %v1097, %v1102
    %v1105 = vmul.f32 %v1095, %v1100
    %v1106 = vadd.f32 %v1104, %v1105
    %v1107 = vtanh.pop %v1106
    %v1108 = vmul.f32 %v1099, %v1107
    %v1109 = vld [vmem:[#allocation3 + $0x20] sm:$0x3]
    %v1110 = vld [vmem:[#allocation3 + $0x28] sm:$0x3]
    %v1111 = vld [vmem:[#allocation3 + $0x30] sm:$0x3]
    %v1112 = vld [vmem:[#allocation3 + $0x38] sm:$0x3]
    %v1113 = vpack.c.bf16 %v1108, %v1108
    %v1115 = vrot.slane %v1113, 3
    %1117 = vmatprep.subr.bf16.mxu0 %v540
    %1118 = vmatpush1.bf16.msra.mxu0 %v539
    %1119 = vmatprep.subr.bf16.mxu0 %v544
    %1120 = vmatpush1.bf16.msra.mxu0 %v543
    %1121 = vmatprep.subr.bf16.mxu0 %v548
    %1122 = vmatpush1.bf16.msra.mxu0 %v547
    %1123 = vmatprep.subr.bf16.mxu0 %v552
    %1124 = vmatpush1.bf16.msra.mxu0 %v551
    %1125 = vmatprep.subr.bf16.mxu0 %v556
    %1126 = vmatpush1.bf16.msra.mxu0 %v555
    %1127 = vmatprep.subr.bf16.mxu0 %v560
    %1128 = vmatpush1.bf16.msra.mxu0 %v559
    %1129 = vmatprep.subr.bf16.mxu0 %v564
    %1130 = vmatpush1.bf16.msra.mxu0 %v563
    %1131 = vmatprep.subr.bf16.mxu0 %v568
    %1132 = vmatpush1.bf16.msra.mxu0 %v567
    %1133 = vmatprep.subr.bf16.mxu0 0
    %1134 = vmatpush1.bf16.msra.mxu0 0
    %1135 = vmatprep.subr.bf16.mxu0 0
    %1136 = vmatpush1.bf16.msra.mxu0 0
    %1137 = vmatprep.subr.bf16.mxu0 0
    %1138 = vmatpush1.bf16.msra.mxu0 0
    %1139 = vmatprep.subr.bf16.mxu0 0
    %1140 = vmatpush1.bf16.msra.mxu0 0
    %1141 = vmatprep.subr.bf16.mxu0 0
    %1142 = vmatpush1.bf16.msra.mxu0 0
    %1143 = vmatprep.subr.bf16.mxu0 0
    %1144 = vmatpush1.bf16.msra.mxu0 0
    %1145 = vmatprep.subr.bf16.mxu0 0
    %1146 = vmatpush1.bf16.msra.mxu0 0
    %1147 = vmatprep.subr.bf16.mxu0 0
    %1148 = vmatpush1.bf16.msra.mxu0 0
    %1149 = vmatprep.mubr.bf16.mxu0 0
    %1150 = vmatmul.mubr.bf16.gmra.mrb[0].mxu0 %v1115
    %v1151 = vpop.f32.mrb[0].mxu0
    %v1152 = vadd.f32 0.0, %v1151
    %v1153 = vpop.f32.mrb[0].mxu0
    %v1154 = vadd.f32 0.0, %v1153
    %v1155 = vpop.f32.mrb[0].mxu0
    %v1156 = vpop.f32.mrb[0].mxu0
    %1157 = vdwg.mxu0
    %1158 = vmatprep.subr.bf16.mxu0 %v542
    %1159 = vmatpush1.bf16.msra.mxu0 %v541
    %1160 = vmatprep.subr.bf16.mxu0 %v546
    %1161 = vmatpush1.bf16.msra.mxu0 %v545
    %1162 = vmatprep.subr.bf16.mxu0 %v550
    %1163 = vmatpush1.bf16.msra.mxu0 %v549
    %1164 = vmatprep.subr.bf16.mxu0 %v554
    %1165 = vmatpush1.bf16.msra.mxu0 %v553
    %1166 = vmatprep.subr.bf16.mxu0 %v558
    %1167 = vmatpush1.bf16.msra.mxu0 %v557
    %1168 = vmatprep.subr.bf16.mxu0 %v562
    %1169 = vmatpush1.bf16.msra.mxu0 %v561
    %1170 = vmatprep.subr.bf16.mxu0 %v566
    %1171 = vmatpush1.bf16.msra.mxu0 %v565
    %1172 = vmatprep.subr.bf16.mxu0 %v570
    %1173 = vmatpush1.bf16.msra.mxu0 %v569
    %1174 = vmatprep.subr.bf16.mxu0 0
    %1175 = vmatpush1.bf16.msra.mxu0 0
    %1176 = vmatprep.subr.bf16.mxu0 0
    %1177 = vmatpush1.bf16.msra.mxu0 0
    %1178 = vmatprep.subr.bf16.mxu0 0
    %1179 = vmatpush1.bf16.msra.mxu0 0
    %1180 = vmatprep.subr.bf16.mxu0 0
    %1181 = vmatpush1.bf16.msra.mxu0 0
    %1182 = vmatprep.subr.bf16.mxu0 0
    %1183 = vmatpush1.bf16.msra.mxu0 0
    %1184 = vmatprep.subr.bf16.mxu0 0
    %1185 = vmatpush1.bf16.msra.mxu0 0
    %1186 = vmatprep.subr.bf16.mxu0 0
    %1187 = vmatpush1.bf16.msra.mxu0 0
    %1188 = vmatprep.subr.bf16.mxu0 0
    %1189 = vmatpush1.bf16.msra.mxu0 0
    %1190 = vmatprep.mubr.bf16.mxu0 0
    %1191 = vmatmul.mubr.bf16.gmra.mrb[0].mxu0 %v1115
    %v1192 = vpop.f32.mrb[0].mxu0
    %v1193 = vadd.f32 0.0, %v1192
    %v1194 = vpop.f32.mrb[0].mxu0
    %v1195 = vadd.f32 0.0, %v1194
    %v1196 = vpop.f32.mrb[0].mxu0
    %v1197 = vpop.f32.mrb[0].mxu0
    %1198 = vdwg.mxu0
    %v1199 = vadd.f32 %v1109, %v1152
    %v1200 = vadd.f32 %v1110, %v1154
    %v1201 = vadd.f32 %v1111, %v1193
    %v1202 = vadd.f32 %v1112, %v1195
    %v1203 = vxor.u32 %v1199, 2147483648
    %v1204 = vxor.u32 %v1200, 2147483648
    %v1205 = vxor.u32 %v1201, 2147483648
    %v1206 = vmul.f32 %v1203, 1.442695
    %v1207 = vpow.pop %v1206
    %v1208 = vmul.f32 %v1204, 1.442695
    %v1209 = vpow.pop %v1208
    %v1210 = vmul.f32 %v1205, 1.442695
    %v1211 = vpow.pop %v1210
    %v1212 = vadd.f32 %v1207, 1.0
    %v1213 = vadd.f32 %v1209, 1.0
    %v1214 = vadd.f32 %v1211, 1.0
    %v1215 = vrcp.pop %v1212
    %v1216 = vmul.f32 1.0, %v1215
    %v1217 = vrcp.pop %v1213
    %v1218 = vmul.f32 1.0, %v1217
    %v1219 = vrcp.pop %v1214
    %v1220 = vmul.f32 1.0, %v1219
    %v1221 = vtanh.pop %v1202
    %v1223 = vrot.slane %v1106, 6
    %v1225 = vmul.f32 %v1218, %v1223
    %v1226 = vmul.f32 %v1216, %v1221
    %v1227 = vadd.f32 %v1225, %v1226
    %v1228 = vtanh.pop %v1227
    %v1229 = vmul.f32 %v1220, %v1228
    %v1230 = vld [vmem:[#allocation3 + $0x20] sm:$0xc]
    %v1231 = vld [vmem:[#allocation3 + $0x28] sm:$0xc]
    %v1232 = vld [vmem:[#allocation3 + $0x30] sm:$0xc]
    %v1233 = vld [vmem:[#allocation3 + $0x38] sm:$0xc]
    %v1234 = vpack.c.bf16 %v1229, %v1229
    %1235 = vmatprep.subr.bf16.mxu0 %v540
    %1236 = vmatpush1.bf16.msra.mxu0 %v539
    %1237 = vmatprep.subr.bf16.mxu0 %v544
    %1238 = vmatpush1.bf16.msra.mxu0 %v543
    %1239 = vmatprep.subr.bf16.mxu0 %v548
    %1240 = vmatpush1.bf16.msra.mxu0 %v547
    %1241 = vmatprep.subr.bf16.mxu0 %v552
    %1242 = vmatpush1.bf16.msra.mxu0 %v551
    %1243 = vmatprep.subr.bf16.mxu0 %v556
    %1244 = vmatpush1.bf16.msra.mxu0 %v555
    %1245 = vmatprep.subr.bf16.mxu0 %v560
    %1246 = vmatpush1.bf16.msra.mxu0 %v559
    %1247 = vmatprep.subr.bf16.mxu0 %v564
    %1248 = vmatpush1.bf16.msra.mxu0 %v563
    %1249 = vmatprep.subr.bf16.mxu0 %v568
    %1250 = vmatpush1.bf16.msra.mxu0 %v567
    %1251 = vmatprep.subr.bf16.mxu0 0
    %1252 = vmatpush1.bf16.msra.mxu0 0
    %1253 = vmatprep.subr.bf16.mxu0 0
    %1254 = vmatpush1.bf16.msra.mxu0 0
    %1255 = vmatprep.subr.bf16.mxu0 0
    %1256 = vmatpush1.bf16.msra.mxu0 0
    %1257 = vmatprep.subr.bf16.mxu0 0
    %1258 = vmatpush1.bf16.msra.mxu0 0
    %1259 = vmatprep.subr.bf16.mxu0 0
    %1260 = vmatpush1.bf16.msra.mxu0 0
    %1261 = vmatprep.subr.bf16.mxu0 0
    %1262 = vmatpush1.bf16.msra.mxu0 0
    %1263 = vmatprep.subr.bf16.mxu0 0
    %1264 = vmatpush1.bf16.msra.mxu0 0
    %1265 = vmatprep.subr.bf16.mxu0 0
    %1266 = vmatpush1.bf16.msra.mxu0 0
    %1267 = vmatprep.mubr.bf16.mxu0 0
    %1268 = vmatmul.mubr.bf16.gmra.mrb[0].mxu0 %v1234
    %v1269 = vpop.f32.mrb[0].mxu0
    %v1270 = vadd.f32 0.0, %v1269
    %v1271 = vpop.f32.mrb[0].mxu0
    %v1272 = vadd.f32 0.0, %v1271
    %v1273 = vpop.f32.mrb[0].mxu0
    %v1274 = vpop.f32.mrb[0].mxu0
    %1275 = vdwg.mxu0
    %1276 = vmatprep.subr.bf16.mxu0 %v542
    %1277 = vmatpush1.bf16.msra.mxu0 %v541
    %1278 = vmatprep.subr.bf16.mxu0 %v546
    %1279 = vmatpush1.bf16.msra.mxu0 %v545
    %1280 = vmatprep.subr.bf16.mxu0 %v550
    %1281 = vmatpush1.bf16.msra.mxu0 %v549
    %1282 = vmatprep.subr.bf16.mxu0 %v554
    %1283 = vmatpush1.bf16.msra.mxu0 %v553
    %1284 = vmatprep.subr.bf16.mxu0 %v558
    %1285 = vmatpush1.bf16.msra.mxu0 %v557
    %1286 = vmatprep.subr.bf16.mxu0 %v562
    %1287 = vmatpush1.bf16.msra.mxu0 %v561
    %1288 = vmatprep.subr.bf16.mxu0 %v566
    %1289 = vmatpush1.bf16.msra.mxu0 %v565
    %1290 = vmatprep.subr.bf16.mxu0 %v570
    %1291 = vmatpush1.bf16.msra.mxu0 %v569
    %1292 = vmatprep.subr.bf16.mxu0 0
    %1293 = vmatpush1.bf16.msra.mxu0 0
    %1294 = vmatprep.subr.bf16.mxu0 0
    %1295 = vmatpush1.bf16.msra.mxu0 0
    %1296 = vmatprep.subr.bf16.mxu0 0
    %1297 = vmatpush1.bf16.msra.mxu0 0
    %1298 = vmatprep.subr.bf16.mxu0 0
    %1299 = vmatpush1.bf16.msra.mxu0 0
    %1300 = vmatprep.subr.bf16.mxu0 0
    %1301 = vmatpush1.bf16.msra.mxu0 0
    %1302 = vmatprep.subr.bf16.mxu0 0
    %1303 = vmatpush1.bf16.msra.mxu0 0
    %1304 = vmatprep.subr.bf16.mxu0 0
    %1305 = vmatpush1.bf16.msra.mxu0 0
    %1306 = vmatprep.subr.bf16.mxu0 0
    %1307 = vmatpush1.bf16.msra.mxu0 0
    %1308 = vmatprep.mubr.bf16.mxu0 0
    %1309 = vmatmul.mubr.bf16.gmra.mrb[0].mxu0 %v1234
    %v1310 = vpop.f32.mrb[0].mxu0
    %v1311 = vadd.f32 0.0, %v1310
    %v1312 = vpop.f32.mrb[0].mxu0
    %v1313 = vadd.f32 0.0, %v1312
    %v1314 = vpop.f32.mrb[0].mxu0
    %v1315 = vpop.f32.mrb[0].mxu0
    %1316 = vdwg.mxu0
    %v1321 = vrot.slane %v1270, 6
    %v1322 = vrot.slane %v1272, 6
    %v1323 = vrot.slane %v1311, 6
    %v1324 = vrot.slane %v1313, 6
    %v1329 = vadd.f32 %v1230, %v1321
    %v1330 = vadd.f32 %v1231, %v1322
    %v1331 = vadd.f32 %v1232, %v1323
    %v1332 = vadd.f32 %v1233, %v1324
    %v1333 = vxor.u32 %v1329, 2147483648
    %v1334 = vxor.u32 %v1330, 2147483648
    %v1335 = vxor.u32 %v1331, 2147483648
    %v1336 = vmul.f32 %v1333, 1.442695
    %v1337 = vpow.pop %v1336
    %v1338 = vmul.f32 %v1334, 1.442695
    %v1339 = vpow.pop %v1338
    %v1340 = vmul.f32 %v1335, 1.442695
    %v1341 = vpow.pop %v1340
    %v1342 = vadd.f32 %v1337, 1.0
    %v1343 = vadd.f32 %v1339, 1.0
    %v1344 = vadd.f32 %v1341, 1.0
    %v1345 = vrcp.pop %v1342
    %v1346 = vmul.f32 1.0, %v1345
    %v1347 = vrcp.pop %v1343
    %v1348 = vmul.f32 1.0, %v1347
    %v1349 = vrcp.pop %v1344
    %v1350 = vmul.f32 1.0, %v1349
    %v1351 = vtanh.pop %v1332
    %v1353 = vrot.slane %v1227, 6
    %v1355 = vmul.f32 %v1348, %v1353
    %v1356 = vmul.f32 %v1346, %v1351
    %v1357 = vadd.f32 %v1355, %v1356
    %v1358 = vtanh.pop %v1357
    %v1359 = vmul.f32 %v1350, %v1358
    %v1360 = vld [vmem:[#allocation3 + $0x20] sm:$0x30]
    %v1361 = vld [vmem:[#allocation3 + $0x28] sm:$0x30]
    %v1362 = vld [vmem:[#allocation3 + $0x30] sm:$0x30]
    %v1363 = vld [vmem:[#allocation3 + $0x38] sm:$0x30]
    %v1364 = vpack.c.bf16 %v1359, %v1359
    %v1366 = vrot.slane %v1364, 1
    %1368 = vmatprep.subr.bf16.mxu0 %v540
    %1369 = vmatpush1.bf16.msra.mxu0 %v539
    %1370 = vmatprep.subr.bf16.mxu0 %v544
    %1371 = vmatpush1.bf16.msra.mxu0 %v543
    %1372 = vmatprep.subr.bf16.mxu0 %v548
    %1373 = vmatpush1.bf16.msra.mxu0 %v547
    %1374 = vmatprep.subr.bf16.mxu0 %v552
    %1375 = vmatpush1.bf16.msra.mxu0 %v551
    %1376 = vmatprep.subr.bf16.mxu0 %v556
    %1377 = vmatpush1.bf16.msra.mxu0 %v555
    %1378 = vmatprep.subr.bf16.mxu0 %v560
    %1379 = vmatpush1.bf16.msra.mxu0 %v559
    %1380 = vmatprep.subr.bf16.mxu0 %v564
    %1381 = vmatpush1.bf16.msra.mxu0 %v563
    %1382 = vmatprep.subr.bf16.mxu0 %v568
    %1383 = vmatpush1.bf16.msra.mxu0 %v567
    %1384 = vmatprep.subr.bf16.mxu0 0
    %1385 = vmatpush1.bf16.msra.mxu0 0
    %1386 = vmatprep.subr.bf16.mxu0 0
    %1387 = vmatpush1.bf16.msra.mxu0 0
    %1388 = vmatprep.subr.bf16.mxu0 0
    %1389 = vmatpush1.bf16.msra.mxu0 0
    %1390 = vmatprep.subr.bf16.mxu0 0
    %1391 = vmatpush1.bf16.msra.mxu0 0
    %1392 = vmatprep.subr.bf16.mxu0 0
    %1393 = vmatpush1.bf16.msra.mxu0 0
    %1394 = vmatprep.subr.bf16.mxu0 0
    %1395 = vmatpush1.bf16.msra.mxu0 0
    %1396 = vmatprep.subr.bf16.mxu0 0
    %1397 = vmatpush1.bf16.msra.mxu0 0
    %1398 = vmatprep.subr.bf16.mxu0 0
    %1399 = vmatpush1.bf16.msra.mxu0 0
    %1400 = vmatprep.mubr.bf16.mxu0 0
    %1401 = vmatmul.mubr.bf16.gmra.mrb[0].mxu0 %v1366
    %v1402 = vpop.f32.mrb[0].mxu0
    %v1403 = vadd.f32 0.0, %v1402
    %v1404 = vpop.f32.mrb[0].mxu0
    %v1405 = vadd.f32 0.0, %v1404
    %v1406 = vpop.f32.mrb[0].mxu0
    %v1407 = vpop.f32.mrb[0].mxu0
    %1408 = vdwg.mxu0
    %1409 = vmatprep.subr.bf16.mxu0 %v542
    %1410 = vmatpush1.bf16.msra.mxu0 %v541
    %1411 = vmatprep.subr.bf16.mxu0 %v546
    %1412 = vmatpush1.bf16.msra.mxu0 %v545
    %1413 = vmatprep.subr.bf16.mxu0 %v550
    %1414 = vmatpush1.bf16.msra.mxu0 %v549
    %1415 = vmatprep.subr.bf16.mxu0 %v554
    %1416 = vmatpush1.bf16.msra.mxu0 %v553
    %1417 = vmatprep.subr.bf16.mxu0 %v558
    %1418 = vmatpush1.bf16.msra.mxu0 %v557
    %1419 = vmatprep.subr.bf16.mxu0 %v562
    %1420 = vmatpush1.bf16.msra.mxu0 %v561
    %1421 = vmatprep.subr.bf16.mxu0 %v566
    %1422 = vmatpush1.bf16.msra.mxu0 %v565
    %1423 = vmatprep.subr.bf16.mxu0 %v570
    %1424 = vmatpush1.bf16.msra.mxu0 %v569
    %1425 = vmatprep.subr.bf16.mxu0 0
    %1426 = vmatpush1.bf16.msra.mxu0 0
    %1427 = vmatprep.subr.bf16.mxu0 0
    %1428 = vmatpush1.bf16.msra.mxu0 0
    %1429 = vmatprep.subr.bf16.mxu0 0
    %1430 = vmatpush1.bf16.msra.mxu0 0
    %1431 = vmatprep.subr.bf16.mxu0 0
    %1432 = vmatpush1.bf16.msra.mxu0 0
    %1433 = vmatprep.subr.bf16.mxu0 0
    %1434 = vmatpush1.bf16.msra.mxu0 0
    %1435 = vmatprep.subr.bf16.mxu0 0
    %1436 = vmatpush1.bf16.msra.mxu0 0
    %1437 = vmatprep.subr.bf16.mxu0 0
    %1438 = vmatpush1.bf16.msra.mxu0 0
    %1439 = vmatprep.subr.bf16.mxu0 0
    %1440 = vmatpush1.bf16.msra.mxu0 0
    %1441 = vmatprep.mubr.bf16.mxu0 0
    %1442 = vmatmul.mubr.bf16.gmra.mrb[0].mxu0 %v1366
    %v1443 = vpop.f32.mrb[0].mxu0
    %v1444 = vadd.f32 0.0, %v1443
    %v1445 = vpop.f32.mrb[0].mxu0
    %v1446 = vadd.f32 0.0, %v1445
    %v1447 = vpop.f32.mrb[0].mxu0
    %v1448 = vpop.f32.mrb[0].mxu0
    %1449 = vdwg.mxu0
    %v1454 = vrot.slane %v1403, 4
    %v1455 = vrot.slane %v1405, 4
    %v1456 = vrot.slane %v1444, 4
    %v1457 = vrot.slane %v1446, 4
    %v1462 = vadd.f32 %v1360, %v1454
    %v1463 = vadd.f32 %v1361, %v1455
    %v1464 = vadd.f32 %v1362, %v1456
    %v1465 = vadd.f32 %v1363, %v1457
    %v1466 = vxor.u32 %v1462, 2147483648
    %v1467 = vxor.u32 %v1463, 2147483648
    %v1468 = vxor.u32 %v1464, 2147483648
    %v1469 = vmul.f32 %v1466, 1.442695
    %v1470 = vpow.pop %v1469
    %v1471 = vmul.f32 %v1467, 1.442695
    %v1472 = vpow.pop %v1471
    %v1473 = vmul.f32 %v1468, 1.442695
    %v1474 = vpow.pop %v1473
    %v1475 = vadd.f32 %v1470, 1.0
    %v1476 = vadd.f32 %v1472, 1.0
    %v1477 = vadd.f32 %v1474, 1.0
    %v1478 = vrcp.pop %v1475
    %v1479 = vmul.f32 1.0, %v1478
    %v1480 = vrcp.pop %v1476
    %v1481 = vmul.f32 1.0, %v1480
    %v1482 = vrcp.pop %v1477
    %v1483 = vmul.f32 1.0, %v1482
    %v1484 = vtanh.pop %v1465
    %v1486 = vrot.slane %v1357, 6
    %v1488 = vmul.f32 %v1481, %v1486
    %v1489 = vmul.f32 %v1479, %v1484
    %v1490 = vadd.f32 %v1488, %v1489
    %v1491 = vtanh.pop %v1490
    %v1492 = vmul.f32 %v1483, %v1491
    %v1493 = vld [vmem:[#allocation3 + $0x20] sm:$0xc0]
    %v1494 = vld [vmem:[#allocation3 + $0x28] sm:$0xc0]
    %v1495 = vld [vmem:[#allocation3 + $0x30] sm:$0xc0]
    %v1496 = vld [vmem:[#allocation3 + $0x38] sm:$0xc0]
    %v1497 = vpack.c.bf16 %v1492, %v1492
    %v1499 = vrot.slane %v1497, 2
    %1501 = vmatprep.subr.bf16.mxu0 %v540
    %1502 = vmatpush1.bf16.msra.mxu0 %v539
    %1503 = vmatprep.subr.bf16.mxu0 %v544
    %1504 = vmatpush1.bf16.msra.mxu0 %v543
    %1505 = vmatprep.subr.bf16.mxu0 %v548
    %1506 = vmatpush1.bf16.msra.mxu0 %v547
    %1507 = vmatprep.subr.bf16.mxu0 %v552
    %1508 = vmatpush1.bf16.msra.mxu0 %v551
    %1509 = vmatprep.subr.bf16.mxu0 %v556
    %1510 = vmatpush1.bf16.msra.mxu0 %v555
    %1511 = vmatprep.subr.bf16.mxu0 %v560
    %1512 = vmatpush1.bf16.msra.mxu0 %v559
    %1513 = vmatprep.subr.bf16.mxu0 %v564
    %1514 = vmatpush1.bf16.msra.mxu0 %v563
    %1515 = vmatprep.subr.bf16.mxu0 %v568
    %1516 = vmatpush1.bf16.msra.mxu0 %v567
    %1517 = vmatprep.subr.bf16.mxu0 0
    %1518 = vmatpush1.bf16.msra.mxu0 0
    %1519 = vmatprep.subr.bf16.mxu0 0
    %1520 = vmatpush1.bf16.msra.mxu0 0
    %1521 = vmatprep.subr.bf16.mxu0 0
    %1522 = vmatpush1.bf16.msra.mxu0 0
    %1523 = vmatprep.subr.bf16.mxu0 0
    %1524 = vmatpush1.bf16.msra.mxu0 0
    %1525 = vmatprep.subr.bf16.mxu0 0
    %1526 = vmatpush1.bf16.msra.mxu0 0
    %1527 = vmatprep.subr.bf16.mxu0 0
    %1528 = vmatpush1.bf16.msra.mxu0 0
    %1529 = vmatprep.subr.bf16.mxu0 0
    %1530 = vmatpush1.bf16.msra.mxu0 0
    %1531 = vmatprep.subr.bf16.mxu0 0
    %1532 = vmatpush1.bf16.msra.mxu0 0
    %1533 = vmatprep.mubr.bf16.mxu0 0
    %1534 = vmatmul.mubr.bf16.gmra.mrb[0].mxu0 %v1499
    %v1535 = vpop.f32.mrb[0].mxu0
    %v1536 = vadd.f32 0.0, %v1535
    %v1537 = vpop.f32.mrb[0].mxu0
    %v1538 = vadd.f32 0.0, %v1537
    %v1539 = vpop.f32.mrb[0].mxu0
    %v1540 = vpop.f32.mrb[0].mxu0
    %1541 = vdwg.mxu0
    %1542 = vmatprep.subr.bf16.mxu0 %v542
    %1543 = vmatpush1.bf16.msra.mxu0 %v541
    %1544 = vmatprep.subr.bf16.mxu0 %v546
    %1545 = vmatpush1.bf16.msra.mxu0 %v545
    %1546 = vmatprep.subr.bf16.mxu0 %v550
    %1547 = vmatpush1.bf16.msra.mxu0 %v549
    %1548 = vmatprep.subr.bf16.mxu0 %v554
    %1549 = vmatpush1.bf16.msra.mxu0 %v553
    %1550 = vmatprep.subr.bf16.mxu0 %v558
    %1551 = vmatpush1.bf16.msra.mxu0 %v557
    %1552 = vmatprep.subr.bf16.mxu0 %v562
    %1553 = vmatpush1.bf16.msra.mxu0 %v561
    %1554 = vmatprep.subr.bf16.mxu0 %v566
    %1555 = vmatpush1.bf16.msra.mxu0 %v565
    %1556 = vmatprep.subr.bf16.mxu0 %v570
    %1557 = vmatpush1.bf16.msra.mxu0 %v569
    %1558 = vmatprep.subr.bf16.mxu0 0
    %1559 = vmatpush1.bf16.msra.mxu0 0
    %1560 = vmatprep.subr.bf16.mxu0 0
    %1561 = vmatpush1.bf16.msra.mxu0 0
    %1562 = vmatprep.subr.bf16.mxu0 0
    %1563 = vmatpush1.bf16.msra.mxu0 0
    %1564 = vmatprep.subr.bf16.mxu0 0
    %1565 = vmatpush1.bf16.msra.mxu0 0
    %1566 = vmatprep.subr.bf16.mxu0 0
    %1567 = vmatpush1.bf16.msra.mxu0 0
    %1568 = vmatprep.subr.bf16.mxu0 0
    %1569 = vmatpush1.bf16.msra.mxu0 0
    %1570 = vmatprep.subr.bf16.mxu0 0
    %1571 = vmatpush1.bf16.msra.mxu0 0
    %1572 = vmatprep.subr.bf16.mxu0 0
    %1573 = vmatpush1.bf16.msra.mxu0 0
    %1574 = vmatprep.mubr.bf16.mxu0 0
    %1575 = vmatmul.mubr.bf16.gmra.mrb[0].mxu0 %v1499
    %v1576 = vpop.f32.mrb[0].mxu0
    %v1577 = vadd.f32 0.0, %v1576
    %v1578 = vpop.f32.mrb[0].mxu0
    %v1579 = vadd.f32 0.0, %v1578
    %v1580 = vpop.f32.mrb[0].mxu0
    %v1581 = vpop.f32.mrb[0].mxu0
    %1582 = vdwg.mxu0
    %v1587 = vrot.slane %v1536, 2
    %v1588 = vrot.slane %v1538, 2
    %v1589 = vrot.slane %v1577, 2
    %v1590 = vrot.slane %v1579, 2
    %v1595 = vadd.f32 %v1493, %v1587
    %v1596 = vadd.f32 %v1494, %v1588
    %v1597 = vadd.f32 %v1495, %v1589
    %v1598 = vadd.f32 %v1496, %v1590
    %v1599 = vxor.u32 %v1595, 2147483648
    %v1600 = vxor.u32 %v1596, 2147483648
    %v1601 = vxor.u32 %v1597, 2147483648
    %v1602 = vmul.f32 %v1599, 1.442695
    %v1603 = vpow.pop %v1602
    %v1604 = vmul.f32 %v1600, 1.442695
    %v1605 = vpow.pop %v1604
    %v1606 = vmul.f32 %v1601, 1.442695
    %v1607 = vpow.pop %v1606
    %v1608 = vadd.f32 %v1603, 1.0
    %v1609 = vadd.f32 %v1605, 1.0
    %v1610 = vadd.f32 %v1607, 1.0
    %v1611 = vrcp.pop %v1608
    %v1612 = vmul.f32 1.0, %v1611
    %v1613 = vrcp.pop %v1609
    %v1614 = vmul.f32 1.0, %v1613
    %v1615 = vrcp.pop %v1610
    %v1616 = vmul.f32 1.0, %v1615
    %v1617 = vtanh.pop %v1598
    %v1619 = vrot.slane %v1490, 6
    %v1621 = vmul.f32 %v1614, %v1619
    %v1622 = vmul.f32 %v1612, %v1617
    %v1623 = vadd.f32 %v1621, %v1622
    %v1624 = vtanh.pop %v1623
    %v1625 = vmul.f32 %v1616, %v1624
    %v1626 = vpack.c.bf16 %v1625, %v1625
    %v1627 = vld [vmem:[#allocation9] sm:$0xff]
    %v1628 = vld [vmem:[#allocation9 + $0x8] sm:$0xff]
    %v1629 = vld [vmem:[#allocation9 + $0x10] sm:$0xff]
    %v1630 = vld [vmem:[#allocation9 + $0x18] sm:$0xff]
    %v1631 = vld [vmem:[#allocation9 + $0x20] sm:$0xff]
    %v1632 = vld [vmem:[#allocation9 + $0x28] sm:$0xff]
    %v1633 = vld [vmem:[#allocation9 + $0x30] sm:$0xff]
    %v1634 = vld [vmem:[#allocation9 + $0x38] sm:$0xff]
    %v1635 = vld [vmem:[#allocation9 + $0x40] sm:$0xff]
    %v1636 = vld [vmem:[#allocation9 + $0x48] sm:$0xff]
    %v1637 = vld [vmem:[#allocation9 + $0x50] sm:$0xff]
    %v1638 = vld [vmem:[#allocation9 + $0x58] sm:$0xff]
    %v1639 = vld [vmem:[#allocation9 + $0x60] sm:$0xff]
    %v1640 = vld [vmem:[#allocation9 + $0x68] sm:$0xff]
    %v1641 = vld [vmem:[#allocation9 + $0x70] sm:$0xff]
    %v1642 = vld [vmem:[#allocation9 + $0x78] sm:$0xff]
    %v1643 = vld [vmem:[#allocation9 + $0x80] sm:$0xff]
    %v1644 = vld [vmem:[#allocation9 + $0x88] sm:$0xff]
    %v1645 = vld [vmem:[#allocation9 + $0x90] sm:$0xff]
    %v1646 = vld [vmem:[#allocation9 + $0x98] sm:$0xff]
    %v1647 = vld [vmem:[#allocation9 + $0xa0] sm:$0xff]
    %v1648 = vld [vmem:[#allocation9 + $0xa8] sm:$0xff]
    %v1649 = vld [vmem:[#allocation9 + $0xb0] sm:$0xff]
    %v1650 = vld [vmem:[#allocation9 + $0xb8] sm:$0xff]
    %v1651 = vld [vmem:[#allocation9 + $0xc0] sm:$0xff]
    %v1652 = vld [vmem:[#allocation9 + $0xc8] sm:$0xff]
    %v1653 = vld [vmem:[#allocation9 + $0xd0] sm:$0xff]
    %v1654 = vld [vmem:[#allocation9 + $0xd8] sm:$0xff]
    %v1655 = vld [vmem:[#allocation9 + $0xe0] sm:$0xff]
    %v1656 = vld [vmem:[#allocation9 + $0xe8] sm:$0xff]
    %v1657 = vld [vmem:[#allocation9 + $0xf0] sm:$0xff]
    %v1658 = vld [vmem:[#allocation9 + $0xf8] sm:$0xff]
    %v1659 = vld [vmem:[%s6] sm:$0xf]
    %v1661 = vlaneseq
    %v1662 = vshrl.u32 %v1661, 7
    %v1663 = vsub.s32 0, %v1662
    %v1664 = vrot.slane %v1659, %v1663
    %v1665 = vlaneseq
    %v1666 = vshrl.u32 %v1665, 7
    %v1667 = vsub.s32 1, %v1666
    %v1668 = vrot.slane %v1659, %v1667
    %v1669 = vlaneseq
    %v1670 = vshrl.u32 %v1669, 7
    %v1671 = vsub.s32 2, %v1670
    %v1672 = vrot.slane %v1659, %v1671
    %v1673 = vlaneseq
    %v1674 = vshrl.u32 %v1673, 7
    %v1675 = vsub.s32 3, %v1674
    %v1676 = vrot.slane %v1659, %v1675
    %v1682 = vrot.slane %v1626, 3
    %v1716 = vunpack.c.l.b16 %v1627
    %v1717 = vunpack.c.h.b16 %v1627
    %v1718 = vunpack.c.l.b16 %v1628
    %v1719 = vunpack.c.h.b16 %v1628
    %v1720 = vunpack.c.l.b16 %v1629
    %v1721 = vunpack.c.h.b16 %v1629
    %v1722 = vunpack.c.l.b16 %v1630
    %v1723 = vunpack.c.h.b16 %v1630
    %v1724 = vunpack.c.l.b16 %v1631
    %v1725 = vunpack.c.h.b16 %v1631
    %v1726 = vunpack.c.l.b16 %v1632
    %v1727 = vunpack.c.h.b16 %v1632
    %v1728 = vunpack.c.l.b16 %v1633
    %v1729 = vunpack.c.h.b16 %v1633
    %v1730 = vunpack.c.l.b16 %v1634
    %v1731 = vunpack.c.h.b16 %v1634
    %v1732 = vunpack.c.l.b16 %v1635
    %v1733 = vunpack.c.h.b16 %v1635
    %v1734 = vunpack.c.l.b16 %v1636
    %v1735 = vunpack.c.h.b16 %v1636
    %v1736 = vunpack.c.l.b16 %v1637
    %v1737 = vunpack.c.h.b16 %v1637
    %v1738 = vunpack.c.l.b16 %v1638
    %v1739 = vunpack.c.h.b16 %v1638
    %v1740 = vunpack.c.l.b16 %v1639
    %v1741 = vunpack.c.h.b16 %v1639
    %v1742 = vunpack.c.l.b16 %v1640
    %v1743 = vunpack.c.h.b16 %v1640
    %v1744 = vunpack.c.l.b16 %v1641
    %v1745 = vunpack.c.h.b16 %v1641
    %v1746 = vunpack.c.l.b16 %v1642
    %v1747 = vunpack.c.h.b16 %v1642
    %v1748 = vunpack.c.l.b16 %v1643
    %v1749 = vunpack.c.h.b16 %v1643
    %v1750 = vunpack.c.l.b16 %v1644
    %v1751 = vunpack.c.h.b16 %v1644
    %v1752 = vunpack.c.l.b16 %v1645
    %v1753 = vunpack.c.h.b16 %v1645
    %v1754 = vunpack.c.l.b16 %v1646
    %v1755 = vunpack.c.h.b16 %v1646
    %v1756 = vunpack.c.l.b16 %v1647
    %v1757 = vunpack.c.h.b16 %v1647
    %v1758 = vunpack.c.l.b16 %v1648
    %v1759 = vunpack.c.h.b16 %v1648
    %v1760 = vunpack.c.l.b16 %v1649
    %v1761 = vunpack.c.h.b16 %v1649
    %v1762 = vunpack.c.l.b16 %v1650
    %v1763 = vunpack.c.h.b16 %v1650
    %v1764 = vunpack.c.l.b16 %v1651
    %v1765 = vunpack.c.h.b16 %v1651
    %v1766 = vunpack.c.l.b16 %v1652
    %v1767 = vunpack.c.h.b16 %v1652
    %v1768 = vunpack.c.l.b16 %v1653
    %v1769 = vunpack.c.h.b16 %v1653
    %v1770 = vunpack.c.l.b16 %v1654
    %v1771 = vunpack.c.h.b16 %v1654
    %v1772 = vunpack.c.l.b16 %v1655
    %v1773 = vunpack.c.h.b16 %v1655
    %v1774 = vunpack.c.l.b16 %v1656
    %v1775 = vunpack.c.h.b16 %v1656
    %v1776 = vunpack.c.l.b16 %v1657
    %v1777 = vunpack.c.h.b16 %v1657
    %v1778 = vunpack.c.l.b16 %v1658
    %v1779 = vunpack.c.h.b16 %v1658
    %v1780 = vpack.c.b16 %v1720, %v1716
    %v1781 = vpack.c.b16 %v1721, %v1717
    %v1782 = vpack.c.b16 %v1722, %v1718
    %v1783 = vpack.c.b16 %v1723, %v1719
    %v1784 = vpack.c.b16 %v1728, %v1724
    %v1785 = vpack.c.b16 %v1729, %v1725
    %v1786 = vpack.c.b16 %v1730, %v1726
    %v1787 = vpack.c.b16 %v1731, %v1727
    %v1788 = vpack.c.b16 %v1736, %v1732
    %v1789 = vpack.c.b16 %v1737, %v1733
    %v1790 = vpack.c.b16 %v1738, %v1734
    %v1791 = vpack.c.b16 %v1739, %v1735
    %v1792 = vpack.c.b16 %v1744, %v1740
    %v1793 = vpack.c.b16 %v1745, %v1741
    %v1794 = vpack.c.b16 %v1746, %v1742
    %v1795 = vpack.c.b16 %v1747, %v1743
    %v1796 = vpack.c.b16 %v1752, %v1748
    %v1797 = vpack.c.b16 %v1753, %v1749
    %v1798 = vpack.c.b16 %v1754, %v1750
    %v1799 = vpack.c.b16 %v1755, %v1751
    %v1800 = vpack.c.b16 %v1760, %v1756
    %v1801 = vpack.c.b16 %v1761, %v1757
    %v1802 = vpack.c.b16 %v1762, %v1758
    %v1803 = vpack.c.b16 %v1763, %v1759
    %v1804 = vpack.c.b16 %v1768, %v1764
    %v1805 = vpack.c.b16 %v1769, %v1765
    %v1806 = vpack.c.b16 %v1770, %v1766
    %v1807 = vpack.c.b16 %v1771, %v1767
    %v1808 = vpack.c.b16 %v1776, %v1772
    %v1809 = vpack.c.b16 %v1777, %v1773
    %v1810 = vpack.c.b16 %v1778, %v1774
    %v1811 = vpack.c.b16 %v1779, %v1775
    %1844 = vmatprep.subr.bf16.mxu0 %v1781
    %1845 = vmatpush1.bf16.msra.mxu0 %v1780
    %1846 = vmatprep.subr.bf16.mxu0 %v1785
    %1847 = vmatpush1.bf16.msra.mxu0 %v1784
    %1848 = vmatprep.subr.bf16.mxu0 %v1789
    %1849 = vmatpush1.bf16.msra.mxu0 %v1788
    %1850 = vmatprep.subr.bf16.mxu0 %v1793
    %1851 = vmatpush1.bf16.msra.mxu0 %v1792
    %1852 = vmatprep.subr.bf16.mxu0 %v1797
    %1853 = vmatpush1.bf16.msra.mxu0 %v1796
    %1854 = vmatprep.subr.bf16.mxu0 %v1801
    %1855 = vmatpush1.bf16.msra.mxu0 %v1800
    %1856 = vmatprep.subr.bf16.mxu0 %v1805
    %1857 = vmatpush1.bf16.msra.mxu0 %v1804
    %1858 = vmatprep.subr.bf16.mxu0 %v1809
    %1859 = vmatpush1.bf16.msra.mxu0 %v1808
    %1860 = vmatprep.subr.bf16.mxu0 0
    %1861 = vmatpush1.bf16.msra.mxu0 0
    %1862 = vmatprep.subr.bf16.mxu0 0
    %1863 = vmatpush1.bf16.msra.mxu0 0
    %1864 = vmatprep.subr.bf16.mxu0 0
    %1865 = vmatpush1.bf16.msra.mxu0 0
    %1866 = vmatprep.subr.bf16.mxu0 0
    %1867 = vmatpush1.bf16.msra.mxu0 0
    %1868 = vmatprep.subr.bf16.mxu0 0
    %1869 = vmatpush1.bf16.msra.mxu0 0
    %1870 = vmatprep.subr.bf16.mxu0 0
    %1871 = vmatpush1.bf16.msra.mxu0 0
    %1872 = vmatprep.subr.bf16.mxu0 0
    %1873 = vmatpush1.bf16.msra.mxu0 0
    %1874 = vmatprep.subr.bf16.mxu0 0
    %1875 = vmatpush1.bf16.msra.mxu0 0
    %1876 = vmatprep.mubr.bf16.mxu0 0
    %1877 = vmatmul.mubr.bf16.gmra.mrb[0].mxu0 %v1682
    %v1878 = vpop.f32.mrb[0].mxu0
    %v1879 = vadd.f32 %v1664, %v1878
    %v1880 = vpop.f32.mrb[0].mxu0
    %v1881 = vadd.f32 %v1668, %v1880
    %v1882 = vpop.f32.mrb[0].mxu0
    %v1883 = vpop.f32.mrb[0].mxu0
    %1884 = vdwg.mxu0
    %1885 = vmatprep.subr.bf16.mxu0 %v1783
    %1886 = vmatpush1.bf16.msra.mxu0 %v1782
    %1887 = vmatprep.subr.bf16.mxu0 %v1787
    %1888 = vmatpush1.bf16.msra.mxu0 %v1786
    %1889 = vmatprep.subr.bf16.mxu0 %v1791
    %1890 = vmatpush1.bf16.msra.mxu0 %v1790
    %1891 = vmatprep.subr.bf16.mxu0 %v1795
    %1892 = vmatpush1.bf16.msra.mxu0 %v1794
    %1893 = vmatprep.subr.bf16.mxu0 %v1799
    %1894 = vmatpush1.bf16.msra.mxu0 %v1798
    %1895 = vmatprep.subr.bf16.mxu0 %v1803
    %1896 = vmatpush1.bf16.msra.mxu0 %v1802
    %1897 = vmatprep.subr.bf16.mxu0 %v1807
    %1898 = vmatpush1.bf16.msra.mxu0 %v1806
    %1899 = vmatprep.subr.bf16.mxu0 %v1811
    %1900 = vmatpush1.bf16.msra.mxu0 %v1810
    %1901 = vmatprep.subr.bf16.mxu0 0
    %1902 = vmatpush1.bf16.msra.mxu0 0
    %1903 = vmatprep.subr.bf16.mxu0 0
    %1904 = vmatpush1.bf16.msra.mxu0 0
    %1905 = vmatprep.subr.bf16.mxu0 0
    %1906 = vmatpush1.bf16.msra.mxu0 0
    %1907 = vmatprep.subr.bf16.mxu0 0
    %1908 = vmatpush1.bf16.msra.mxu0 0
    %1909 = vmatprep.subr.bf16.mxu0 0
    %1910 = vmatpush1.bf16.msra.mxu0 0
    %1911 = vmatprep.subr.bf16.mxu0 0
    %1912 = vmatpush1.bf16.msra.mxu0 0
    %1913 = vmatprep.subr.bf16.mxu0 0
    %1914 = vmatpush1.bf16.msra.mxu0 0
    %1915 = vmatprep.subr.bf16.mxu0 0
    %1916 = vmatpush1.bf16.msra.mxu0 0
    %1917 = vmatprep.mubr.bf16.mxu0 0
    %1918 = vmatmul.mubr.bf16.gmra.mrb[0].mxu0 %v1682
    %v1919 = vpop.f32.mrb[0].mxu0
    %v1920 = vadd.f32 %v1672, %v1919
    %v1921 = vpop.f32.mrb[0].mxu0
    %v1922 = vadd.f32 %v1676, %v1921
    %v1923 = vpop.f32.mrb[0].mxu0
    %v1924 = vpop.f32.mrb[0].mxu0
    %1925 = vdwg.mxu0
    %v1958 = vunpack.c.l.b16 %v123
    %v1959 = vunpack.c.h.b16 %v123
    %v1960 = vunpack.c.l.b16 %v124
    %v1961 = vunpack.c.h.b16 %v124
    %v1962 = vunpack.c.l.b16 %v125
    %v1963 = vunpack.c.h.b16 %v125
    %v1964 = vunpack.c.l.b16 %v126
    %v1965 = vunpack.c.h.b16 %v126
    %v1966 = vunpack.c.l.b16 %v127
    %v1967 = vunpack.c.h.b16 %v127
    %v1968 = vunpack.c.l.b16 %v128
    %v1969 = vunpack.c.h.b16 %v128
    %v1970 = vunpack.c.l.b16 %v129
    %v1971 = vunpack.c.h.b16 %v129
    %v1972 = vunpack.c.l.b16 %v130
    %v1973 = vunpack.c.h.b16 %v130
    %v1974 = vunpack.c.l.b16 %v131
    %v1975 = vunpack.c.h.b16 %v131
    %v1976 = vunpack.c.l.b16 %v132
    %v1977 = vunpack.c.h.b16 %v132
    %v1978 = vunpack.c.l.b16 %v133
    %v1979 = vunpack.c.h.b16 %v133
    %v1980 = vunpack.c.l.b16 %v134
    %v1981 = vunpack.c.h.b16 %v134
    %v1982 = vunpack.c.l.b16 %v135
    %v1983 = vunpack.c.h.b16 %v135
    %v1984 = vunpack.c.l.b16 %v136
    %v1985 = vunpack.c.h.b16 %v136
    %v1986 = vunpack.c.l.b16 %v137
    %v1987 = vunpack.c.h.b16 %v137
    %v1988 = vunpack.c.l.b16 %v138
    %v1989 = vunpack.c.h.b16 %v138
    %v1990 = vunpack.c.l.b16 %v139
    %v1991 = vunpack.c.h.b16 %v139
    %v1992 = vunpack.c.l.b16 %v140
    %v1993 = vunpack.c.h.b16 %v140
    %v1994 = vunpack.c.l.b16 %v141
    %v1995 = vunpack.c.h.b16 %v141
    %v1996 = vunpack.c.l.b16 %v142
    %v1997 = vunpack.c.h.b16 %v142
    %v1998 = vunpack.c.l.b16 %v143
    %v1999 = vunpack.c.h.b16 %v143
    %v2000 = vunpack.c.l.b16 %v144
    %v2001 = vunpack.c.h.b16 %v144
    %v2002 = vunpack.c.l.b16 %v145
    %v2003 = vunpack.c.h.b16 %v145
    %v2004 = vunpack.c.l.b16 %v146
    %v2005 = vunpack.c.h.b16 %v146
    %v2006 = vunpack.c.l.b16 %v147
    %v2007 = vunpack.c.h.b16 %v147
    %v2008 = vunpack.c.l.b16 %v148
    %v2009 = vunpack.c.h.b16 %v148
    %v2010 = vunpack.c.l.b16 %v149
    %v2011 = vunpack.c.h.b16 %v149
    %v2012 = vunpack.c.l.b16 %v150
    %v2013 = vunpack.c.h.b16 %v150
    %v2014 = vunpack.c.l.b16 %v151
    %v2015 = vunpack.c.h.b16 %v151
    %v2016 = vunpack.c.l.b16 %v152
    %v2017 = vunpack.c.h.b16 %v152
    %v2018 = vunpack.c.l.b16 %v153
    %v2019 = vunpack.c.h.b16 %v153
    %v2020 = vunpack.c.l.b16 %v154
    %v2021 = vunpack.c.h.b16 %v154
    %v2022 = vpack.c.b16 %v1962, %v1958
    %v2023 = vpack.c.b16 %v1963, %v1959
    %v2024 = vpack.c.b16 %v1964, %v1960
    %v2025 = vpack.c.b16 %v1965, %v1961
    %v2026 = vpack.c.b16 %v1970, %v1966
    %v2027 = vpack.c.b16 %v1971, %v1967
    %v2028 = vpack.c.b16 %v1972, %v1968
    %v2029 = vpack.c.b16 %v1973, %v1969
    %v2030 = vpack.c.b16 %v1978, %v1974
    %v2031 = vpack.c.b16 %v1979, %v1975
    %v2032 = vpack.c.b16 %v1980, %v1976
    %v2033 = vpack.c.b16 %v1981, %v1977
    %v2034 = vpack.c.b16 %v1986, %v1982
    %v2035 = vpack.c.b16 %v1987, %v1983
    %v2036 = vpack.c.b16 %v1988, %v1984
    %v2037 = vpack.c.b16 %v1989, %v1985
    %v2038 = vpack.c.b16 %v1994, %v1990
    %v2039 = vpack.c.b16 %v1995, %v1991
    %v2040 = vpack.c.b16 %v1996, %v1992
    %v2041 = vpack.c.b16 %v1997, %v1993
    %v2042 = vpack.c.b16 %v2002, %v1998
    %v2043 = vpack.c.b16 %v2003, %v1999
    %v2044 = vpack.c.b16 %v2004, %v2000
    %v2045 = vpack.c.b16 %v2005, %v2001
    %v2046 = vpack.c.b16 %v2010, %v2006
    %v2047 = vpack.c.b16 %v2011, %v2007
    %v2048 = vpack.c.b16 %v2012, %v2008
    %v2049 = vpack.c.b16 %v2013, %v2009
    %v2050 = vpack.c.b16 %v2018, %v2014
    %v2051 = vpack.c.b16 %v2019, %v2015
    %v2052 = vpack.c.b16 %v2020, %v2016
    %v2053 = vpack.c.b16 %v2021, %v2017
    %2086 = vmatprep.subr.bf16.mxu0 %v2023
    %2087 = vmatpush1.bf16.msra.mxu0 %v2022
    %2088 = vmatprep.subr.bf16.mxu0 %v2027
    %2089 = vmatpush1.bf16.msra.mxu0 %v2026
    %2090 = vmatprep.subr.bf16.mxu0 %v2031
    %2091 = vmatpush1.bf16.msra.mxu0 %v2030
    %2092 = vmatprep.subr.bf16.mxu0 %v2035
    %2093 = vmatpush1.bf16.msra.mxu0 %v2034
    %2094 = vmatprep.subr.bf16.mxu0 %v2039
    %2095 = vmatpush1.bf16.msra.mxu0 %v2038
    %2096 = vmatprep.subr.bf16.mxu0 %v2043
    %2097 = vmatpush1.bf16.msra.mxu0 %v2042
    %2098 = vmatprep.subr.bf16.mxu0 %v2047
    %2099 = vmatpush1.bf16.msra.mxu0 %v2046
    %2100 = vmatprep.subr.bf16.mxu0 %v2051
    %2101 = vmatpush1.bf16.msra.mxu0 %v2050
    %2102 = vmatprep.subr.bf16.mxu0 0
    %2103 = vmatpush1.bf16.msra.mxu0 0
    %2104 = vmatprep.subr.bf16.mxu0 0
    %2105 = vmatpush1.bf16.msra.mxu0 0
    %2106 = vmatprep.subr.bf16.mxu0 0
    %2107 = vmatpush1.bf16.msra.mxu0 0
    %2108 = vmatprep.subr.bf16.mxu0 0
    %2109 = vmatpush1.bf16.msra.mxu0 0
    %2110 = vmatprep.subr.bf16.mxu0 0
    %2111 = vmatpush1.bf16.msra.mxu0 0
    %2112 = vmatprep.subr.bf16.mxu0 0
    %2113 = vmatpush1.bf16.msra.mxu0 0
    %2114 = vmatprep.subr.bf16.mxu0 0
    %2115 = vmatpush1.bf16.msra.mxu0 0
    %2116 = vmatprep.subr.bf16.mxu0 0
    %2117 = vmatpush1.bf16.msra.mxu0 0
    %2118 = vmatprep.mubr.bf16.mxu0 0
    %2119 = vmatmul.mubr.bf16.gmra.mrb[0].mxu0 0
    %v2120 = vpop.f32.mrb[0].mxu0
    %v2121 = vadd.f32 0.0, %v2120
    %v2122 = vpop.f32.mrb[0].mxu0
    %v2123 = vadd.f32 0.0, %v2122
    %v2124 = vpop.f32.mrb[0].mxu0
    %v2125 = vpop.f32.mrb[0].mxu0
    %2126 = vdwg.mxu0
    %2127 = vmatprep.subr.bf16.mxu0 %v2025
    %2128 = vmatpush1.bf16.msra.mxu0 %v2024
    %2129 = vmatprep.subr.bf16.mxu0 %v2029
    %2130 = vmatpush1.bf16.msra.mxu0 %v2028
    %2131 = vmatprep.subr.bf16.mxu0 %v2033
    %2132 = vmatpush1.bf16.msra.mxu0 %v2032
    %2133 = vmatprep.subr.bf16.mxu0 %v2037
    %2134 = vmatpush1.bf16.msra.mxu0 %v2036
    %2135 = vmatprep.subr.bf16.mxu0 %v2041
    %2136 = vmatpush1.bf16.msra.mxu0 %v2040
    %2137 = vmatprep.subr.bf16.mxu0 %v2045
    %2138 = vmatpush1.bf16.msra.mxu0 %v2044
    %2139 = vmatprep.subr.bf16.mxu0 %v2049
    %2140 = vmatpush1.bf16.msra.mxu0 %v2048
    %2141 = vmatprep.subr.bf16.mxu0 %v2053
    %2142 = vmatpush1.bf16.msra.mxu0 %v2052
    %2143 = vmatprep.subr.bf16.mxu0 0
    %2144 = vmatpush1.bf16.msra.mxu0 0
    %2145 = vmatprep.subr.bf16.mxu0 0
    %2146 = vmatpush1.bf16.msra.mxu0 0
    %2147 = vmatprep.subr.bf16.mxu0 0
    %2148 = vmatpush1.bf16.msra.mxu0 0
    %2149 = vmatprep.subr.bf16.mxu0 0
    %2150 = vmatpush1.bf16.msra.mxu0 0
    %2151 = vmatprep.subr.bf16.mxu0 0
    %2152 = vmatpush1.bf16.msra.mxu0 0
    %2153 = vmatprep.subr.bf16.mxu0 0
    %2154 = vmatpush1.bf16.msra.mxu0 0
    %2155 = vmatprep.subr.bf16.mxu0 0
    %2156 = vmatpush1.bf16.msra.mxu0 0
    %2157 = vmatprep.subr.bf16.mxu0 0
    %2158 = vmatpush1.bf16.msra.mxu0 0
    %2159 = vmatprep.mubr.bf16.mxu0 0
    %2160 = vmatmul.mubr.bf16.gmra.mrb[0].mxu0 0
    %v2161 = vpop.f32.mrb[0].mxu0
    %v2162 = vadd.f32 0.0, %v2161
    %v2163 = vpop.f32.mrb[0].mxu0
    %v2164 = vadd.f32 0.0, %v2163
    %v2165 = vpop.f32.mrb[0].mxu0
    %v2166 = vpop.f32.mrb[0].mxu0
    %2167 = vdwg.mxu0
    %v2168 = vadd.f32 %v1879, %v2121
    %v2169 = vadd.f32 %v1881, %v2123
    %v2170 = vadd.f32 %v1920, %v2162
    %v2171 = vadd.f32 %v1922, %v2164
    %v2172 = vxor.u32 %v2168, 2147483648
    %v2173 = vxor.u32 %v2169, 2147483648
    %v2174 = vxor.u32 %v2170, 2147483648
    %v2175 = vmul.f32 %v2172, 1.442695
    %v2176 = vpow.pop %v2175
    %v2177 = vmul.f32 %v2173, 1.442695
    %v2178 = vpow.pop %v2177
    %v2179 = vmul.f32 %v2174, 1.442695
    %v2180 = vpow.pop %v2179
    %v2181 = vadd.f32 %v2176, 1.0
    %v2182 = vadd.f32 %v2178, 1.0
    %v2183 = vadd.f32 %v2180, 1.0
    %v2184 = vrcp.pop %v2181
    %v2185 = vmul.f32 1.0, %v2184
    %v2186 = vrcp.pop %v2182
    %v2187 = vmul.f32 1.0, %v2186
    %v2188 = vrcp.pop %v2183
    %v2189 = vmul.f32 1.0, %v2188
    %v2190 = vtanh.pop %v2171
    %v2191 = vmul.f32 %v2187, 0.0
    %v2192 = vmul.f32 %v2185, %v2190
    %v2193 = vadd.f32 %v2191, %v2192
    %v2194 = vtanh.pop %v2193
    %v2195 = vmul.f32 %v2189, %v2194
    %2196 = vst [vmem:[#allocation4] sm:$0x1] %v2195
    %2197 = vst [vmem:[#allocation4 + $0x7] sm:$0x2] %v2195
    %v2198 = vpack.c.bf16 %v2195, %v2195
    %2199 = vmatprep.subr.bf16.mxu0 %v2023
    %2200 = vmatpush1.bf16.msra.mxu0 %v2022
    %2201 = vmatprep.subr.bf16.mxu0 %v2027
    %2202 = vmatpush1.bf16.msra.mxu0 %v2026
    %2203 = vmatprep.subr.bf16.mxu0 %v2031
    %2204 = vmatpush1.bf16.msra.mxu0 %v2030
    %2205 = vmatprep.subr.bf16.mxu0 %v2035
    %2206 = vmatpush1.bf16.msra.mxu0 %v2034
    %2207 = vmatprep.subr.bf16.mxu0 %v2039
    %2208 = vmatpush1.bf16.msra.mxu0 %v2038
    %2209 = vmatprep.subr.bf16.mxu0 %v2043
    %2210 = vmatpush1.bf16.msra.mxu0 %v2042
    %2211 = vmatprep.subr.bf16.mxu0 %v2047
    %2212 = vmatpush1.bf16.msra.mxu0 %v2046
    %2213 = vmatprep.subr.bf16.mxu0 %v2051
    %2214 = vmatpush1.bf16.msra.mxu0 %v2050
    %2215 = vmatprep.subr.bf16.mxu0 0
    %2216 = vmatpush1.bf16.msra.mxu0 0
    %2217 = vmatprep.subr.bf16.mxu0 0
    %2218 = vmatpush1.bf16.msra.mxu0 0
    %2219 = vmatprep.subr.bf16.mxu0 0
    %2220 = vmatpush1.bf16.msra.mxu0 0
    %2221 = vmatprep.subr.bf16.mxu0 0
    %2222 = vmatpush1.bf16.msra.mxu0 0
    %2223 = vmatprep.subr.bf16.mxu0 0
    %2224 = vmatpush1.bf16.msra.mxu0 0
    %2225 = vmatprep.subr.bf16.mxu0 0
    %2226 = vmatpush1.bf16.msra.mxu0 0
    %2227 = vmatprep.subr.bf16.mxu0 0
    %2228 = vmatpush1.bf16.msra.mxu0 0
    %2229 = vmatprep.subr.bf16.mxu0 0
    %2230 = vmatpush1.bf16.msra.mxu0 0
    %2231 = vmatprep.mubr.bf16.mxu0 0
    %2232 = vmatmul.mubr.bf16.gmra.mrb[0].mxu0 %v2198
    %v2233 = vpop.f32.mrb[0].mxu0
    %v2234 = vadd.f32 0.0, %v2233
    %v2235 = vpop.f32.mrb[0].mxu0
    %v2236 = vadd.f32 0.0, %v2235
    %v2237 = vpop.f32.mrb[0].mxu0
    %v2238 = vpop.f32.mrb[0].mxu0
    %2239 = vdwg.mxu0
    %2240 = vmatprep.subr.bf16.mxu0 %v2025
    %2241 = vmatpush1.bf16.msra.mxu0 %v2024
    %2242 = vmatprep.subr.bf16.mxu0 %v2029
    %2243 = vmatpush1.bf16.msra.mxu0 %v2028
    %2244 = vmatprep.subr.bf16.mxu0 %v2033
    %2245 = vmatpush1.bf16.msra.mxu0 %v2032
    %2246 = vmatprep.subr.bf16.mxu0 %v2037
    %2247 = vmatpush1.bf16.msra.mxu0 %v2036
    %2248 = vmatprep.subr.bf16.mxu0 %v2041
    %2249 = vmatpush1.bf16.msra.mxu0 %v2040
    %2250 = vmatprep.subr.bf16.mxu0 %v2045
    %2251 = vmatpush1.bf16.msra.mxu0 %v2044
    %2252 = vmatprep.subr.bf16.mxu0 %v2049
    %2253 = vmatpush1.bf16.msra.mxu0 %v2048
    %2254 = vmatprep.subr.bf16.mxu0 %v2053
    %2255 = vmatpush1.bf16.msra.mxu0 %v2052
    %2256 = vmatprep.subr.bf16.mxu0 0
    %2257 = vmatpush1.bf16.msra.mxu0 0
    %2258 = vmatprep.subr.bf16.mxu0 0
    %2259 = vmatpush1.bf16.msra.mxu0 0
    %2260 = vmatprep.subr.bf16.mxu0 0
    %2261 = vmatpush1.bf16.msra.mxu0 0
    %2262 = vmatprep.subr.bf16.mxu0 0
    %2263 = vmatpush1.bf16.msra.mxu0 0
    %2264 = vmatprep.subr.bf16.mxu0 0
    %2265 = vmatpush1.bf16.msra.mxu0 0
    %2266 = vmatprep.subr.bf16.mxu0 0
    %2267 = vmatpush1.bf16.msra.mxu0 0
    %2268 = vmatprep.subr.bf16.mxu0 0
    %2269 = vmatpush1.bf16.msra.mxu0 0
    %2270 = vmatprep.subr.bf16.mxu0 0
    %2271 = vmatpush1.bf16.msra.mxu0 0
    %2272 = vmatprep.mubr.bf16.mxu0 0
    %2273 = vmatmul.mubr.bf16.gmra.mrb[0].mxu0 %v2198
    %v2274 = vpop.f32.mrb[0].mxu0
    %v2275 = vadd.f32 0.0, %v2274
    %v2276 = vpop.f32.mrb[0].mxu0
    %v2277 = vadd.f32 0.0, %v2276
    %v2278 = vpop.f32.mrb[0].mxu0
    %v2279 = vpop.f32.mrb[0].mxu0
    %2280 = vdwg.mxu0
    %v2281 = vadd.f32 %v1879, %v2234
    %v2282 = vadd.f32 %v1881, %v2236
    %v2283 = vadd.f32 %v1920, %v2275
    %v2284 = vadd.f32 %v1922, %v2277
    %v2285 = vxor.u32 %v2281, 2147483648
    %v2286 = vxor.u32 %v2282, 2147483648
    %v2287 = vxor.u32 %v2283, 2147483648
    %v2288 = vmul.f32 %v2285, 1.442695
    %v2289 = vpow.pop %v2288
    %v2290 = vmul.f32 %v2286, 1.442695
    %v2291 = vpow.pop %v2290
    %v2292 = vmul.f32 %v2287, 1.442695
    %v2293 = vpow.pop %v2292
    %v2294 = vadd.f32 %v2289, 1.0
    %v2295 = vadd.f32 %v2291, 1.0
    %v2296 = vadd.f32 %v2293, 1.0
    %v2297 = vrcp.pop %v2294
    %v2298 = vmul.f32 1.0, %v2297
    %v2299 = vrcp.pop %v2295
    %v2300 = vmul.f32 1.0, %v2299
    %v2301 = vrcp.pop %v2296
    %v2302 = vmul.f32 1.0, %v2301
    %v2303 = vtanh.pop %v2284
    %v2304 = vmul.f32 %v2300, %v2193
    %v2305 = vmul.f32 %v2298, %v2303
    %v2306 = vadd.f32 %v2304, %v2305
    %v2307 = vtanh.pop %v2306
    %v2308 = vmul.f32 %v2302, %v2307
    %2309 = vst [vmem:[#allocation4 + $0x1] sm:$0x1] %v2308
    %2310 = vst [vmem:[#allocation4 + $0x8] sm:$0x2] %v2308
    %v2311 = vpack.c.bf16 %v2308, %v2308
    %2312 = vmatprep.subr.bf16.mxu0 %v2023
    %2313 = vmatpush1.bf16.msra.mxu0 %v2022
    %2314 = vmatprep.subr.bf16.mxu0 %v2027
    %2315 = vmatpush1.bf16.msra.mxu0 %v2026
    %2316 = vmatprep.subr.bf16.mxu0 %v2031
    %2317 = vmatpush1.bf16.msra.mxu0 %v2030
    %2318 = vmatprep.subr.bf16.mxu0 %v2035
    %2319 = vmatpush1.bf16.msra.mxu0 %v2034
    %2320 = vmatprep.subr.bf16.mxu0 %v2039
    %2321 = vmatpush1.bf16.msra.mxu0 %v2038
    %2322 = vmatprep.subr.bf16.mxu0 %v2043
    %2323 = vmatpush1.bf16.msra.mxu0 %v2042
    %2324 = vmatprep.subr.bf16.mxu0 %v2047
    %2325 = vmatpush1.bf16.msra.mxu0 %v2046
    %2326 = vmatprep.subr.bf16.mxu0 %v2051
    %2327 = vmatpush1.bf16.msra.mxu0 %v2050
    %2328 = vmatprep.subr.bf16.mxu0 0
    %2329 = vmatpush1.bf16.msra.mxu0 0
    %2330 = vmatprep.subr.bf16.mxu0 0
    %2331 = vmatpush1.bf16.msra.mxu0 0
    %2332 = vmatprep.subr.bf16.mxu0 0
    %2333 = vmatpush1.bf16.msra.mxu0 0
    %2334 = vmatprep.subr.bf16.mxu0 0
    %2335 = vmatpush1.bf16.msra.mxu0 0
    %2336 = vmatprep.subr.bf16.mxu0 0
    %2337 = vmatpush1.bf16.msra.mxu0 0
    %2338 = vmatprep.subr.bf16.mxu0 0
    %2339 = vmatpush1.bf16.msra.mxu0 0
    %2340 = vmatprep.subr.bf16.mxu0 0
    %2341 = vmatpush1.bf16.msra.mxu0 0
    %2342 = vmatprep.subr.bf16.mxu0 0
    %2343 = vmatpush1.bf16.msra.mxu0 0
    %2344 = vmatprep.mubr.bf16.mxu0 0
    %2345 = vmatmul.mubr.bf16.gmra.mrb[0].mxu0 %v2311
    %v2346 = vpop.f32.mrb[0].mxu0
    %v2347 = vadd.f32 0.0, %v2346
    %v2348 = vpop.f32.mrb[0].mxu0
    %v2349 = vadd.f32 0.0, %v2348
    %v2350 = vpop.f32.mrb[0].mxu0
    %v2351 = vpop.f32.mrb[0].mxu0
    %2352 = vdwg.mxu0
    %2353 = vmatprep.subr.bf16.mxu0 %v2025
    %2354 = vmatpush1.bf16.msra.mxu0 %v2024
    %2355 = vmatprep.subr.bf16.mxu0 %v2029
    %2356 = vmatpush1.bf16.msra.mxu0 %v2028
    %2357 = vmatprep.subr.bf16.mxu0 %v2033
    %2358 = vmatpush1.bf16.msra.mxu0 %v2032
    %2359 = vmatprep.subr.bf16.mxu0 %v2037
    %2360 = vmatpush1.bf16.msra.mxu0 %v2036
    %2361 = vmatprep.subr.bf16.mxu0 %v2041
    %2362 = vmatpush1.bf16.msra.mxu0 %v2040
    %2363 = vmatprep.subr.bf16.mxu0 %v2045
    %2364 = vmatpush1.bf16.msra.mxu0 %v2044
    %2365 = vmatprep.subr.bf16.mxu0 %v2049
    %2366 = vmatpush1.bf16.msra.mxu0 %v2048
    %2367 = vmatprep.subr.bf16.mxu0 %v2053
    %2368 = vmatpush1.bf16.msra.mxu0 %v2052
    %2369 = vmatprep.subr.bf16.mxu0 0
    %2370 = vmatpush1.bf16.msra.mxu0 0
    %2371 = vmatprep.subr.bf16.mxu0 0
    %2372 = vmatpush1.bf16.msra.mxu0 0
    %2373 = vmatprep.subr.bf16.mxu0 0
    %2374 = vmatpush1.bf16.msra.mxu0 0
    %2375 = vmatprep.subr.bf16.mxu0 0
    %2376 = vmatpush1.bf16.msra.mxu0 0
    %2377 = vmatprep.subr.bf16.mxu0 0
    %2378 = vmatpush1.bf16.msra.mxu0 0
    %2379 = vmatprep.subr.bf16.mxu0 0
    %2380 = vmatpush1.bf16.msra.mxu0 0
    %2381 = vmatprep.subr.bf16.mxu0 0
    %2382 = vmatpush1.bf16.msra.mxu0 0
    %2383 = vmatprep.subr.bf16.mxu0 0
    %2384 = vmatpush1.bf16.msra.mxu0 0
    %2385 = vmatprep.mubr.bf16.mxu0 0
    %2386 = vmatmul.mubr.bf16.gmra.mrb[0].mxu0 %v2311
    %v2387 = vpop.f32.mrb[0].mxu0
    %v2388 = vadd.f32 0.0, %v2387
    %v2389 = vpop.f32.mrb[0].mxu0
    %v2390 = vadd.f32 0.0, %v2389
    %v2391 = vpop.f32.mrb[0].mxu0
    %v2392 = vpop.f32.mrb[0].mxu0
    %2393 = vdwg.mxu0
    %v2394 = vadd.f32 %v1879, %v2347
    %v2395 = vadd.f32 %v1881, %v2349
    %v2396 = vadd.f32 %v1920, %v2388
    %v2397 = vadd.f32 %v1922, %v2390
    %v2398 = vxor.u32 %v2394, 2147483648
    %v2399 = vxor.u32 %v2395, 2147483648
    %v2400 = vxor.u32 %v2396, 2147483648
    %v2401 = vmul.f32 %v2398, 1.442695
    %v2402 = vpow.pop %v2401
    %v2403 = vmul.f32 %v2399, 1.442695
    %v2404 = vpow.pop %v2403
    %v2405 = vmul.f32 %v2400, 1.442695
    %v2406 = vpow.pop %v2405
    %v2407 = vadd.f32 %v2402, 1.0
    %v2408 = vadd.f32 %v2404, 1.0
    %v2409 = vadd.f32 %v2406, 1.0
    %v2410 = vrcp.pop %v2407
    %v2411 = vmul.f32 1.0, %v2410
    %v2412 = vrcp.pop %v2408
    %v2413 = vmul.f32 1.0, %v2412
    %v2414 = vrcp.pop %v2409
    %v2415 = vmul.f32 1.0, %v2414
    %v2416 = vtanh.pop %v2397
    %v2417 = vmul.f32 %v2413, %v2306
    %v2418 = vmul.f32 %v2411, %v2416
    %v2419 = vadd.f32 %v2417, %v2418
    %v2420 = vtanh.pop %v2419
    %v2421 = vmul.f32 %v2415, %v2420
    %2422 = vst [vmem:[#allocation4 + $0x2] sm:$0x1] %v2421
    %2423 = vst [vmem:[#allocation4 + $0x9] sm:$0x2] %v2421
    %v2424 = vpack.c.bf16 %v2421, %v2421
    %2425 = vmatprep.subr.bf16.mxu0 %v2023
    %2426 = vmatpush1.bf16.msra.mxu0 %v2022
    %2427 = vmatprep.subr.bf16.mxu0 %v2027
    %2428 = vmatpush1.bf16.msra.mxu0 %v2026
    %2429 = vmatprep.subr.bf16.mxu0 %v2031
    %2430 = vmatpush1.bf16.msra.mxu0 %v2030
    %2431 = vmatprep.subr.bf16.mxu0 %v2035
    %2432 = vmatpush1.bf16.msra.mxu0 %v2034
    %2433 = vmatprep.subr.bf16.mxu0 %v2039
    %2434 = vmatpush1.bf16.msra.mxu0 %v2038
    %2435 = vmatprep.subr.bf16.mxu0 %v2043
    %2436 = vmatpush1.bf16.msra.mxu0 %v2042
    %2437 = vmatprep.subr.bf16.mxu0 %v2047
    %2438 = vmatpush1.bf16.msra.mxu0 %v2046
    %2439 = vmatprep.subr.bf16.mxu0 %v2051
    %2440 = vmatpush1.bf16.msra.mxu0 %v2050
    %2441 = vmatprep.subr.bf16.mxu0 0
    %2442 = vmatpush1.bf16.msra.mxu0 0
    %2443 = vmatprep.subr.bf16.mxu0 0
    %2444 = vmatpush1.bf16.msra.mxu0 0
    %2445 = vmatprep.subr.bf16.mxu0 0
    %2446 = vmatpush1.bf16.msra.mxu0 0
    %2447 = vmatprep.subr.bf16.mxu0 0
    %2448 = vmatpush1.bf16.msra.mxu0 0
    %2449 = vmatprep.subr.bf16.mxu0 0
    %2450 = vmatpush1.bf16.msra.mxu0 0
    %2451 = vmatprep.subr.bf16.mxu0 0
    %2452 = vmatpush1.bf16.msra.mxu0 0
    %2453 = vmatprep.subr.bf16.mxu0 0
    %2454 = vmatpush1.bf16.msra.mxu0 0
    %2455 = vmatprep.subr.bf16.mxu0 0
    %2456 = vmatpush1.bf16.msra.mxu0 0
    %2457 = vmatprep.mubr.bf16.mxu0 0
    %2458 = vmatmul.mubr.bf16.gmra.mrb[0].mxu0 %v2424
    %v2459 = vpop.f32.mrb[0].mxu0
    %v2460 = vadd.f32 0.0, %v2459
    %v2461 = vpop.f32.mrb[0].mxu0
    %v2462 = vadd.f32 0.0, %v2461
    %v2463 = vpop.f32.mrb[0].mxu0
    %v2464 = vpop.f32.mrb[0].mxu0
    %2465 = vdwg.mxu0
    %2466 = vmatprep.subr.bf16.mxu0 %v2025
    %2467 = vmatpush1.bf16.msra.mxu0 %v2024
    %2468 = vmatprep.subr.bf16.mxu0 %v2029
    %2469 = vmatpush1.bf16.msra.mxu0 %v2028
    %2470 = vmatprep.subr.bf16.mxu0 %v2033
    %2471 = vmatpush1.bf16.msra.mxu0 %v2032
    %2472 = vmatprep.subr.bf16.mxu0 %v2037
    %2473 = vmatpush1.bf16.msra.mxu0 %v2036
    %2474 = vmatprep.subr.bf16.mxu0 %v2041
    %2475 = vmatpush1.bf16.msra.mxu0 %v2040
    %2476 = vmatprep.subr.bf16.mxu0 %v2045
    %2477 = vmatpush1.bf16.msra.mxu0 %v2044
    %2478 = vmatprep.subr.bf16.mxu0 %v2049
    %2479 = vmatpush1.bf16.msra.mxu0 %v2048
    %2480 = vmatprep.subr.bf16.mxu0 %v2053
    %2481 = vmatpush1.bf16.msra.mxu0 %v2052
    %2482 = vmatprep.subr.bf16.mxu0 0
    %2483 = vmatpush1.bf16.msra.mxu0 0
    %2484 = vmatprep.subr.bf16.mxu0 0
    %2485 = vmatpush1.bf16.msra.mxu0 0
    %2486 = vmatprep.subr.bf16.mxu0 0
    %2487 = vmatpush1.bf16.msra.mxu0 0
    %2488 = vmatprep.subr.bf16.mxu0 0
    %2489 = vmatpush1.bf16.msra.mxu0 0
    %2490 = vmatprep.subr.bf16.mxu0 0
    %2491 = vmatpush1.bf16.msra.mxu0 0
    %2492 = vmatprep.subr.bf16.mxu0 0
    %2493 = vmatpush1.bf16.msra.mxu0 0
    %2494 = vmatprep.subr.bf16.mxu0 0
    %2495 = vmatpush1.bf16.msra.mxu0 0
    %2496 = vmatprep.subr.bf16.mxu0 0
    %2497 = vmatpush1.bf16.msra.mxu0 0
    %2498 = vmatprep.mubr.bf16.mxu0 0
    %2499 = vmatmul.mubr.bf16.gmra.mrb[0].mxu0 %v2424
    %v2500 = vpop.f32.mrb[0].mxu0
    %v2501 = vadd.f32 0.0, %v2500
    %v2502 = vpop.f32.mrb[0].mxu0
    %v2503 = vadd.f32 0.0, %v2502
    %v2504 = vpop.f32.mrb[0].mxu0
    %v2505 = vpop.f32.mrb[0].mxu0
    %2506 = vdwg.mxu0
    %v2507 = vadd.f32 %v1879, %v2460
    %v2508 = vadd.f32 %v1881, %v2462
    %v2509 = vadd.f32 %v1920, %v2501
    %v2510 = vadd.f32 %v1922, %v2503
    %v2511 = vxor.u32 %v2507, 2147483648
    %v2512 = vxor.u32 %v2508, 2147483648
    %v2513 = vxor.u32 %v2509, 2147483648
    %v2514 = vmul.f32 %v2511, 1.442695
    %v2515 = vpow.pop %v2514
    %v2516 = vmul.f32 %v2512, 1.442695
    %v2517 = vpow.pop %v2516
    %v2518 = vmul.f32 %v2513, 1.442695
    %v2519 = vpow.pop %v2518
    %v2520 = vadd.f32 %v2515, 1.0
    %v2521 = vadd.f32 %v2517, 1.0
    %v2522 = vadd.f32 %v2519, 1.0
    %v2523 = vrcp.pop %v2520
    %v2524 = vmul.f32 1.0, %v2523
    %v2525 = vrcp.pop %v2521
    %v2526 = vmul.f32 1.0, %v2525
    %v2527 = vrcp.pop %v2522
    %v2528 = vmul.f32 1.0, %v2527
    %v2529 = vtanh.pop %v2510
    %v2530 = vmul.f32 %v2526, %v2419
    %v2531 = vmul.f32 %v2524, %v2529
    %v2532 = vadd.f32 %v2530, %v2531
    %v2533 = vtanh.pop %v2532
    %v2534 = vmul.f32 %v2528, %v2533
    %2535 = vst [vmem:[#allocation4 + $0x3] sm:$0x1] %v2534
    %2536 = vst [vmem:[#allocation4 + $0xa] sm:$0x2] %v2534
    %v2537 = vpack.c.bf16 %v2534, %v2534
    %2538 = vmatprep.subr.bf16.mxu0 %v2023
    %2539 = vmatpush1.bf16.msra.mxu0 %v2022
    %2540 = vmatprep.subr.bf16.mxu0 %v2027
    %2541 = vmatpush1.bf16.msra.mxu0 %v2026
    %2542 = vmatprep.subr.bf16.mxu0 %v2031
    %2543 = vmatpush1.bf16.msra.mxu0 %v2030
    %2544 = vmatprep.subr.bf16.mxu0 %v2035
    %2545 = vmatpush1.bf16.msra.mxu0 %v2034
    %2546 = vmatprep.subr.bf16.mxu0 %v2039
    %2547 = vmatpush1.bf16.msra.mxu0 %v2038
    %2548 = vmatprep.subr.bf16.mxu0 %v2043
    %2549 = vmatpush1.bf16.msra.mxu0 %v2042
    %2550 = vmatprep.subr.bf16.mxu0 %v2047
    %2551 = vmatpush1.bf16.msra.mxu0 %v2046
    %2552 = vmatprep.subr.bf16.mxu0 %v2051
    %2553 = vmatpush1.bf16.msra.mxu0 %v2050
    %2554 = vmatprep.subr.bf16.mxu0 0
    %2555 = vmatpush1.bf16.msra.mxu0 0
    %2556 = vmatprep.subr.bf16.mxu0 0
    %2557 = vmatpush1.bf16.msra.mxu0 0
    %2558 = vmatprep.subr.bf16.mxu0 0
    %2559 = vmatpush1.bf16.msra.mxu0 0
    %2560 = vmatprep.subr.bf16.mxu0 0
    %2561 = vmatpush1.bf16.msra.mxu0 0
    %2562 = vmatprep.subr.bf16.mxu0 0
    %2563 = vmatpush1.bf16.msra.mxu0 0
    %2564 = vmatprep.subr.bf16.mxu0 0
    %2565 = vmatpush1.bf16.msra.mxu0 0
    %2566 = vmatprep.subr.bf16.mxu0 0
    %2567 = vmatpush1.bf16.msra.mxu0 0
    %2568 = vmatprep.subr.bf16.mxu0 0
    %2569 = vmatpush1.bf16.msra.mxu0 0
    %2570 = vmatprep.mubr.bf16.mxu0 0
    %2571 = vmatmul.mubr.bf16.gmra.mrb[0].mxu0 %v2537
    %v2572 = vpop.f32.mrb[0].mxu0
    %v2573 = vadd.f32 0.0, %v2572
    %v2574 = vpop.f32.mrb[0].mxu0
    %v2575 = vadd.f32 0.0, %v2574
    %v2576 = vpop.f32.mrb[0].mxu0
    %v2577 = vpop.f32.mrb[0].mxu0
    %2578 = vdwg.mxu0
    %2579 = vmatprep.subr.bf16.mxu0 %v2025
    %2580 = vmatpush1.bf16.msra.mxu0 %v2024
    %2581 = vmatprep.subr.bf16.mxu0 %v2029
    %2582 = vmatpush1.bf16.msra.mxu0 %v2028
    %2583 = vmatprep.subr.bf16.mxu0 %v2033
    %2584 = vmatpush1.bf16.msra.mxu0 %v2032
    %2585 = vmatprep.subr.bf16.mxu0 %v2037
    %2586 = vmatpush1.bf16.msra.mxu0 %v2036
    %2587 = vmatprep.subr.bf16.mxu0 %v2041
    %2588 = vmatpush1.bf16.msra.mxu0 %v2040
    %2589 = vmatprep.subr.bf16.mxu0 %v2045
    %2590 = vmatpush1.bf16.msra.mxu0 %v2044
    %2591 = vmatprep.subr.bf16.mxu0 %v2049
    %2592 = vmatpush1.bf16.msra.mxu0 %v2048
    %2593 = vmatprep.subr.bf16.mxu0 %v2053
    %2594 = vmatpush1.bf16.msra.mxu0 %v2052
    %2595 = vmatprep.subr.bf16.mxu0 0
    %2596 = vmatpush1.bf16.msra.mxu0 0
    %2597 = vmatprep.subr.bf16.mxu0 0
    %2598 = vmatpush1.bf16.msra.mxu0 0
    %2599 = vmatprep.subr.bf16.mxu0 0
    %2600 = vmatpush1.bf16.msra.mxu0 0
    %2601 = vmatprep.subr.bf16.mxu0 0
    %2602 = vmatpush1.bf16.msra.mxu0 0
    %2603 = vmatprep.subr.bf16.mxu0 0
    %2604 = vmatpush1.bf16.msra.mxu0 0
    %2605 = vmatprep.subr.bf16.mxu0 0
    %2606 = vmatpush1.bf16.msra.mxu0 0
    %2607 = vmatprep.subr.bf16.mxu0 0
    %2608 = vmatpush1.bf16.msra.mxu0 0
    %2609 = vmatprep.subr.bf16.mxu0 0
    %2610 = vmatpush1.bf16.msra.mxu0 0
    %2611 = vmatprep.mubr.bf16.mxu0 0
    %2612 = vmatmul.mubr.bf16.gmra.mrb[0].mxu0 %v2537
    %v2613 = vpop.f32.mrb[0].mxu0
    %v2614 = vadd.f32 0.0, %v2613
    %v2615 = vpop.f32.mrb[0].mxu0
    %v2616 = vadd.f32 0.0, %v2615
    %v2617 = vpop.f32.mrb[0].mxu0
    %v2618 = vpop.f32.mrb[0].mxu0
    %2619 = vdwg.mxu0
    %v2620 = vadd.f32 %v1879, %v2573
    %v2621 = vadd.f32 %v1881, %v2575
    %v2622 = vadd.f32 %v1920, %v2614
    %v2623 = vadd.f32 %v1922, %v2616
    %v2624 = vxor.u32 %v2620, 2147483648
    %v2625 = vxor.u32 %v2621, 2147483648
    %v2626 = vxor.u32 %v2622, 2147483648
    %v2627 = vmul.f32 %v2624, 1.442695
    %v2628 = vpow.pop %v2627
    %v2629 = vmul.f32 %v2625, 1.442695
    %v2630 = vpow.pop %v2629
    %v2631 = vmul.f32 %v2626, 1.442695
    %v2632 = vpow.pop %v2631
    %v2633 = vadd.f32 %v2628, 1.0
    %v2634 = vadd.f32 %v2630, 1.0
    %v2635 = vadd.f32 %v2632, 1.0
    %v2636 = vrcp.pop %v2633
    %v2637 = vmul.f32 1.0, %v2636
    %v2638 = vrcp.pop %v2634
    %v2639 = vmul.f32 1.0, %v2638
    %v2640 = vrcp.pop %v2635
    %v2641 = vmul.f32 1.0, %v2640
    %v2642 = vtanh.pop %v2623
    %v2643 = vmul.f32 %v2639, %v2532
    %v2644 = vmul.f32 %v2637, %v2642
    %v2645 = vadd.f32 %v2643, %v2644
    %v2646 = vtanh.pop %v2645
    %v2647 = vmul.f32 %v2641, %v2646
    %2648 = vst [vmem:[#allocation4 + $0x4] sm:$0x1] %v2647
    %2649 = vst [vmem:[#allocation4 + $0xb] sm:$0x2] %v2647
    %v2650 = vpack.c.bf16 %v2647, %v2647
    %2651 = vmatprep.subr.bf16.mxu0 %v2023
    %2652 = vmatpush1.bf16.msra.mxu0 %v2022
    %2653 = vmatprep.subr.bf16.mxu0 %v2027
    %2654 = vmatpush1.bf16.msra.mxu0 %v2026
    %2655 = vmatprep.subr.bf16.mxu0 %v2031
    %2656 = vmatpush1.bf16.msra.mxu0 %v2030
    %2657 = vmatprep.subr.bf16.mxu0 %v2035
    %2658 = vmatpush1.bf16.msra.mxu0 %v2034
    %2659 = vmatprep.subr.bf16.mxu0 %v2039
    %2660 = vmatpush1.bf16.msra.mxu0 %v2038
    %2661 = vmatprep.subr.bf16.mxu0 %v2043
    %2662 = vmatpush1.bf16.msra.mxu0 %v2042
    %2663 = vmatprep.subr.bf16.mxu0 %v2047
    %2664 = vmatpush1.bf16.msra.mxu0 %v2046
    %2665 = vmatprep.subr.bf16.mxu0 %v2051
    %2666 = vmatpush1.bf16.msra.mxu0 %v2050
    %2667 = vmatprep.subr.bf16.mxu0 0
    %2668 = vmatpush1.bf16.msra.mxu0 0
    %2669 = vmatprep.subr.bf16.mxu0 0
    %2670 = vmatpush1.bf16.msra.mxu0 0
    %2671 = vmatprep.subr.bf16.mxu0 0
    %2672 = vmatpush1.bf16.msra.mxu0 0
    %2673 = vmatprep.subr.bf16.mxu0 0
    %2674 = vmatpush1.bf16.msra.mxu0 0
    %2675 = vmatprep.subr.bf16.mxu0 0
    %2676 = vmatpush1.bf16.msra.mxu0 0
    %2677 = vmatprep.subr.bf16.mxu0 0
    %2678 = vmatpush1.bf16.msra.mxu0 0
    %2679 = vmatprep.subr.bf16.mxu0 0
    %2680 = vmatpush1.bf16.msra.mxu0 0
    %2681 = vmatprep.subr.bf16.mxu0 0
    %2682 = vmatpush1.bf16.msra.mxu0 0
    %2683 = vmatprep.mubr.bf16.mxu0 0
    %2684 = vmatmul.mubr.bf16.gmra.mrb[0].mxu0 %v2650
    %v2685 = vpop.f32.mrb[0].mxu0
    %v2686 = vadd.f32 0.0, %v2685
    %v2687 = vpop.f32.mrb[0].mxu0
    %v2688 = vadd.f32 0.0, %v2687
    %v2689 = vpop.f32.mrb[0].mxu0
    %v2690 = vpop.f32.mrb[0].mxu0
    %2691 = vdwg.mxu0
    %2692 = vmatprep.subr.bf16.mxu0 %v2025
    %2693 = vmatpush1.bf16.msra.mxu0 %v2024
    %2694 = vmatprep.subr.bf16.mxu0 %v2029
    %2695 = vmatpush1.bf16.msra.mxu0 %v2028
    %2696 = vmatprep.subr.bf16.mxu0 %v2033
    %2697 = vmatpush1.bf16.msra.mxu0 %v2032
    %2698 = vmatprep.subr.bf16.mxu0 %v2037
    %2699 = vmatpush1.bf16.msra.mxu0 %v2036
    %2700 = vmatprep.subr.bf16.mxu0 %v2041
    %2701 = vmatpush1.bf16.msra.mxu0 %v2040
    %2702 = vmatprep.subr.bf16.mxu0 %v2045
    %2703 = vmatpush1.bf16.msra.mxu0 %v2044
    %2704 = vmatprep.subr.bf16.mxu0 %v2049
    %2705 = vmatpush1.bf16.msra.mxu0 %v2048
    %2706 = vmatprep.subr.bf16.mxu0 %v2053
    %2707 = vmatpush1.bf16.msra.mxu0 %v2052
    %2708 = vmatprep.subr.bf16.mxu0 0
    %2709 = vmatpush1.bf16.msra.mxu0 0
    %2710 = vmatprep.subr.bf16.mxu0 0
    %2711 = vmatpush1.bf16.msra.mxu0 0
    %2712 = vmatprep.subr.bf16.mxu0 0
    %2713 = vmatpush1.bf16.msra.mxu0 0
    %2714 = vmatprep.subr.bf16.mxu0 0
    %2715 = vmatpush1.bf16.msra.mxu0 0
    %2716 = vmatprep.subr.bf16.mxu0 0
    %2717 = vmatpush1.bf16.msra.mxu0 0
    %2718 = vmatprep.subr.bf16.mxu0 0
    %2719 = vmatpush1.bf16.msra.mxu0 0
    %2720 = vmatprep.subr.bf16.mxu0 0
    %2721 = vmatpush1.bf16.msra.mxu0 0
    %2722 = vmatprep.subr.bf16.mxu0 0
    %2723 = vmatpush1.bf16.msra.mxu0 0
    %2724 = vmatprep.mubr.bf16.mxu0 0
    %2725 = vmatmul.mubr.bf16.gmra.mrb[0].mxu0 %v2650
    %v2726 = vpop.f32.mrb[0].mxu0
    %v2727 = vadd.f32 0.0, %v2726
    %v2728 = vpop.f32.mrb[0].mxu0
    %v2729 = vadd.f32 0.0, %v2728
    %v2730 = vpop.f32.mrb[0].mxu0
    %v2731 = vpop.f32.mrb[0].mxu0
    %2732 = vdwg.mxu0
    %v2733 = vadd.f32 %v1879, %v2686
    %v2734 = vadd.f32 %v1881, %v2688
    %v2735 = vadd.f32 %v1920, %v2727
    %v2736 = vadd.f32 %v1922, %v2729
    %v2737 = vxor.u32 %v2733, 2147483648
    %v2738 = vxor.u32 %v2734, 2147483648
    %v2739 = vxor.u32 %v2735, 2147483648
    %v2740 = vmul.f32 %v2737, 1.442695
    %v2741 = vpow.pop %v2740
    %v2742 = vmul.f32 %v2738, 1.442695
    %v2743 = vpow.pop %v2742
    %v2744 = vmul.f32 %v2739, 1.442695
    %v2745 = vpow.pop %v2744
    %v2746 = vadd.f32 %v2741, 1.0
    %v2747 = vadd.f32 %v2743, 1.0
    %v2748 = vadd.f32 %v2745, 1.0
    %v2749 = vrcp.pop %v2746
    %v2750 = vmul.f32 1.0, %v2749
    %v2751 = vrcp.pop %v2747
    %v2752 = vmul.f32 1.0, %v2751
    %v2753 = vrcp.pop %v2748
    %v2754 = vmul.f32 1.0, %v2753
    %v2755 = vtanh.pop %v2736
    %v2756 = vmul.f32 %v2752, %v2645
    %v2757 = vmul.f32 %v2750, %v2755
    %v2758 = vadd.f32 %v2756, %v2757
    %v2759 = vtanh.pop %v2758
    %v2760 = vmul.f32 %v2754, %v2759
    %2761 = vst [vmem:[#allocation4 + $0x5] sm:$0x1] %v2760
    %2762 = vst [vmem:[#allocation4 + $0xc] sm:$0x2] %v2760
    %v2763 = vpack.c.bf16 %v2760, %v2760
    %2764 = vmatprep.subr.bf16.mxu0 %v2023
    %2765 = vmatpush1.bf16.msra.mxu0 %v2022
    %2766 = vmatprep.subr.bf16.mxu0 %v2027
    %2767 = vmatpush1.bf16.msra.mxu0 %v2026
    %2768 = vmatprep.subr.bf16.mxu0 %v2031
    %2769 = vmatpush1.bf16.msra.mxu0 %v2030
    %2770 = vmatprep.subr.bf16.mxu0 %v2035
    %2771 = vmatpush1.bf16.msra.mxu0 %v2034
    %2772 = vmatprep.subr.bf16.mxu0 %v2039
    %2773 = vmatpush1.bf16.msra.mxu0 %v2038
    %2774 = vmatprep.subr.bf16.mxu0 %v2043
    %2775 = vmatpush1.bf16.msra.mxu0 %v2042
    %2776 = vmatprep.subr.bf16.mxu0 %v2047
    %2777 = vmatpush1.bf16.msra.mxu0 %v2046
    %2778 = vmatprep.subr.bf16.mxu0 %v2051
    %2779 = vmatpush1.bf16.msra.mxu0 %v2050
    %2780 = vmatprep.subr.bf16.mxu0 0
    %2781 = vmatpush1.bf16.msra.mxu0 0
    %2782 = vmatprep.subr.bf16.mxu0 0
    %2783 = vmatpush1.bf16.msra.mxu0 0
    %2784 = vmatprep.subr.bf16.mxu0 0
    %2785 = vmatpush1.bf16.msra.mxu0 0
    %2786 = vmatprep.subr.bf16.mxu0 0
    %2787 = vmatpush1.bf16.msra.mxu0 0
    %2788 = vmatprep.subr.bf16.mxu0 0
    %2789 = vmatpush1.bf16.msra.mxu0 0
    %2790 = vmatprep.subr.bf16.mxu0 0
    %2791 = vmatpush1.bf16.msra.mxu0 0
    %2792 = vmatprep.subr.bf16.mxu0 0
    %2793 = vmatpush1.bf16.msra.mxu0 0
    %2794 = vmatprep.subr.bf16.mxu0 0
    %2795 = vmatpush1.bf16.msra.mxu0 0
    %2796 = vmatprep.mubr.bf16.mxu0 0
    %2797 = vmatmul.mubr.bf16.gmra.mrb[0].mxu0 %v2763
    %v2798 = vpop.f32.mrb[0].mxu0
    %v2799 = vadd.f32 0.0, %v2798
    %v2800 = vpop.f32.mrb[0].mxu0
    %v2801 = vadd.f32 0.0, %v2800
    %v2802 = vpop.f32.mrb[0].mxu0
    %v2803 = vpop.f32.mrb[0].mxu0
    %2804 = vdwg.mxu0
    %2805 = vmatprep.subr.bf16.mxu0 %v2025
    %2806 = vmatpush1.bf16.msra.mxu0 %v2024
    %2807 = vmatprep.subr.bf16.mxu0 %v2029
    %2808 = vmatpush1.bf16.msra.mxu0 %v2028
    %2809 = vmatprep.subr.bf16.mxu0 %v2033
    %2810 = vmatpush1.bf16.msra.mxu0 %v2032
    %2811 = vmatprep.subr.bf16.mxu0 %v2037
    %2812 = vmatpush1.bf16.msra.mxu0 %v2036
    %2813 = vmatprep.subr.bf16.mxu0 %v2041
    %2814 = vmatpush1.bf16.msra.mxu0 %v2040
    %2815 = vmatprep.subr.bf16.mxu0 %v2045
    %2816 = vmatpush1.bf16.msra.mxu0 %v2044
    %2817 = vmatprep.subr.bf16.mxu0 %v2049
    %2818 = vmatpush1.bf16.msra.mxu0 %v2048
    %2819 = vmatprep.subr.bf16.mxu0 %v2053
    %2820 = vmatpush1.bf16.msra.mxu0 %v2052
    %2821 = vmatprep.subr.bf16.mxu0 0
    %2822 = vmatpush1.bf16.msra.mxu0 0
    %2823 = vmatprep.subr.bf16.mxu0 0
    %2824 = vmatpush1.bf16.msra.mxu0 0
    %2825 = vmatprep.subr.bf16.mxu0 0
    %2826 = vmatpush1.bf16.msra.mxu0 0
    %2827 = vmatprep.subr.bf16.mxu0 0
    %2828 = vmatpush1.bf16.msra.mxu0 0
    %2829 = vmatprep.subr.bf16.mxu0 0
    %2830 = vmatpush1.bf16.msra.mxu0 0
    %2831 = vmatprep.subr.bf16.mxu0 0
    %2832 = vmatpush1.bf16.msra.mxu0 0
    %2833 = vmatprep.subr.bf16.mxu0 0
    %2834 = vmatpush1.bf16.msra.mxu0 0
    %2835 = vmatprep.subr.bf16.mxu0 0
    %2836 = vmatpush1.bf16.msra.mxu0 0
    %2837 = vmatprep.mubr.bf16.mxu0 0
    %2838 = vmatmul.mubr.bf16.gmra.mrb[0].mxu0 %v2763
    %v2839 = vpop.f32.mrb[0].mxu0
    %v2840 = vadd.f32 0.0, %v2839
    %v2841 = vpop.f32.mrb[0].mxu0
    %v2842 = vadd.f32 0.0, %v2841
    %v2843 = vpop.f32.mrb[0].mxu0
    %v2844 = vpop.f32.mrb[0].mxu0
    %2845 = vdwg.mxu0
    %v2846 = vadd.f32 %v1879, %v2799
    %v2847 = vadd.f32 %v1881, %v2801
    %v2848 = vadd.f32 %v1920, %v2840
    %v2849 = vadd.f32 %v1922, %v2842
    %v2850 = vxor.u32 %v2846, 2147483648
    %v2851 = vxor.u32 %v2847, 2147483648
    %v2852 = vxor.u32 %v2848, 2147483648
    %v2853 = vmul.f32 %v2850, 1.442695
    %v2854 = vpow.pop %v2853
    %v2855 = vmul.f32 %v2851, 1.442695
    %v2856 = vpow.pop %v2855
    %v2857 = vmul.f32 %v2852, 1.442695
    %v2858 = vpow.pop %v2857
    %v2859 = vadd.f32 %v2854, 1.0
    %v2860 = vadd.f32 %v2856, 1.0
    %v2861 = vadd.f32 %v2858, 1.0
    %v2862 = vrcp.pop %v2859
    %v2863 = vmul.f32 1.0, %v2862
    %v2864 = vrcp.pop %v2860
    %v2865 = vmul.f32 1.0, %v2864
    %v2866 = vrcp.pop %v2861
    %v2867 = vmul.f32 1.0, %v2866
    %v2868 = vtanh.pop %v2849
    %v2869 = vmul.f32 %v2865, %v2758
    %v2870 = vmul.f32 %v2863, %v2868
    %v2871 = vadd.f32 %v2869, %v2870
    %v2872 = vtanh.pop %v2871
    %v2873 = vmul.f32 %v2867, %v2872
    %2874 = vst [vmem:[#allocation4 + $0x6] sm:$0x1] %v2873
    %2875 = vst [vmem:[#allocation4 + $0xd] sm:$0x2] %v2873
    %v2876 = vpack.c.bf16 %v2873, %v2873
    %2877 = vmatprep.subr.bf16.mxu0 %v2023
    %2878 = vmatpush1.bf16.msra.mxu0 %v2022
    %2879 = vmatprep.subr.bf16.mxu0 %v2027
    %2880 = vmatpush1.bf16.msra.mxu0 %v2026
    %2881 = vmatprep.subr.bf16.mxu0 %v2031
    %2882 = vmatpush1.bf16.msra.mxu0 %v2030
    %2883 = vmatprep.subr.bf16.mxu0 %v2035
    %2884 = vmatpush1.bf16.msra.mxu0 %v2034
    %2885 = vmatprep.subr.bf16.mxu0 %v2039
    %2886 = vmatpush1.bf16.msra.mxu0 %v2038
    %2887 = vmatprep.subr.bf16.mxu0 %v2043
    %2888 = vmatpush1.bf16.msra.mxu0 %v2042
    %2889 = vmatprep.subr.bf16.mxu0 %v2047
    %2890 = vmatpush1.bf16.msra.mxu0 %v2046
    %2891 = vmatprep.subr.bf16.mxu0 %v2051
    %2892 = vmatpush1.bf16.msra.mxu0 %v2050
    %2893 = vmatprep.subr.bf16.mxu0 0
    %2894 = vmatpush1.bf16.msra.mxu0 0
    %2895 = vmatprep.subr.bf16.mxu0 0
    %2896 = vmatpush1.bf16.msra.mxu0 0
    %2897 = vmatprep.subr.bf16.mxu0 0
    %2898 = vmatpush1.bf16.msra.mxu0 0
    %2899 = vmatprep.subr.bf16.mxu0 0
    %2900 = vmatpush1.bf16.msra.mxu0 0
    %2901 = vmatprep.subr.bf16.mxu0 0
    %2902 = vmatpush1.bf16.msra.mxu0 0
    %2903 = vmatprep.subr.bf16.mxu0 0
    %2904 = vmatpush1.bf16.msra.mxu0 0
    %2905 = vmatprep.subr.bf16.mxu0 0
    %2906 = vmatpush1.bf16.msra.mxu0 0
    %2907 = vmatprep.subr.bf16.mxu0 0
    %2908 = vmatpush1.bf16.msra.mxu0 0
    %2909 = vmatprep.mubr.bf16.mxu0 0
    %2910 = vmatmul.mubr.bf16.gmra.mrb[0].mxu0 %v2876
    %v2911 = vpop.f32.mrb[0].mxu0
    %v2912 = vadd.f32 0.0, %v2911
    %v2913 = vpop.f32.mrb[0].mxu0
    %v2914 = vadd.f32 0.0, %v2913
    %v2915 = vpop.f32.mrb[0].mxu0
    %v2916 = vpop.f32.mrb[0].mxu0
    %2917 = vdwg.mxu0
    %2918 = vmatprep.subr.bf16.mxu0 %v2025
    %2919 = vmatpush1.bf16.msra.mxu0 %v2024
    %2920 = vmatprep.subr.bf16.mxu0 %v2029
    %2921 = vmatpush1.bf16.msra.mxu0 %v2028
    %2922 = vmatprep.subr.bf16.mxu0 %v2033
    %2923 = vmatpush1.bf16.msra.mxu0 %v2032
    %2924 = vmatprep.subr.bf16.mxu0 %v2037
    %2925 = vmatpush1.bf16.msra.mxu0 %v2036
    %2926 = vmatprep.subr.bf16.mxu0 %v2041
    %2927 = vmatpush1.bf16.msra.mxu0 %v2040
    %2928 = vmatprep.subr.bf16.mxu0 %v2045
    %2929 = vmatpush1.bf16.msra.mxu0 %v2044
    %2930 = vmatprep.subr.bf16.mxu0 %v2049
    %2931 = vmatpush1.bf16.msra.mxu0 %v2048
    %2932 = vmatprep.subr.bf16.mxu0 %v2053
    %2933 = vmatpush1.bf16.msra.mxu0 %v2052
    %2934 = vmatprep.subr.bf16.mxu0 0
    %2935 = vmatpush1.bf16.msra.mxu0 0
    %2936 = vmatprep.subr.bf16.mxu0 0
    %2937 = vmatpush1.bf16.msra.mxu0 0
    %2938 = vmatprep.subr.bf16.mxu0 0
    %2939 = vmatpush1.bf16.msra.mxu0 0
    %2940 = vmatprep.subr.bf16.mxu0 0
    %2941 = vmatpush1.bf16.msra.mxu0 0
    %2942 = vmatprep.subr.bf16.mxu0 0
    %2943 = vmatpush1.bf16.msra.mxu0 0
    %2944 = vmatprep.subr.bf16.mxu0 0
    %2945 = vmatpush1.bf16.msra.mxu0 0
    %2946 = vmatprep.subr.bf16.mxu0 0
    %2947 = vmatpush1.bf16.msra.mxu0 0
    %2948 = vmatprep.subr.bf16.mxu0 0
    %2949 = vmatpush1.bf16.msra.mxu0 0
    %2950 = vmatprep.mubr.bf16.mxu0 0
    %2951 = vmatmul.mubr.bf16.gmra.mrb[0].mxu0 %v2876
    %v2952 = vpop.f32.mrb[0].mxu0
    %v2953 = vadd.f32 0.0, %v2952
    %v2954 = vpop.f32.mrb[0].mxu0
    %v2955 = vadd.f32 0.0, %v2954
    %v2956 = vpop.f32.mrb[0].mxu0
    %v2957 = vpop.f32.mrb[0].mxu0
    %2958 = vdwg.mxu0
    %v2959 = vadd.f32 %v1879, %v2912
    %v2960 = vadd.f32 %v1881, %v2914
    %v2961 = vadd.f32 %v1920, %v2953
    %v2962 = vadd.f32 %v1922, %v2955
    %v2963 = vxor.u32 %v2959, 2147483648
    %v2964 = vxor.u32 %v2960, 2147483648
    %v2965 = vxor.u32 %v2961, 2147483648
    %v2966 = vmul.f32 %v2963, 1.442695
    %v2967 = vpow.pop %v2966
    %v2968 = vmul.f32 %v2964, 1.442695
    %v2969 = vpow.pop %v2968
    %v2970 = vmul.f32 %v2965, 1.442695
    %v2971 = vpow.pop %v2970
    %v2972 = vadd.f32 %v2967, 1.0
    %v2973 = vadd.f32 %v2969, 1.0
    %v2974 = vadd.f32 %v2971, 1.0
    %v2975 = vrcp.pop %v2972
    %v2976 = vmul.f32 1.0, %v2975
    %v2977 = vrcp.pop %v2973
    %v2978 = vmul.f32 1.0, %v2977
    %v2979 = vrcp.pop %v2974
    %v2980 = vmul.f32 1.0, %v2979
    %v2981 = vtanh.pop %v2962
    %v2982 = vmul.f32 %v2978, %v2871
    %v2983 = vmul.f32 %v2976, %v2981
    %v2984 = vadd.f32 %v2982, %v2983
    %v2985 = vtanh.pop %v2984
    %v2986 = vmul.f32 %v2980, %v2985
    %2987 = vst [vmem:[#allocation4 + $0x7] sm:$0x1] %v2986
    %2988 = vst [vmem:[#allocation4 + $0xe] sm:$0x2] %v2986
    %v2989 = vld [vmem:[#allocation4] sm:$0xff]
    %v2990 = vld [vmem:[#allocation4 + $0x8] sm:$0xff]
    %v2991 = vpack.c.bf16 %v2990, %v2989
    %v2992 = vld [vmem:[#allocation12] sm:$0xff]
    %v2993 = vld [vmem:[#allocation12 + $0x8] sm:$0xff]
    %v2994 = vld [vmem:[#allocation12 + $0x10] sm:$0xff]
    %v2995 = vld [vmem:[#allocation12 + $0x18] sm:$0xff]
    %v2996 = vld [vmem:[#allocation12 + $0x20] sm:$0xff]
    %v2997 = vld [vmem:[#allocation12 + $0x28] sm:$0xff]
    %v2998 = vld [vmem:[#allocation12 + $0x30] sm:$0xff]
    %v2999 = vld [vmem:[#allocation12 + $0x38] sm:$0xff]
    %v3000 = vld [vmem:[#allocation12 + $0x40] sm:$0xff]
    %v3001 = vld [vmem:[#allocation12 + $0x48] sm:$0xff]
    %v3002 = vld [vmem:[#allocation12 + $0x50] sm:$0xff]
    %v3003 = vld [vmem:[#allocation12 + $0x58] sm:$0xff]
    %v3004 = vld [vmem:[#allocation12 + $0x60] sm:$0xff]
    %v3005 = vld [vmem:[#allocation12 + $0x68] sm:$0xff]
    %v3006 = vld [vmem:[#allocation12 + $0x70] sm:$0xff]
    %v3007 = vld [vmem:[#allocation12 + $0x78] sm:$0xff]
    %v3008 = vld [vmem:[%s9] sm:$0x3]
    %v3010 = vlaneseq
    %v3011 = vshrl.u32 %v3010, 7
    %v3012 = vsub.s32 0, %v3011
    %v3013 = vrot.slane %v3008, %v3012
    %v3014 = vlaneseq
    %v3015 = vshrl.u32 %v3014, 7
    %v3016 = vsub.s32 1, %v3015
    %v3017 = vrot.slane %v3008, %v3016
    %v3036 = vunpack.c.l.b16 %v2992
    %v3037 = vunpack.c.h.b16 %v2992
    %v3038 = vunpack.c.l.b16 %v2993
    %v3039 = vunpack.c.h.b16 %v2993
    %v3040 = vunpack.c.l.b16 %v2994
    %v3041 = vunpack.c.h.b16 %v2994
    %v3042 = vunpack.c.l.b16 %v2995
    %v3043 = vunpack.c.h.b16 %v2995
    %v3044 = vunpack.c.l.b16 %v2996
    %v3045 = vunpack.c.h.b16 %v2996
    %v3046 = vunpack.c.l.b16 %v2997
    %v3047 = vunpack.c.h.b16 %v2997
    %v3048 = vunpack.c.l.b16 %v2998
    %v3049 = vunpack.c.h.b16 %v2998
    %v3050 = vunpack.c.l.b16 %v2999
    %v3051 = vunpack.c.h.b16 %v2999
    %v3052 = vunpack.c.l.b16 %v3000
    %v3053 = vunpack.c.h.b16 %v3000
    %v3054 = vunpack.c.l.b16 %v3001
    %v3055 = vunpack.c.h.b16 %v3001
    %v3056 = vunpack.c.l.b16 %v3002
    %v3057 = vunpack.c.h.b16 %v3002
    %v3058 = vunpack.c.l.b16 %v3003
    %v3059 = vunpack.c.h.b16 %v3003
    %v3060 = vunpack.c.l.b16 %v3004
    %v3061 = vunpack.c.h.b16 %v3004
    %v3062 = vunpack.c.l.b16 %v3005
    %v3063 = vunpack.c.h.b16 %v3005
    %v3064 = vunpack.c.l.b16 %v3006
    %v3065 = vunpack.c.h.b16 %v3006
    %v3066 = vunpack.c.l.b16 %v3007
    %v3067 = vunpack.c.h.b16 %v3007
    %v3068 = vpack.c.b16 %v3038, %v3036
    %v3069 = vpack.c.b16 %v3039, %v3037
    %v3070 = vpack.c.b16 %v3042, %v3040
    %v3071 = vpack.c.b16 %v3043, %v3041
    %v3072 = vpack.c.b16 %v3046, %v3044
    %v3073 = vpack.c.b16 %v3047, %v3045
    %v3074 = vpack.c.b16 %v3050, %v3048
    %v3075 = vpack.c.b16 %v3051, %v3049
    %v3076 = vpack.c.b16 %v3054, %v3052
    %v3077 = vpack.c.b16 %v3055, %v3053
    %v3078 = vpack.c.b16 %v3058, %v3056
    %v3079 = vpack.c.b16 %v3059, %v3057
    %v3080 = vpack.c.b16 %v3062, %v3060
    %v3081 = vpack.c.b16 %v3063, %v3061
    %v3082 = vpack.c.b16 %v3066, %v3064
    %v3083 = vpack.c.b16 %v3067, %v3065
    %3100 = vmatprep.subr.bf16.mxu0 %v3069
    %3101 = vmatpush1.bf16.msra.mxu0 %v3068
    %3102 = vmatprep.subr.bf16.mxu0 %v3071
    %3103 = vmatpush1.bf16.msra.mxu0 %v3070
    %3104 = vmatprep.subr.bf16.mxu0 %v3073
    %3105 = vmatpush1.bf16.msra.mxu0 %v3072
    %3106 = vmatprep.subr.bf16.mxu0 %v3075
    %3107 = vmatpush1.bf16.msra.mxu0 %v3074
    %3108 = vmatprep.subr.bf16.mxu0 %v3077
    %3109 = vmatpush1.bf16.msra.mxu0 %v3076
    %3110 = vmatprep.subr.bf16.mxu0 %v3079
    %3111 = vmatpush1.bf16.msra.mxu0 %v3078
    %3112 = vmatprep.subr.bf16.mxu0 %v3081
    %3113 = vmatpush1.bf16.msra.mxu0 %v3080
    %3114 = vmatprep.subr.bf16.mxu0 %v3083
    %3115 = vmatpush1.bf16.msra.mxu0 %v3082
    %3116 = vmatprep.subr.bf16.mxu0 0
    %3117 = vmatpush1.bf16.msra.mxu0 0
    %3118 = vmatprep.subr.bf16.mxu0 0
    %3119 = vmatpush1.bf16.msra.mxu0 0
    %3120 = vmatprep.subr.bf16.mxu0 0
    %3121 = vmatpush1.bf16.msra.mxu0 0
    %3122 = vmatprep.subr.bf16.mxu0 0
    %3123 = vmatpush1.bf16.msra.mxu0 0
    %3124 = vmatprep.subr.bf16.mxu0 0
    %3125 = vmatpush1.bf16.msra.mxu0 0
    %3126 = vmatprep.subr.bf16.mxu0 0
    %3127 = vmatpush1.bf16.msra.mxu0 0
    %3128 = vmatprep.subr.bf16.mxu0 0
    %3129 = vmatpush1.bf16.msra.mxu0 0
    %3130 = vmatprep.subr.bf16.mxu0 0
    %3131 = vmatpush1.bf16.msra.mxu0 0
    %3132 = vmatprep.mubr.bf16.mxu0 0
    %3133 = vmatmul.mubr.bf16.gmra.mrb[0].mxu0 %v2991
    %v3134 = vpop.f32.mrb[0].mxu0
    %v3135 = vadd.f32 %v3013, %v3134
    %v3136 = vpop.f32.mrb[0].mxu0
    %v3137 = vadd.f32 %v3017, %v3136
    %v3138 = vpop.f32.mrb[0].mxu0
    %v3139 = vadd.f32 %v3013, %v3138
    %v3140 = vpop.f32.mrb[0].mxu0
    %v3141 = vadd.f32 %v3017, %v3140
    %3142 = vdwg.mxu0
    %3143 = vst [vmem:[#allocation13] sm:$0xff] %v3135
    %3144 = vst [vmem:[#allocation13 + $0x8] sm:$0xff] %v3137
    %3145 = vst [vmem:[#allocation13 + $0x10] sm:$0xff] %v3139
    %3146 = vst [vmem:[#allocation13 + $0x18] sm:$0xff] %v3141
    // Predicated region
    $region58: #{tpu_custom_call.1} parent=1 // pred_check
      _
    $region59: #{tpu_custom_call.1} parent=1 // pred_check_branch
      %3148 = sbr.rel (0) target = $region61
    $region60: #{tpu_custom_call.1} parent=1 // pred_region
      %s3150 = ssub.s32 512, 512
      %3151 = vsyncadd [#allocation7], %s3150
      %s3152 = sshll.u32 [#allocation13], 4
      %s3153 = int_to_ptr.vmem [resolvable:$true] %s3152
      %3158 = dma.vmem_to_hbm [thread:$0]  %s3153, 512, %s10, [#allocation7], 256, 256, 16
    $region61: #{tpu_custom_call.1} parent=1 // pred_fallthru
      _
    // Predicated region
    $region62: #{tpu_custom_call.1} parent=1 // pred_check
      _
    $region63: #{tpu_custom_call.1} parent=1 // pred_check_branch
      %3160 = sbr.rel (0) target = $region65
    $region64: #{tpu_custom_call.1} parent=1 // pred_region
      %3161 = dma.done [#allocation7], 512
    $region65: #{tpu_custom_call.1} parent=1 // pred_fallthru
      _
    %3162 = vsyncpa [#allocation6], 1
    %3163 = vsyncpa [#allocation11], 1
    %3164 = vsyncpa [#allocation7], 1
    %3165 = vsyncpa [#allocation8], 1

</llo_original>
